<compile_context>
chip_gen: v5e
topology: v5e:2x2
jax: 0.10.0
libtpu: 0.0.40
codegen_flags: <defaults>
</compile_context>

<pallas_src>
import math
from functools import partial

import jax
import jax.numpy as jnp
from jax import lax
from jax.experimental import pallas as pl
from jax.experimental.pallas import tpu as pltpu

LN_EPS = 1e-5
NEG_INF = -1e30  # stand-in for float('-inf') in masked_fill


def _layer_norm(x, gamma, beta, eps=LN_EPS):
    mu = jnp.mean(x, axis=-1, keepdims=True)
    var = jnp.mean((x - mu) ** 2, axis=-1, keepdims=True)
    return (x - mu) * lax.rsqrt(var + eps) * gamma + beta


# Packed-parameter layout
#   weights  W : (10, D, D)  rows = [attn1: wk wq wv wp | attn2: wk wq wv wp | mlp: w1 w2]
#   vectors  V : (16, D)     rows = [attn1: bk bq bv bp g b | attn2: bk bq bv bp g b |
#                                    mlp: b1 b2 g b]


def _decode_block_kernel(n_head, use_bf16, x_ref, rep_ref, w_ref, vec_ref, out_ref):
    BB, L, D = x_ref.shape
    M = BB * L
    hd = D // n_head
    scale = 1.0 / math.sqrt(hd)

    cast = (lambda t: t.astype(jnp.bfloat16)) if use_bf16 else (lambda t: t)

    def mm(a, b):                           # (M,*) x (*,*) 2D matmul, f32 accumulate
        return jnp.dot(cast(a), cast(b), preferred_element_type=jnp.float32)

    def bmm(eq, a, b):                      # batched einsum, f32 accumulate
        return jnp.einsum(eq, cast(a), cast(b), preferred_element_type=jnp.float32)

    x2 = x_ref[...].reshape(M, D)           # (B*L, D) rows feed all matmuls
    rep2 = rep_ref[...].reshape(M, D)
    vecs = vec_ref[...]                     # (16, D) packed bias / LN vectors

    # causal (lower-triangular) mask, shared by both attention stages; broadcasts
    # over the fused (n_head*BB) batch dim.
    row = lax.broadcasted_iota(jnp.int32, (1, L, L), 1)
    col = lax.broadcasted_iota(jnp.int32, (1, L, L), 2)
    causal = col <= row

    def split_heads(t2):
        # (M, D) -> (n_head*BB, L, hd): fold heads into the leading batch dim.
        t3 = t2.reshape(BB, L, D)
        return jnp.concatenate(
            [t3[:, :, h * hd:(h + 1) * hd] for h in range(n_head)], axis=0)

    def merge_heads(y):
        # (n_head*BB, L, hd) -> (M, D): head h occupies lanes [h*hd, (h+1)*hd).
        return jnp.concatenate(
            [y[h * BB:(h + 1) * BB].reshape(M, hd) for h in range(n_head)], axis=-1)

    def attention_ln(kv2, q2_in, res2, w_off, v_off):
        # QKV projections as full (M,D)x(D,D) matmuls (fills the MXU M and N dims).
        k = mm(kv2, w_ref[w_off + 0]) + vecs[v_off + 0:v_off + 1]
        q = (mm(q2_in, w_ref[w_off + 1]) + vecs[v_off + 1:v_off + 2]) * scale
        v = mm(kv2, w_ref[w_off + 2]) + vecs[v_off + 2:v_off + 3]

        qh, kh, vh = split_heads(q), split_heads(k), split_heads(v)

        # Single (n_head*BB)-batched score / PV contractions for ALL heads.
        att = bmm('bqc,bkc->bqk', qh, kh)                    # (H*BB, L, L)
        att = jnp.where(causal, att, NEG_INF)
        att = att - jnp.max(att, axis=-1, keepdims=True)
        p = jnp.exp(att)
        # exact reciprocal keeps the 1e-4 check; approx=True moves it to the EUP.
        p = p * pl.reciprocal(jnp.sum(p, axis=-1, keepdims=True), approx=False)
        y = bmm('bqk,bkc->bqc', p, vh)                       # (H*BB, L, hd)

        y2 = mm(merge_heads(y), w_ref[w_off + 3]) + vecs[v_off + 3:v_off + 4]
        return _layer_norm(res2 + y2, vecs[v_off + 4:v_off + 5], vecs[v_off + 5:v_off + 6])

    x1 = attention_ln(x2, x2, x2, 0, 0)        # attn1 + ln1 (self attention on x)
    xa = attention_ln(x1, rep2, rep2, 4, 6)    # attn2 + ln2 (k=v=x1, q=res=rep_enc)

    # MLP (Linear -> exact erf-GELU -> Linear) + residual + ln3.
    hmid = mm(xa, w_ref[8]) + vecs[12:13]
    hmid = 0.5 * hmid * (1.0 + lax.erf(hmid * (1.0 / math.sqrt(2.0))))  # PyTorch-exact GELU
    y = mm(hmid, w_ref[9]) + vecs[13:14]
    out2 = _layer_norm(xa + y, vecs[14:15], vecs[15:16])

    out_ref[...] = out2.reshape(BB, L, D)


# ------------------------- wrapper ------------------------- #

def _pack_params(params):
    a1, a2, m = params["attn1"], params["attn2"], params["mlp"]
    W = jnp.stack([a1["wk"], a1["wq"], a1["wv"], a1["wp"],
                   a2["wk"], a2["wq"], a2["wv"], a2["wp"],
                   m["w1"], m["w2"]], axis=0)                      # (10, D, D)
    V = jnp.concatenate(
        [a1["bk"], a1["bq"], a1["bv"], a1["bp"], a1["ln_g"], a1["ln_b"],
         a2["bk"], a2["bq"], a2["bv"], a2["bp"], a2["ln_g"], a2["ln_b"],
         m["b1"], m["b2"], m["ln_g"], m["ln_b"]], axis=0)          # (16, D)
    return W, V


def _pick_batch_block(B):
    # Prefer >= 4 grid steps (DMA/compute pipelining), accept >= 2 (v7x dual-TC),
    # else a single step.  Always a divisor of B.
    for target in (4, 2):
        if B >= target:
            for bb in range(B // target, 0, -1):
                if B % bb == 0:
                    return bb
    return B


def decode_block(x, rep_enc, params, n_head, batch_block=None, use_bf16=False):
    """x = ln1(x + attn1(x,x,x)); x = ln2(rep + attn2(k=x,v=x,q=rep)); x = ln3(x + mlp(x))"""
    B, L, D = x.shape
    assert D % n_head == 0, "n_embd must be divisible by n_head"
    assert params["mlp"]["w1"].shape == (D, D), "fused kernel assumes mlp hidden == n_embd"
    if batch_block is None:
        batch_block = _pick_batch_block(B)
    assert B % batch_block == 0
    nb = B // batch_block

    W, V = _pack_params(params)
    if use_bf16:
        # Halves weight VMEM and doubles MXU rate; does NOT meet the 1e-4 check.
        W = W.astype(jnp.bfloat16)

    seq_spec = pl.BlockSpec((batch_block, L, D), lambda b: (b, 0, 0))
    kernel = partial(_decode_block_kernel, n_head, use_bf16)

    def call(single_buffer_consts):
        if single_buffer_consts:
            # Constant-index weight blocks: request single buffering so the packed
            # slab is not double-buffered in VMEM (key on v7x, 64 MiB physical).
            w_spec = pl.BlockSpec((10, D, D), lambda b: (0, 0, 0),
                                  pipeline_mode=pl.Buffered(1))
            v_spec = pl.BlockSpec((16, D), lambda b: (0, 0),
                                  pipeline_mode=pl.Buffered(1))
        else:
            w_spec = pl.BlockSpec((10, D, D), lambda b: (0, 0, 0))
            v_spec = pl.BlockSpec((16, D), lambda b: (0, 0))
        return pl.pallas_call(
            kernel,
            out_shape=jax.ShapeDtypeStruct((B, L, D), jnp.float32),
            grid=(nb,),
            in_specs=[seq_spec, seq_spec, w_spec, v_spec],
            out_specs=seq_spec,
            compiler_params=pltpu.CompilerParams(
                dimension_semantics=("parallel",),
                vmem_limit_bytes=64 * 1024 * 1024),   # > 16/32 MiB defaults, <= v7x physical
        )(x, rep_enc, W, V)

    try:
        return call(True)
    except Exception:
        # Fallback if this JAX build rejects pipeline_mode=pl.Buffered(1); the
        # kernel body and all other optimizations are identical.
        return call(False)


# ------------------------- parameter init ------------------------- #

def init_params(key, n_embd):
    D = n_embd
    ks = jax.random.split(key, 16)

    def lin(k, din, dout, scale=0.1):
        return scale * jax.random.normal(k, (din, dout), jnp.float32)

    def bvec(k, d, scale=0.02):
        return scale * jax.random.normal(k, (1, d), jnp.float32)

    def attn(kw):
        k = jax.random.split(kw, 8)
        return dict(
            wk=lin(k[0], D, D), bk=bvec(k[1], D),
            wq=lin(k[2], D, D), bq=bvec(k[3], D),
            wv=lin(k[4], D, D), bv=bvec(k[5], D),
            wp=lin(k[6], D, D), bp=bvec(k[7], D),
            ln_g=jnp.ones((1, D), jnp.float32),
            ln_b=jnp.zeros((1, D), jnp.float32),
        )

    mlp = dict(
        w1=lin(ks[2], D, D), b1=bvec(ks[3], D),
        w2=lin(ks[4], D, D), b2=bvec(ks[5], D),
        ln_g=jnp.ones((1, D), jnp.float32),
        ln_b=jnp.zeros((1, D), jnp.float32),
    )
    return dict(attn1=attn(ks[0]), attn2=attn(ks[1]), mlp=mlp)


# ------------------------- plain-JAX reference ------------------------- #

def _attn_ref(kv, q_in, res, p, n_head):
    B, L, D = kv.shape
    hd = D // n_head
    k = kv @ p["wk"] + p["bk"]
    q = q_in @ p["wq"] + p["bq"]
    v = kv @ p["wv"] + p["bv"]
    split = lambda t: t.reshape(B, L, n_head, hd).transpose(0, 2, 1, 3)
    k, q, v = split(k), split(q), split(v)
    att = (q @ jnp.swapaxes(k, -2, -1)) * (1.0 / math.sqrt(hd))
    mask = jnp.tril(jnp.ones((L, L), jnp.float32))
    att = jnp.where(mask == 0, NEG_INF, att)
    att = jax.nn.softmax(att, axis=-1)
    y = (att @ v).transpose(0, 2, 1, 3).reshape(B, L, D)
    y = y @ p["wp"] + p["bp"]
    return _layer_norm(res + y, p["ln_g"], p["ln_b"])


def decode_block_ref(x, rep_enc, params, n_head):
    x1 = _attn_ref(x, x, x, params["attn1"], n_head)
    x2 = _attn_ref(x1, rep_enc, rep_enc, params["attn2"], n_head)
    p = params["mlp"]
    h = x2 @ p["w1"] + p["b1"]
    h = 0.5 * h * (1.0 + lax.erf(h / math.sqrt(2.0)))
    y = h @ p["w2"] + p["b2"]
    return _layer_norm(x2 + y, p["ln_g"], p["ln_b"])


# ------------------------- main ------------------------- #

if __name__ == "__main__":
    # TODO(synk): at real model sizes, pad n_embd to a multiple of 128 and pick
    # batch_block so batch_block*n_agent >= 256 for MXU fill / lane-dense stores.
    B, n_agent, n_embd, n_head = 2, 8, 32, 4
    L = n_agent  # L <= n_agent + 1, matching the tril mask buffer

    key = jax.random.PRNGKey(0)
    kx, kr, kp = jax.random.split(key, 3)
    x = jax.random.normal(kx, (B, L, n_embd), jnp.float32)
    rep_enc = jax.random.normal(kr, (B, L, n_embd), jnp.float32)
    params = init_params(kp, n_embd)

    out = jax.block_until_ready(decode_block(x, rep_enc, params, n_head))
    ref = jax.block_until_ready(decode_block_ref(x, rep_enc, params, n_head))

    assert out.shape == (B, L, n_embd)
    assert jnp.allclose(out, ref, rtol=1e-4, atol=1e-4), (
        float(jnp.max(jnp.abs(out - ref))))
    print("KERNEL_OK")
</pallas_src>

<mosaic_0001>
module attributes {stable_mosaic.version = 11 : i64} {
  func.func @_decode_block_kernel(%arg0: i32, %arg1: memref<1x8x32xf32, #tpu.memory_space<vmem>>, %arg2: memref<1x8x32xf32, #tpu.memory_space<vmem>>, %arg3: memref<10x32x32xf32, #tpu.memory_space<vmem>>, %arg4: memref<16x32xf32, #tpu.memory_space<vmem>>, %arg5: memref<1x8x32xf32, #tpu.memory_space<vmem>>) attributes {dimension_semantics = [#tpu.dimension_semantics<parallel>], iteration_bounds = array<i64: 2>, scalar_prefetch = 0 : i64, scratch_operands = 0 : i64, tpu.core_type = #tpu.core_type<tc>, window_params = [{transform_indices = @transform_0, window_bounds = array<i64: 1, 8, 32>}, {transform_indices = @transform_1, window_bounds = array<i64: 1, 8, 32>}, {pipeline_mode = #tpu.pipeline_mode<synchronous>, transform_indices = @transform_2, window_bounds = array<i64: 10, 32, 32>}, {pipeline_mode = #tpu.pipeline_mode<synchronous>, transform_indices = @transform_3, window_bounds = array<i64: 16, 32>}, {transform_indices = @transform_4, window_bounds = array<i64: 1, 8, 32>}]} {
    %c0 = arith.constant 0 : index
    %c0_0 = arith.constant 0 : index
    %c0_1 = arith.constant 0 : index
    %0 = vector.load %arg1[%c0, %c0_0, %c0_1] : memref<1x8x32xf32, #tpu.memory_space<vmem>>, vector<1x8x32xf32>
    %1 = vector.shape_cast %0 : vector<1x8x32xf32> to vector<8x32xf32>
    %c0_2 = arith.constant 0 : index
    %c0_3 = arith.constant 0 : index
    %c0_4 = arith.constant 0 : index
    %2 = vector.load %arg2[%c0_2, %c0_3, %c0_4] : memref<1x8x32xf32, #tpu.memory_space<vmem>>, vector<1x8x32xf32>
    %3 = vector.shape_cast %2 : vector<1x8x32xf32> to vector<8x32xf32>
    %c0_5 = arith.constant 0 : index
    %c0_6 = arith.constant 0 : index
    %4 = vector.load %arg4[%c0_5, %c0_6] : memref<16x32xf32, #tpu.memory_space<vmem>>, vector<16x32xf32>
    %5 = tpu.iota {dimensions = array<i32: 1>} : vector<1x8x8xi32>
    %6 = tpu.iota {dimensions = array<i32: 2>} : vector<1x8x8xi32>
    %7 = arith.cmpi sle, %6, %5 : vector<1x8x8xi32>
    %c0_7 = arith.constant 0 : index
    %c0_8 = arith.constant 0 : index
    %c0_9 = arith.constant 0 : index
    %8 = vector.load %arg3[%c0_7, %c0_8, %c0_9] : memref<10x32x32xf32, #tpu.memory_space<vmem>>, vector<1x32x32xf32>
    %9 = vector.shape_cast %8 : vector<1x32x32xf32> to vector<32x32xf32>
    %cst = arith.constant dense<0.000000e+00> : vector<8x32xf32>
    %10 = tpu.matmul %1, %9, %cst {dimension_numbers = #tpu.dot_dimension_numbers<[1], [0], [0], [1], [0, 0, 1, 1], [], []>} : vector<8x32xf32>, vector<32x32xf32>, vector<8x32xf32> -> vector<8x32xf32>
    %11 = vector.extract_strided_slice %4 {offsets = [0, 0], sizes = [1, 32], strides = [1, 1]} : vector<16x32xf32> to vector<1x32xf32>
    %12 = vector.broadcast %11 : vector<1x32xf32> to vector<8x32xf32>
    %13 = arith.addf %10, %12 : vector<8x32xf32>
    %c1 = arith.constant 1 : index
    %c0_10 = arith.constant 0 : index
    %c0_11 = arith.constant 0 : index
    %14 = vector.load %arg3[%c1, %c0_10, %c0_11] : memref<10x32x32xf32, #tpu.memory_space<vmem>>, vector<1x32x32xf32>
    %15 = vector.shape_cast %14 : vector<1x32x32xf32> to vector<32x32xf32>
    %cst_12 = arith.constant dense<0.000000e+00> : vector<8x32xf32>
    %16 = tpu.matmul %1, %15, %cst_12 {dimension_numbers = #tpu.dot_dimension_numbers<[1], [0], [0], [1], [0, 0, 1, 1], [], []>} : vector<8x32xf32>, vector<32x32xf32>, vector<8x32xf32> -> vector<8x32xf32>
    %17 = vector.extract_strided_slice %4 {offsets = [1, 0], sizes = [1, 32], strides = [1, 1]} : vector<16x32xf32> to vector<1x32xf32>
    %18 = vector.broadcast %17 : vector<1x32xf32> to vector<8x32xf32>
    %19 = arith.addf %16, %18 : vector<8x32xf32>
    %cst_13 = arith.constant 0.353553385 : f32
    %20 = vector.broadcast %cst_13 : f32 to vector<8x32xf32>
    %21 = arith.mulf %19, %20 : vector<8x32xf32>
    %c2 = arith.constant 2 : index
    %c0_14 = arith.constant 0 : index
    %c0_15 = arith.constant 0 : index
    %22 = vector.load %arg3[%c2, %c0_14, %c0_15] : memref<10x32x32xf32, #tpu.memory_space<vmem>>, vector<1x32x32xf32>
    %23 = vector.shape_cast %22 : vector<1x32x32xf32> to vector<32x32xf32>
    %cst_16 = arith.constant dense<0.000000e+00> : vector<8x32xf32>
    %24 = tpu.matmul %1, %23, %cst_16 {dimension_numbers = #tpu.dot_dimension_numbers<[1], [0], [0], [1], [0, 0, 1, 1], [], []>} : vector<8x32xf32>, vector<32x32xf32>, vector<8x32xf32> -> vector<8x32xf32>
    %25 = vector.extract_strided_slice %4 {offsets = [2, 0], sizes = [1, 32], strides = [1, 1]} : vector<16x32xf32> to vector<1x32xf32>
    %26 = vector.broadcast %25 : vector<1x32xf32> to vector<8x32xf32>
    %27 = arith.addf %24, %26 : vector<8x32xf32>
    %28 = vector.shape_cast %21 : vector<8x32xf32> to vector<1x8x32xf32>
    %29 = vector.extract_strided_slice %28 {offsets = [0, 0, 0], sizes = [1, 8, 8], strides = [1, 1, 1]} : vector<1x8x32xf32> to vector<1x8x8xf32>
    %30 = vector.extract_strided_slice %28 {offsets = [0, 0, 8], sizes = [1, 8, 8], strides = [1, 1, 1]} : vector<1x8x32xf32> to vector<1x8x8xf32>
    %31 = vector.extract_strided_slice %28 {offsets = [0, 0, 16], sizes = [1, 8, 8], strides = [1, 1, 1]} : vector<1x8x32xf32> to vector<1x8x8xf32>
    %32 = vector.extract_strided_slice %28 {offsets = [0, 0, 24], sizes = [1, 8, 8], strides = [1, 1, 1]} : vector<1x8x32xf32> to vector<1x8x8xf32>
    %33 = tpu.concatenate %29, %30, %31, %32 in 0 : vector<1x8x8xf32>, vector<1x8x8xf32>, vector<1x8x8xf32>, vector<1x8x8xf32> -> vector<4x8x8xf32>
    %34 = vector.shape_cast %13 : vector<8x32xf32> to vector<1x8x32xf32>
    %35 = vector.extract_strided_slice %34 {offsets = [0, 0, 0], sizes = [1, 8, 8], strides = [1, 1, 1]} : vector<1x8x32xf32> to vector<1x8x8xf32>
    %36 = vector.extract_strided_slice %34 {offsets = [0, 0, 8], sizes = [1, 8, 8], strides = [1, 1, 1]} : vector<1x8x32xf32> to vector<1x8x8xf32>
    %37 = vector.extract_strided_slice %34 {offsets = [0, 0, 16], sizes = [1, 8, 8], strides = [1, 1, 1]} : vector<1x8x32xf32> to vector<1x8x8xf32>
    %38 = vector.extract_strided_slice %34 {offsets = [0, 0, 24], sizes = [1, 8, 8], strides = [1, 1, 1]} : vector<1x8x32xf32> to vector<1x8x8xf32>
    %39 = tpu.concatenate %35, %36, %37, %38 in 0 : vector<1x8x8xf32>, vector<1x8x8xf32>, vector<1x8x8xf32>, vector<1x8x8xf32> -> vector<4x8x8xf32>
    %40 = vector.shape_cast %27 : vector<8x32xf32> to vector<1x8x32xf32>
    %41 = vector.extract_strided_slice %40 {offsets = [0, 0, 0], sizes = [1, 8, 8], strides = [1, 1, 1]} : vector<1x8x32xf32> to vector<1x8x8xf32>
    %42 = vector.extract_strided_slice %40 {offsets = [0, 0, 8], sizes = [1, 8, 8], strides = [1, 1, 1]} : vector<1x8x32xf32> to vector<1x8x8xf32>
    %43 = vector.extract_strided_slice %40 {offsets = [0, 0, 16], sizes = [1, 8, 8], strides = [1, 1, 1]} : vector<1x8x32xf32> to vector<1x8x8xf32>
    %44 = vector.extract_strided_slice %40 {offsets = [0, 0, 24], sizes = [1, 8, 8], strides = [1, 1, 1]} : vector<1x8x32xf32> to vector<1x8x8xf32>
    %45 = tpu.concatenate %41, %42, %43, %44 in 0 : vector<1x8x8xf32>, vector<1x8x8xf32>, vector<1x8x8xf32>, vector<1x8x8xf32> -> vector<4x8x8xf32>
    "tpu.trace_start"() <{level = 10 : i32, message = "bqc,bkc->bqk"}> : () -> ()
    %cst_17 = arith.constant dense<0.000000e+00> : vector<4x8x8xf32>
    %46 = tpu.matmul %33, %39, %cst_17 {dimension_numbers = #tpu.dot_dimension_numbers<[2], [2], [1], [1], [0, 0, 0, 1, 1, 1], [0], [0]>} : vector<4x8x8xf32>, vector<4x8x8xf32>, vector<4x8x8xf32> -> vector<4x8x8xf32>
    %cst_18 = arith.constant -1.000000e+30 : f32
    "tpu.trace_stop"() : () -> ()
    %47 = vector.shape_cast %7 : vector<1x8x8xi1> to vector<1x8x8xi1>
    %48 = vector.broadcast %47 : vector<1x8x8xi1> to vector<4x8x8xi1>
    %49 = vector.broadcast %cst_18 : f32 to vector<4x8x8xf32>
    %50 = arith.select %48, %46, %49 : vector<4x8x8xi1>, vector<4x8x8xf32>
    %cst_19 = arith.constant dense<0xFF800000> : vector<4x8xf32>
    %51 = vector.multi_reduction <maximumf>, %50, %cst_19 [2] : vector<4x8x8xf32> to vector<4x8xf32>
    %52 = vector.shape_cast %51 : vector<4x8xf32> to vector<4x8x1xf32>
    %53 = vector.broadcast %52 : vector<4x8x1xf32> to vector<4x8x8xf32>
    %54 = arith.subf %50, %53 : vector<4x8x8xf32>
    %55 = math.exp %54 : vector<4x8x8xf32>
    %cst_20 = arith.constant dense<0.000000e+00> : vector<4x8xf32>
    %56 = vector.multi_reduction <add>, %55, %cst_20 [2] : vector<4x8x8xf32> to vector<4x8xf32>
    %57 = vector.shape_cast %56 : vector<4x8xf32> to vector<4x8x1xf32>
    %58 = tpu.reciprocal %57 : vector<4x8x1xf32> -> vector<4x8x1xf32>
    %59 = vector.broadcast %58 : vector<4x8x1xf32> to vector<4x8x8xf32>
    %60 = arith.mulf %55, %59 : vector<4x8x8xf32>
    "tpu.trace_start"() <{level = 10 : i32, message = "bqk,bkc->bqc"}> : () -> ()
    %cst_21 = arith.constant dense<0.000000e+00> : vector<4x8x8xf32>
    %61 = tpu.matmul %60, %45, %cst_21 {dimension_numbers = #tpu.dot_dimension_numbers<[2], [1], [1], [2], [0, 0, 0, 1, 1, 2], [0], [0]>} : vector<4x8x8xf32>, vector<4x8x8xf32>, vector<4x8x8xf32> -> vector<4x8x8xf32>
    "tpu.trace_stop"() : () -> ()
    %62 = vector.extract_strided_slice %61 {offsets = [0, 0, 0], sizes = [1, 8, 8], strides = [1, 1, 1]} : vector<4x8x8xf32> to vector<1x8x8xf32>
    %63 = vector.shape_cast %62 : vector<1x8x8xf32> to vector<8x8xf32>
    %64 = vector.extract_strided_slice %61 {offsets = [1, 0, 0], sizes = [1, 8, 8], strides = [1, 1, 1]} : vector<4x8x8xf32> to vector<1x8x8xf32>
    %65 = vector.shape_cast %64 : vector<1x8x8xf32> to vector<8x8xf32>
    %66 = vector.extract_strided_slice %61 {offsets = [2, 0, 0], sizes = [1, 8, 8], strides = [1, 1, 1]} : vector<4x8x8xf32> to vector<1x8x8xf32>
    %67 = vector.shape_cast %66 : vector<1x8x8xf32> to vector<8x8xf32>
    %68 = vector.extract_strided_slice %61 {offsets = [3, 0, 0], sizes = [1, 8, 8], strides = [1, 1, 1]} : vector<4x8x8xf32> to vector<1x8x8xf32>
    %69 = vector.shape_cast %68 : vector<1x8x8xf32> to vector<8x8xf32>
    %70 = tpu.concatenate %63, %65, %67, %69 in 1 : vector<8x8xf32>, vector<8x8xf32>, vector<8x8xf32>, vector<8x8xf32> -> vector<8x32xf32>
    %c3 = arith.constant 3 : index
    %c0_22 = arith.constant 0 : index
    %c0_23 = arith.constant 0 : index
    %71 = vector.load %arg3[%c3, %c0_22, %c0_23] : memref<10x32x32xf32, #tpu.memory_space<vmem>>, vector<1x32x32xf32>
    %72 = vector.shape_cast %71 : vector<1x32x32xf32> to vector<32x32xf32>
    %cst_24 = arith.constant dense<0.000000e+00> : vector<8x32xf32>
    %73 = tpu.matmul %70, %72, %cst_24 {dimension_numbers = #tpu.dot_dimension_numbers<[1], [0], [0], [1], [0, 0, 1, 1], [], []>} : vector<8x32xf32>, vector<32x32xf32>, vector<8x32xf32> -> vector<8x32xf32>
    %74 = vector.extract_strided_slice %4 {offsets = [3, 0], sizes = [1, 32], strides = [1, 1]} : vector<16x32xf32> to vector<1x32xf32>
    %75 = vector.broadcast %74 : vector<1x32xf32> to vector<8x32xf32>
    %76 = arith.addf %73, %75 : vector<8x32xf32>
    %77 = arith.addf %1, %76 : vector<8x32xf32>
    %78 = vector.extract_strided_slice %4 {offsets = [4, 0], sizes = [1, 32], strides = [1, 1]} : vector<16x32xf32> to vector<1x32xf32>
    %79 = vector.extract_strided_slice %4 {offsets = [5, 0], sizes = [1, 32], strides = [1, 1]} : vector<16x32xf32> to vector<1x32xf32>
    %cst_25 = arith.constant dense<0.000000e+00> : vector<8xf32>
    %80 = vector.multi_reduction <add>, %77, %cst_25 [1] : vector<8x32xf32> to vector<8xf32>
    %81 = vector.shape_cast %80 : vector<8xf32> to vector<8x1xf32>
    %cst_26 = arith.constant 3.200000e+01 : f32
    %82 = vector.broadcast %cst_26 : f32 to vector<8x1xf32>
    %83 = arith.divf %81, %82 : vector<8x1xf32>
    %84 = vector.broadcast %83 : vector<8x1xf32> to vector<8x32xf32>
    %85 = arith.subf %77, %84 : vector<8x32xf32>
    %86 = arith.mulf %85, %85 : vector<8x32xf32>
    %cst_27 = arith.constant dense<0.000000e+00> : vector<8xf32>
    %87 = vector.multi_reduction <add>, %86, %cst_27 [1] : vector<8x32xf32> to vector<8xf32>
    %88 = vector.shape_cast %87 : vector<8xf32> to vector<8x1xf32>
    %cst_28 = arith.constant 3.200000e+01 : f32
    %89 = vector.broadcast %cst_28 : f32 to vector<8x1xf32>
    %90 = arith.divf %88, %89 : vector<8x1xf32>
    %91 = vector.broadcast %83 : vector<8x1xf32> to vector<8x32xf32>
    %92 = arith.subf %77, %91 : vector<8x32xf32>
    %cst_29 = arith.constant 9.99999974E-6 : f32
    %93 = vector.broadcast %cst_29 : f32 to vector<8x1xf32>
    %94 = arith.addf %90, %93 : vector<8x1xf32>
    %95 = math.rsqrt %94 : vector<8x1xf32>
    %96 = vector.broadcast %95 : vector<8x1xf32> to vector<8x32xf32>
    %97 = arith.mulf %92, %96 : vector<8x32xf32>
    %98 = vector.broadcast %78 : vector<1x32xf32> to vector<8x32xf32>
    %99 = arith.mulf %97, %98 : vector<8x32xf32>
    %100 = vector.broadcast %79 : vector<1x32xf32> to vector<8x32xf32>
    %101 = arith.addf %99, %100 : vector<8x32xf32>
    %c4 = arith.constant 4 : index
    %c0_30 = arith.constant 0 : index
    %c0_31 = arith.constant 0 : index
    %102 = vector.load %arg3[%c4, %c0_30, %c0_31] : memref<10x32x32xf32, #tpu.memory_space<vmem>>, vector<1x32x32xf32>
    %103 = vector.shape_cast %102 : vector<1x32x32xf32> to vector<32x32xf32>
    %cst_32 = arith.constant dense<0.000000e+00> : vector<8x32xf32>
    %104 = tpu.matmul %101, %103, %cst_32 {dimension_numbers = #tpu.dot_dimension_numbers<[1], [0], [0], [1], [0, 0, 1, 1], [], []>} : vector<8x32xf32>, vector<32x32xf32>, vector<8x32xf32> -> vector<8x32xf32>
    %105 = vector.extract_strided_slice %4 {offsets = [6, 0], sizes = [1, 32], strides = [1, 1]} : vector<16x32xf32> to vector<1x32xf32>
    %106 = vector.broadcast %105 : vector<1x32xf32> to vector<8x32xf32>
    %107 = arith.addf %104, %106 : vector<8x32xf32>
    %c5 = arith.constant 5 : index
    %c0_33 = arith.constant 0 : index
    %c0_34 = arith.constant 0 : index
    %108 = vector.load %arg3[%c5, %c0_33, %c0_34] : memref<10x32x32xf32, #tpu.memory_space<vmem>>, vector<1x32x32xf32>
    %109 = vector.shape_cast %108 : vector<1x32x32xf32> to vector<32x32xf32>
    %cst_35 = arith.constant dense<0.000000e+00> : vector<8x32xf32>
    %110 = tpu.matmul %3, %109, %cst_35 {dimension_numbers = #tpu.dot_dimension_numbers<[1], [0], [0], [1], [0, 0, 1, 1], [], []>} : vector<8x32xf32>, vector<32x32xf32>, vector<8x32xf32> -> vector<8x32xf32>
    %111 = vector.extract_strided_slice %4 {offsets = [7, 0], sizes = [1, 32], strides = [1, 1]} : vector<16x32xf32> to vector<1x32xf32>
    %112 = vector.broadcast %111 : vector<1x32xf32> to vector<8x32xf32>
    %113 = arith.addf %110, %112 : vector<8x32xf32>
    %cst_36 = arith.constant 0.353553385 : f32
    %114 = vector.broadcast %cst_36 : f32 to vector<8x32xf32>
    %115 = arith.mulf %113, %114 : vector<8x32xf32>
    %c6 = arith.constant 6 : index
    %c0_37 = arith.constant 0 : index
    %c0_38 = arith.constant 0 : index
    %116 = vector.load %arg3[%c6, %c0_37, %c0_38] : memref<10x32x32xf32, #tpu.memory_space<vmem>>, vector<1x32x32xf32>
    %117 = vector.shape_cast %116 : vector<1x32x32xf32> to vector<32x32xf32>
    %cst_39 = arith.constant dense<0.000000e+00> : vector<8x32xf32>
    %118 = tpu.matmul %101, %117, %cst_39 {dimension_numbers = #tpu.dot_dimension_numbers<[1], [0], [0], [1], [0, 0, 1, 1], [], []>} : vector<8x32xf32>, vector<32x32xf32>, vector<8x32xf32> -> vector<8x32xf32>
    %119 = vector.extract_strided_slice %4 {offsets = [8, 0], sizes = [1, 32], strides = [1, 1]} : vector<16x32xf32> to vector<1x32xf32>
    %120 = vector.broadcast %119 : vector<1x32xf32> to vector<8x32xf32>
    %121 = arith.addf %118, %120 : vector<8x32xf32>
    %122 = vector.shape_cast %115 : vector<8x32xf32> to vector<1x8x32xf32>
    %123 = vector.extract_strided_slice %122 {offsets = [0, 0, 0], sizes = [1, 8, 8], strides = [1, 1, 1]} : vector<1x8x32xf32> to vector<1x8x8xf32>
    %124 = vector.extract_strided_slice %122 {offsets = [0, 0, 8], sizes = [1, 8, 8], strides = [1, 1, 1]} : vector<1x8x32xf32> to vector<1x8x8xf32>
    %125 = vector.extract_strided_slice %122 {offsets = [0, 0, 16], sizes = [1, 8, 8], strides = [1, 1, 1]} : vector<1x8x32xf32> to vector<1x8x8xf32>
    %126 = vector.extract_strided_slice %122 {offsets = [0, 0, 24], sizes = [1, 8, 8], strides = [1, 1, 1]} : vector<1x8x32xf32> to vector<1x8x8xf32>
    %127 = tpu.concatenate %123, %124, %125, %126 in 0 : vector<1x8x8xf32>, vector<1x8x8xf32>, vector<1x8x8xf32>, vector<1x8x8xf32> -> vector<4x8x8xf32>
    %128 = vector.shape_cast %107 : vector<8x32xf32> to vector<1x8x32xf32>
    %129 = vector.extract_strided_slice %128 {offsets = [0, 0, 0], sizes = [1, 8, 8], strides = [1, 1, 1]} : vector<1x8x32xf32> to vector<1x8x8xf32>
    %130 = vector.extract_strided_slice %128 {offsets = [0, 0, 8], sizes = [1, 8, 8], strides = [1, 1, 1]} : vector<1x8x32xf32> to vector<1x8x8xf32>
    %131 = vector.extract_strided_slice %128 {offsets = [0, 0, 16], sizes = [1, 8, 8], strides = [1, 1, 1]} : vector<1x8x32xf32> to vector<1x8x8xf32>
    %132 = vector.extract_strided_slice %128 {offsets = [0, 0, 24], sizes = [1, 8, 8], strides = [1, 1, 1]} : vector<1x8x32xf32> to vector<1x8x8xf32>
    %133 = tpu.concatenate %129, %130, %131, %132 in 0 : vector<1x8x8xf32>, vector<1x8x8xf32>, vector<1x8x8xf32>, vector<1x8x8xf32> -> vector<4x8x8xf32>
    %134 = vector.shape_cast %121 : vector<8x32xf32> to vector<1x8x32xf32>
    %135 = vector.extract_strided_slice %134 {offsets = [0, 0, 0], sizes = [1, 8, 8], strides = [1, 1, 1]} : vector<1x8x32xf32> to vector<1x8x8xf32>
    %136 = vector.extract_strided_slice %134 {offsets = [0, 0, 8], sizes = [1, 8, 8], strides = [1, 1, 1]} : vector<1x8x32xf32> to vector<1x8x8xf32>
    %137 = vector.extract_strided_slice %134 {offsets = [0, 0, 16], sizes = [1, 8, 8], strides = [1, 1, 1]} : vector<1x8x32xf32> to vector<1x8x8xf32>
    %138 = vector.extract_strided_slice %134 {offsets = [0, 0, 24], sizes = [1, 8, 8], strides = [1, 1, 1]} : vector<1x8x32xf32> to vector<1x8x8xf32>
    %139 = tpu.concatenate %135, %136, %137, %138 in 0 : vector<1x8x8xf32>, vector<1x8x8xf32>, vector<1x8x8xf32>, vector<1x8x8xf32> -> vector<4x8x8xf32>
    "tpu.trace_start"() <{level = 10 : i32, message = "bqc,bkc->bqk"}> : () -> ()
    %cst_40 = arith.constant dense<0.000000e+00> : vector<4x8x8xf32>
    %140 = tpu.matmul %127, %133, %cst_40 {dimension_numbers = #tpu.dot_dimension_numbers<[2], [2], [1], [1], [0, 0, 0, 1, 1, 1], [0], [0]>} : vector<4x8x8xf32>, vector<4x8x8xf32>, vector<4x8x8xf32> -> vector<4x8x8xf32>
    %cst_41 = arith.constant -1.000000e+30 : f32
    "tpu.trace_stop"() : () -> ()
    %141 = vector.shape_cast %7 : vector<1x8x8xi1> to vector<1x8x8xi1>
    %142 = vector.broadcast %141 : vector<1x8x8xi1> to vector<4x8x8xi1>
    %143 = vector.broadcast %cst_41 : f32 to vector<4x8x8xf32>
    %144 = arith.select %142, %140, %143 : vector<4x8x8xi1>, vector<4x8x8xf32>
    %cst_42 = arith.constant dense<0xFF800000> : vector<4x8xf32>
    %145 = vector.multi_reduction <maximumf>, %144, %cst_42 [2] : vector<4x8x8xf32> to vector<4x8xf32>
    %146 = vector.shape_cast %145 : vector<4x8xf32> to vector<4x8x1xf32>
    %147 = vector.broadcast %146 : vector<4x8x1xf32> to vector<4x8x8xf32>
    %148 = arith.subf %144, %147 : vector<4x8x8xf32>
    %149 = math.exp %148 : vector<4x8x8xf32>
    %cst_43 = arith.constant dense<0.000000e+00> : vector<4x8xf32>
    %150 = vector.multi_reduction <add>, %149, %cst_43 [2] : vector<4x8x8xf32> to vector<4x8xf32>
    %151 = vector.shape_cast %150 : vector<4x8xf32> to vector<4x8x1xf32>
    %152 = tpu.reciprocal %151 : vector<4x8x1xf32> -> vector<4x8x1xf32>
    %153 = vector.broadcast %152 : vector<4x8x1xf32> to vector<4x8x8xf32>
    %154 = arith.mulf %149, %153 : vector<4x8x8xf32>
    "tpu.trace_start"() <{level = 10 : i32, message = "bqk,bkc->bqc"}> : () -> ()
    %cst_44 = arith.constant dense<0.000000e+00> : vector<4x8x8xf32>
    %155 = tpu.matmul %154, %139, %cst_44 {dimension_numbers = #tpu.dot_dimension_numbers<[2], [1], [1], [2], [0, 0, 0, 1, 1, 2], [0], [0]>} : vector<4x8x8xf32>, vector<4x8x8xf32>, vector<4x8x8xf32> -> vector<4x8x8xf32>
    "tpu.trace_stop"() : () -> ()
    %156 = vector.extract_strided_slice %155 {offsets = [0, 0, 0], sizes = [1, 8, 8], strides = [1, 1, 1]} : vector<4x8x8xf32> to vector<1x8x8xf32>
    %157 = vector.shape_cast %156 : vector<1x8x8xf32> to vector<8x8xf32>
    %158 = vector.extract_strided_slice %155 {offsets = [1, 0, 0], sizes = [1, 8, 8], strides = [1, 1, 1]} : vector<4x8x8xf32> to vector<1x8x8xf32>
    %159 = vector.shape_cast %158 : vector<1x8x8xf32> to vector<8x8xf32>
    %160 = vector.extract_strided_slice %155 {offsets = [2, 0, 0], sizes = [1, 8, 8], strides = [1, 1, 1]} : vector<4x8x8xf32> to vector<1x8x8xf32>
    %161 = vector.shape_cast %160 : vector<1x8x8xf32> to vector<8x8xf32>
    %162 = vector.extract_strided_slice %155 {offsets = [3, 0, 0], sizes = [1, 8, 8], strides = [1, 1, 1]} : vector<4x8x8xf32> to vector<1x8x8xf32>
    %163 = vector.shape_cast %162 : vector<1x8x8xf32> to vector<8x8xf32>
    %164 = tpu.concatenate %157, %159, %161, %163 in 1 : vector<8x8xf32>, vector<8x8xf32>, vector<8x8xf32>, vector<8x8xf32> -> vector<8x32xf32>
    %c7 = arith.constant 7 : index
    %c0_45 = arith.constant 0 : index
    %c0_46 = arith.constant 0 : index
    %165 = vector.load %arg3[%c7, %c0_45, %c0_46] : memref<10x32x32xf32, #tpu.memory_space<vmem>>, vector<1x32x32xf32>
    %166 = vector.shape_cast %165 : vector<1x32x32xf32> to vector<32x32xf32>
    %cst_47 = arith.constant dense<0.000000e+00> : vector<8x32xf32>
    %167 = tpu.matmul %164, %166, %cst_47 {dimension_numbers = #tpu.dot_dimension_numbers<[1], [0], [0], [1], [0, 0, 1, 1], [], []>} : vector<8x32xf32>, vector<32x32xf32>, vector<8x32xf32> -> vector<8x32xf32>
    %168 = vector.extract_strided_slice %4 {offsets = [9, 0], sizes = [1, 32], strides = [1, 1]} : vector<16x32xf32> to vector<1x32xf32>
    %169 = vector.broadcast %168 : vector<1x32xf32> to vector<8x32xf32>
    %170 = arith.addf %167, %169 : vector<8x32xf32>
    %171 = arith.addf %3, %170 : vector<8x32xf32>
    %172 = vector.extract_strided_slice %4 {offsets = [10, 0], sizes = [1, 32], strides = [1, 1]} : vector<16x32xf32> to vector<1x32xf32>
    %173 = vector.extract_strided_slice %4 {offsets = [11, 0], sizes = [1, 32], strides = [1, 1]} : vector<16x32xf32> to vector<1x32xf32>
    %cst_48 = arith.constant dense<0.000000e+00> : vector<8xf32>
    %174 = vector.multi_reduction <add>, %171, %cst_48 [1] : vector<8x32xf32> to vector<8xf32>
    %175 = vector.shape_cast %174 : vector<8xf32> to vector<8x1xf32>
    %cst_49 = arith.constant 3.200000e+01 : f32
    %176 = vector.broadcast %cst_49 : f32 to vector<8x1xf32>
    %177 = arith.divf %175, %176 : vector<8x1xf32>
    %178 = vector.broadcast %177 : vector<8x1xf32> to vector<8x32xf32>
    %179 = arith.subf %171, %178 : vector<8x32xf32>
    %180 = arith.mulf %179, %179 : vector<8x32xf32>
    %cst_50 = arith.constant dense<0.000000e+00> : vector<8xf32>
    %181 = vector.multi_reduction <add>, %180, %cst_50 [1] : vector<8x32xf32> to vector<8xf32>
    %182 = vector.shape_cast %181 : vector<8xf32> to vector<8x1xf32>
    %cst_51 = arith.constant 3.200000e+01 : f32
    %183 = vector.broadcast %cst_51 : f32 to vector<8x1xf32>
    %184 = arith.divf %182, %183 : vector<8x1xf32>
    %185 = vector.broadcast %177 : vector<8x1xf32> to vector<8x32xf32>
    %186 = arith.subf %171, %185 : vector<8x32xf32>
    %cst_52 = arith.constant 9.99999974E-6 : f32
    %187 = vector.broadcast %cst_52 : f32 to vector<8x1xf32>
    %188 = arith.addf %184, %187 : vector<8x1xf32>
    %189 = math.rsqrt %188 : vector<8x1xf32>
    %190 = vector.broadcast %189 : vector<8x1xf32> to vector<8x32xf32>
    %191 = arith.mulf %186, %190 : vector<8x32xf32>
    %192 = vector.broadcast %172 : vector<1x32xf32> to vector<8x32xf32>
    %193 = arith.mulf %191, %192 : vector<8x32xf32>
    %194 = vector.broadcast %173 : vector<1x32xf32> to vector<8x32xf32>
    %195 = arith.addf %193, %194 : vector<8x32xf32>
    %c8 = arith.constant 8 : index
    %c0_53 = arith.constant 0 : index
    %c0_54 = arith.constant 0 : index
    %196 = vector.load %arg3[%c8, %c0_53, %c0_54] : memref<10x32x32xf32, #tpu.memory_space<vmem>>, vector<1x32x32xf32>
    %197 = vector.shape_cast %196 : vector<1x32x32xf32> to vector<32x32xf32>
    %cst_55 = arith.constant dense<0.000000e+00> : vector<8x32xf32>
    %198 = tpu.matmul %195, %197, %cst_55 {dimension_numbers = #tpu.dot_dimension_numbers<[1], [0], [0], [1], [0, 0, 1, 1], [], []>} : vector<8x32xf32>, vector<32x32xf32>, vector<8x32xf32> -> vector<8x32xf32>
    %199 = vector.extract_strided_slice %4 {offsets = [12, 0], sizes = [1, 32], strides = [1, 1]} : vector<16x32xf32> to vector<1x32xf32>
    %200 = vector.broadcast %199 : vector<1x32xf32> to vector<8x32xf32>
    %201 = arith.addf %198, %200 : vector<8x32xf32>
    %cst_56 = arith.constant 5.000000e-01 : f32
    %202 = vector.broadcast %cst_56 : f32 to vector<8x32xf32>
    %203 = arith.mulf %202, %201 : vector<8x32xf32>
    %cst_57 = arith.constant 0.707106769 : f32
    %204 = vector.broadcast %cst_57 : f32 to vector<8x32xf32>
    %205 = arith.mulf %201, %204 : vector<8x32xf32>
    %206 = math.erf %205 : vector<8x32xf32>
    %cst_58 = arith.constant 1.000000e+00 : f32
    %207 = vector.broadcast %cst_58 : f32 to vector<8x32xf32>
    %208 = arith.addf %207, %206 : vector<8x32xf32>
    %209 = arith.mulf %203, %208 : vector<8x32xf32>
    %c9 = arith.constant 9 : index
    %c0_59 = arith.constant 0 : index
    %c0_60 = arith.constant 0 : index
    %210 = vector.load %arg3[%c9, %c0_59, %c0_60] : memref<10x32x32xf32, #tpu.memory_space<vmem>>, vector<1x32x32xf32>
    %211 = vector.shape_cast %210 : vector<1x32x32xf32> to vector<32x32xf32>
    %cst_61 = arith.constant dense<0.000000e+00> : vector<8x32xf32>
    %212 = tpu.matmul %209, %211, %cst_61 {dimension_numbers = #tpu.dot_dimension_numbers<[1], [0], [0], [1], [0, 0, 1, 1], [], []>} : vector<8x32xf32>, vector<32x32xf32>, vector<8x32xf32> -> vector<8x32xf32>
    %213 = vector.extract_strided_slice %4 {offsets = [13, 0], sizes = [1, 32], strides = [1, 1]} : vector<16x32xf32> to vector<1x32xf32>
    %214 = vector.broadcast %213 : vector<1x32xf32> to vector<8x32xf32>
    %215 = arith.addf %212, %214 : vector<8x32xf32>
    %216 = arith.addf %195, %215 : vector<8x32xf32>
    %217 = vector.extract_strided_slice %4 {offsets = [14, 0], sizes = [1, 32], strides = [1, 1]} : vector<16x32xf32> to vector<1x32xf32>
    %218 = vector.extract_strided_slice %4 {offsets = [15, 0], sizes = [1, 32], strides = [1, 1]} : vector<16x32xf32> to vector<1x32xf32>
    %cst_62 = arith.constant dense<0.000000e+00> : vector<8xf32>
    %219 = vector.multi_reduction <add>, %216, %cst_62 [1] : vector<8x32xf32> to vector<8xf32>
    %220 = vector.shape_cast %219 : vector<8xf32> to vector<8x1xf32>
    %cst_63 = arith.constant 3.200000e+01 : f32
    %221 = vector.broadcast %cst_63 : f32 to vector<8x1xf32>
    %222 = arith.divf %220, %221 : vector<8x1xf32>
    %223 = vector.broadcast %222 : vector<8x1xf32> to vector<8x32xf32>
    %224 = arith.subf %216, %223 : vector<8x32xf32>
    %225 = arith.mulf %224, %224 : vector<8x32xf32>
    %cst_64 = arith.constant dense<0.000000e+00> : vector<8xf32>
    %226 = vector.multi_reduction <add>, %225, %cst_64 [1] : vector<8x32xf32> to vector<8xf32>
    %227 = vector.shape_cast %226 : vector<8xf32> to vector<8x1xf32>
    %cst_65 = arith.constant 3.200000e+01 : f32
    %228 = vector.broadcast %cst_65 : f32 to vector<8x1xf32>
    %229 = arith.divf %227, %228 : vector<8x1xf32>
    %230 = vector.broadcast %222 : vector<8x1xf32> to vector<8x32xf32>
    %231 = arith.subf %216, %230 : vector<8x32xf32>
    %cst_66 = arith.constant 9.99999974E-6 : f32
    %232 = vector.broadcast %cst_66 : f32 to vector<8x1xf32>
    %233 = arith.addf %229, %232 : vector<8x1xf32>
    %234 = math.rsqrt %233 : vector<8x1xf32>
    %235 = vector.broadcast %234 : vector<8x1xf32> to vector<8x32xf32>
    %236 = arith.mulf %231, %235 : vector<8x32xf32>
    %237 = vector.broadcast %217 : vector<1x32xf32> to vector<8x32xf32>
    %238 = arith.mulf %236, %237 : vector<8x32xf32>
    %239 = vector.broadcast %218 : vector<1x32xf32> to vector<8x32xf32>
    %240 = arith.addf %238, %239 : vector<8x32xf32>
    %241 = vector.shape_cast %240 : vector<8x32xf32> to vector<1x8x32xf32>
    %c0_67 = arith.constant 0 : index
    %c0_68 = arith.constant 0 : index
    %c0_69 = arith.constant 0 : index
    %242 = vector.load %arg5[%c0_67, %c0_68, %c0_69] : memref<1x8x32xf32, #tpu.memory_space<vmem>>, vector<1x8x32xf32>
    tpu.vector_store %arg5[%c0_67, %c0_68, %c0_69], %241 {strides = array<i32>} : memref<1x8x32xf32, #tpu.memory_space<vmem>>, vector<1x8x32xf32>,
    return
  }
  func.func @transform_0(%arg0: i32) -> (i32, i32, i32) {
    %c0_i32 = arith.constant 0 : i32
    %c0_i32_0 = arith.constant 0 : i32
    %c0_i32_1 = arith.constant 0 : i32
    return %arg0, %c0_i32, %c0_i32_0 : i32, i32, i32
  }
  func.func @transform_1(%arg0: i32) -> (i32, i32, i32) {
    %c0_i32 = arith.constant 0 : i32
    %c0_i32_0 = arith.constant 0 : i32
    %c0_i32_1 = arith.constant 0 : i32
    return %arg0, %c0_i32, %c0_i32_0 : i32, i32, i32
  }
  func.func @transform_2(%arg0: i32) -> (i32, i32, i32) {
    %c0_i32 = arith.constant 0 : i32
    %c0_i32_0 = arith.constant 0 : i32
    %c0_i32_1 = arith.constant 0 : i32
    %c0_i32_2 = arith.constant 0 : i32
    return %c0_i32, %c0_i32_0, %c0_i32_1 : i32, i32, i32
  }
  func.func @transform_3(%arg0: i32) -> (i32, i32) {
    %c0_i32 = arith.constant 0 : i32
    %c0_i32_0 = arith.constant 0 : i32
    %c0_i32_1 = arith.constant 0 : i32
    return %c0_i32, %c0_i32_0 : i32, i32
  }
  func.func @transform_4(%arg0: i32) -> (i32, i32, i32) {
    %c0_i32 = arith.constant 0 : i32
    %c0_i32_0 = arith.constant 0 : i32
    %c0_i32_1 = arith.constant 0 : i32
    return %arg0, %c0_i32, %c0_i32_0 : i32, i32, i32
  }
}

module attributes {stable_mosaic.version = 11 : i64} {
  func.func @_decode_block_kernel(%arg0: i32, %arg1: memref<1x8x32xf32, #tpu.memory_space<vmem>>, %arg2: memref<1x8x32xf32, #tpu.memory_space<vmem>>, %arg3: memref<10x32x32xf32, #tpu.memory_space<vmem>>, %arg4: memref<16x32xf32, #tpu.memory_space<vmem>>, %arg5: memref<1x8x32xf32, #tpu.memory_space<vmem>>) attributes {dimension_semantics = [#tpu.dimension_semantics<parallel>], iteration_bounds = array<i64: 2>, scalar_prefetch = 0 : i64, scratch_operands = 0 : i64, tpu.core_type = #tpu.core_type<tc>, window_params = [{transform_indices = @transform_0, window_bounds = array<i64: 1, 8, 32>}, {transform_indices = @transform_1, window_bounds = array<i64: 1, 8, 32>}, {pipeline_mode = #tpu.pipeline_mode<synchronous>, transform_indices = @transform_2, window_bounds = array<i64: 10, 32, 32>}, {pipeline_mode = #tpu.pipeline_mode<synchronous>, transform_indices = @transform_3, window_bounds = array<i64: 16, 32>}, {transform_indices = @transform_4, window_bounds = array<i64: 1, 8, 32>}]} {
    %c0 = arith.constant 0 : index
    %c0_0 = arith.constant 0 : index
    %c0_1 = arith.constant 0 : index
    %0 = vector.load %arg1[%c0, %c0_0, %c0_1] : memref<1x8x32xf32, #tpu.memory_space<vmem>>, vector<1x8x32xf32>
    %1 = vector.shape_cast %0 : vector<1x8x32xf32> to vector<8x32xf32>
    %c0_2 = arith.constant 0 : index
    %c0_3 = arith.constant 0 : index
    %c0_4 = arith.constant 0 : index
    %2 = vector.load %arg2[%c0_2, %c0_3, %c0_4] : memref<1x8x32xf32, #tpu.memory_space<vmem>>, vector<1x8x32xf32>
    %3 = vector.shape_cast %2 : vector<1x8x32xf32> to vector<8x32xf32>
    %c0_5 = arith.constant 0 : index
    %c0_6 = arith.constant 0 : index
    %4 = vector.load %arg4[%c0_5, %c0_6] : memref<16x32xf32, #tpu.memory_space<vmem>>, vector<16x32xf32>
    %5 = tpu.iota {dimensions = array<i32: 1>} : vector<1x8x8xi32>
    %6 = tpu.iota {dimensions = array<i32: 2>} : vector<1x8x8xi32>
    %7 = arith.cmpi sle, %6, %5 : vector<1x8x8xi32>
    %c0_7 = arith.constant 0 : index
    %c0_8 = arith.constant 0 : index
    %c0_9 = arith.constant 0 : index
    %8 = vector.load %arg3[%c0_7, %c0_8, %c0_9] : memref<10x32x32xf32, #tpu.memory_space<vmem>>, vector<1x32x32xf32>
    %9 = vector.shape_cast %8 : vector<1x32x32xf32> to vector<32x32xf32>
    %cst = arith.constant dense<0.000000e+00> : vector<8x32xf32>
    %10 = tpu.matmul %1, %9, %cst {dimension_numbers = #tpu.dot_dimension_numbers<[1], [0], [0], [1], [0, 0, 1, 1], [], []>} : vector<8x32xf32>, vector<32x32xf32>, vector<8x32xf32> -> vector<8x32xf32>
    %11 = vector.extract_strided_slice %4 {offsets = [0, 0], sizes = [1, 32], strides = [1, 1]} : vector<16x32xf32> to vector<1x32xf32>
    %12 = vector.broadcast %11 : vector<1x32xf32> to vector<8x32xf32>
    %13 = arith.addf %10, %12 : vector<8x32xf32>
    %c1 = arith.constant 1 : index
    %c0_10 = arith.constant 0 : index
    %c0_11 = arith.constant 0 : index
    %14 = vector.load %arg3[%c1, %c0_10, %c0_11] : memref<10x32x32xf32, #tpu.memory_space<vmem>>, vector<1x32x32xf32>
    %15 = vector.shape_cast %14 : vector<1x32x32xf32> to vector<32x32xf32>
    %cst_12 = arith.constant dense<0.000000e+00> : vector<8x32xf32>
    %16 = tpu.matmul %1, %15, %cst_12 {dimension_numbers = #tpu.dot_dimension_numbers<[1], [0], [0], [1], [0, 0, 1, 1], [], []>} : vector<8x32xf32>, vector<32x32xf32>, vector<8x32xf32> -> vector<8x32xf32>
    %17 = vector.extract_strided_slice %4 {offsets = [1, 0], sizes = [1, 32], strides = [1, 1]} : vector<16x32xf32> to vector<1x32xf32>
    %18 = vector.broadcast %17 : vector<1x32xf32> to vector<8x32xf32>
    %19 = arith.addf %16, %18 : vector<8x32xf32>
    %cst_13 = arith.constant 0.353553385 : f32
    %20 = vector.broadcast %cst_13 : f32 to vector<8x32xf32>
    %21 = arith.mulf %19, %20 : vector<8x32xf32>
    %c2 = arith.constant 2 : index
    %c0_14 = arith.constant 0 : index
    %c0_15 = arith.constant 0 : index
    %22 = vector.load %arg3[%c2, %c0_14, %c0_15] : memref<10x32x32xf32, #tpu.memory_space<vmem>>, vector<1x32x32xf32>
    %23 = vector.shape_cast %22 : vector<1x32x32xf32> to vector<32x32xf32>
    %cst_16 = arith.constant dense<0.000000e+00> : vector<8x32xf32>
    %24 = tpu.matmul %1, %23, %cst_16 {dimension_numbers = #tpu.dot_dimension_numbers<[1], [0], [0], [1], [0, 0, 1, 1], [], []>} : vector<8x32xf32>, vector<32x32xf32>, vector<8x32xf32> -> vector<8x32xf32>
    %25 = vector.extract_strided_slice %4 {offsets = [2, 0], sizes = [1, 32], strides = [1, 1]} : vector<16x32xf32> to vector<1x32xf32>
    %26 = vector.broadcast %25 : vector<1x32xf32> to vector<8x32xf32>
    %27 = arith.addf %24, %26 : vector<8x32xf32>
    %28 = vector.shape_cast %21 : vector<8x32xf32> to vector<1x8x32xf32>
    %29 = vector.extract_strided_slice %28 {offsets = [0, 0, 0], sizes = [1, 8, 8], strides = [1, 1, 1]} : vector<1x8x32xf32> to vector<1x8x8xf32>
    %30 = vector.extract_strided_slice %28 {offsets = [0, 0, 8], sizes = [1, 8, 8], strides = [1, 1, 1]} : vector<1x8x32xf32> to vector<1x8x8xf32>
    %31 = vector.extract_strided_slice %28 {offsets = [0, 0, 16], sizes = [1, 8, 8], strides = [1, 1, 1]} : vector<1x8x32xf32> to vector<1x8x8xf32>
    %32 = vector.extract_strided_slice %28 {offsets = [0, 0, 24], sizes = [1, 8, 8], strides = [1, 1, 1]} : vector<1x8x32xf32> to vector<1x8x8xf32>
    %33 = tpu.concatenate %29, %30, %31, %32 in 0 : vector<1x8x8xf32>, vector<1x8x8xf32>, vector<1x8x8xf32>, vector<1x8x8xf32> -> vector<4x8x8xf32>
    %34 = vector.shape_cast %13 : vector<8x32xf32> to vector<1x8x32xf32>
    %35 = vector.extract_strided_slice %34 {offsets = [0, 0, 0], sizes = [1, 8, 8], strides = [1, 1, 1]} : vector<1x8x32xf32> to vector<1x8x8xf32>
    %36 = vector.extract_strided_slice %34 {offsets = [0, 0, 8], sizes = [1, 8, 8], strides = [1, 1, 1]} : vector<1x8x32xf32> to vector<1x8x8xf32>
    %37 = vector.extract_strided_slice %34 {offsets = [0, 0, 16], sizes = [1, 8, 8], strides = [1, 1, 1]} : vector<1x8x32xf32> to vector<1x8x8xf32>
    %38 = vector.extract_strided_slice %34 {offsets = [0, 0, 24], sizes = [1, 8, 8], strides = [1, 1, 1]} : vector<1x8x32xf32> to vector<1x8x8xf32>
    %39 = tpu.concatenate %35, %36, %37, %38 in 0 : vector<1x8x8xf32>, vector<1x8x8xf32>, vector<1x8x8xf32>, vector<1x8x8xf32> -> vector<4x8x8xf32>
    %40 = vector.shape_cast %27 : vector<8x32xf32> to vector<1x8x32xf32>
    %41 = vector.extract_strided_slice %40 {offsets = [0, 0, 0], sizes = [1, 8, 8], strides = [1, 1, 1]} : vector<1x8x32xf32> to vector<1x8x8xf32>
    %42 = vector.extract_strided_slice %40 {offsets = [0, 0, 8], sizes = [1, 8, 8], strides = [1, 1, 1]} : vector<1x8x32xf32> to vector<1x8x8xf32>
    %43 = vector.extract_strided_slice %40 {offsets = [0, 0, 16], sizes = [1, 8, 8], strides = [1, 1, 1]} : vector<1x8x32xf32> to vector<1x8x8xf32>
    %44 = vector.extract_strided_slice %40 {offsets = [0, 0, 24], sizes = [1, 8, 8], strides = [1, 1, 1]} : vector<1x8x32xf32> to vector<1x8x8xf32>
    %45 = tpu.concatenate %41, %42, %43, %44 in 0 : vector<1x8x8xf32>, vector<1x8x8xf32>, vector<1x8x8xf32>, vector<1x8x8xf32> -> vector<4x8x8xf32>
    "tpu.trace_start"() <{level = 10 : i32, message = "bqc,bkc->bqk"}> : () -> ()
    %cst_17 = arith.constant dense<0.000000e+00> : vector<4x8x8xf32>
    %46 = tpu.matmul %33, %39, %cst_17 {dimension_numbers = #tpu.dot_dimension_numbers<[2], [2], [1], [1], [0, 0, 0, 1, 1, 1], [0], [0]>} : vector<4x8x8xf32>, vector<4x8x8xf32>, vector<4x8x8xf32> -> vector<4x8x8xf32>
    %cst_18 = arith.constant -1.000000e+30 : f32
    "tpu.trace_stop"() : () -> ()
    %47 = vector.shape_cast %7 : vector<1x8x8xi1> to vector<1x8x8xi1>
    %48 = vector.broadcast %47 : vector<1x8x8xi1> to vector<4x8x8xi1>
    %49 = vector.broadcast %cst_18 : f32 to vector<4x8x8xf32>
    %50 = arith.select %48, %46, %49 : vector<4x8x8xi1>, vector<4x8x8xf32>
    %cst_19 = arith.constant dense<0xFF800000> : vector<4x8xf32>
    %51 = vector.multi_reduction <maximumf>, %50, %cst_19 [2] : vector<4x8x8xf32> to vector<4x8xf32>
    %52 = vector.shape_cast %51 : vector<4x8xf32> to vector<4x8x1xf32>
    %53 = vector.broadcast %52 : vector<4x8x1xf32> to vector<4x8x8xf32>
    %54 = arith.subf %50, %53 : vector<4x8x8xf32>
    %55 = math.exp %54 : vector<4x8x8xf32>
    %cst_20 = arith.constant dense<0.000000e+00> : vector<4x8xf32>
    %56 = vector.multi_reduction <add>, %55, %cst_20 [2] : vector<4x8x8xf32> to vector<4x8xf32>
    %57 = vector.shape_cast %56 : vector<4x8xf32> to vector<4x8x1xf32>
    %58 = tpu.reciprocal %57 : vector<4x8x1xf32> -> vector<4x8x1xf32>
    %59 = vector.broadcast %58 : vector<4x8x1xf32> to vector<4x8x8xf32>
    %60 = arith.mulf %55, %59 : vector<4x8x8xf32>
    "tpu.trace_start"() <{level = 10 : i32, message = "bqk,bkc->bqc"}> : () -> ()
    %cst_21 = arith.constant dense<0.000000e+00> : vector<4x8x8xf32>
    %61 = tpu.matmul %60, %45, %cst_21 {dimension_numbers = #tpu.dot_dimension_numbers<[2], [1], [1], [2], [0, 0, 0, 1, 1, 2], [0], [0]>} : vector<4x8x8xf32>, vector<4x8x8xf32>, vector<4x8x8xf32> -> vector<4x8x8xf32>
    "tpu.trace_stop"() : () -> ()
    %62 = vector.extract_strided_slice %61 {offsets = [0, 0, 0], sizes = [1, 8, 8], strides = [1, 1, 1]} : vector<4x8x8xf32> to vector<1x8x8xf32>
    %63 = vector.shape_cast %62 : vector<1x8x8xf32> to vector<8x8xf32>
    %64 = vector.extract_strided_slice %61 {offsets = [1, 0, 0], sizes = [1, 8, 8], strides = [1, 1, 1]} : vector<4x8x8xf32> to vector<1x8x8xf32>
    %65 = vector.shape_cast %64 : vector<1x8x8xf32> to vector<8x8xf32>
    %66 = vector.extract_strided_slice %61 {offsets = [2, 0, 0], sizes = [1, 8, 8], strides = [1, 1, 1]} : vector<4x8x8xf32> to vector<1x8x8xf32>
    %67 = vector.shape_cast %66 : vector<1x8x8xf32> to vector<8x8xf32>
    %68 = vector.extract_strided_slice %61 {offsets = [3, 0, 0], sizes = [1, 8, 8], strides = [1, 1, 1]} : vector<4x8x8xf32> to vector<1x8x8xf32>
    %69 = vector.shape_cast %68 : vector<1x8x8xf32> to vector<8x8xf32>
    %70 = tpu.concatenate %63, %65, %67, %69 in 1 : vector<8x8xf32>, vector<8x8xf32>, vector<8x8xf32>, vector<8x8xf32> -> vector<8x32xf32>
    %c3 = arith.constant 3 : index
    %c0_22 = arith.constant 0 : index
    %c0_23 = arith.constant 0 : index
    %71 = vector.load %arg3[%c3, %c0_22, %c0_23] : memref<10x32x32xf32, #tpu.memory_space<vmem>>, vector<1x32x32xf32>
    %72 = vector.shape_cast %71 : vector<1x32x32xf32> to vector<32x32xf32>
    %cst_24 = arith.constant dense<0.000000e+00> : vector<8x32xf32>
    %73 = tpu.matmul %70, %72, %cst_24 {dimension_numbers = #tpu.dot_dimension_numbers<[1], [0], [0], [1], [0, 0, 1, 1], [], []>} : vector<8x32xf32>, vector<32x32xf32>, vector<8x32xf32> -> vector<8x32xf32>
    %74 = vector.extract_strided_slice %4 {offsets = [3, 0], sizes = [1, 32], strides = [1, 1]} : vector<16x32xf32> to vector<1x32xf32>
    %75 = vector.broadcast %74 : vector<1x32xf32> to vector<8x32xf32>
    %76 = arith.addf %73, %75 : vector<8x32xf32>
    %77 = arith.addf %1, %76 : vector<8x32xf32>
    %78 = vector.extract_strided_slice %4 {offsets = [4, 0], sizes = [1, 32], strides = [1, 1]} : vector<16x32xf32> to vector<1x32xf32>
    %79 = vector.extract_strided_slice %4 {offsets = [5, 0], sizes = [1, 32], strides = [1, 1]} : vector<16x32xf32> to vector<1x32xf32>
    %cst_25 = arith.constant dense<0.000000e+00> : vector<8xf32>
    %80 = vector.multi_reduction <add>, %77, %cst_25 [1] : vector<8x32xf32> to vector<8xf32>
    %81 = vector.shape_cast %80 : vector<8xf32> to vector<8x1xf32>
    %cst_26 = arith.constant 3.200000e+01 : f32
    %82 = vector.broadcast %cst_26 : f32 to vector<8x1xf32>
    %83 = arith.divf %81, %82 : vector<8x1xf32>
    %84 = vector.broadcast %83 : vector<8x1xf32> to vector<8x32xf32>
    %85 = arith.subf %77, %84 : vector<8x32xf32>
    %86 = arith.mulf %85, %85 : vector<8x32xf32>
    %cst_27 = arith.constant dense<0.000000e+00> : vector<8xf32>
    %87 = vector.multi_reduction <add>, %86, %cst_27 [1] : vector<8x32xf32> to vector<8xf32>
    %88 = vector.shape_cast %87 : vector<8xf32> to vector<8x1xf32>
    %cst_28 = arith.constant 3.200000e+01 : f32
    %89 = vector.broadcast %cst_28 : f32 to vector<8x1xf32>
    %90 = arith.divf %88, %89 : vector<8x1xf32>
    %91 = vector.broadcast %83 : vector<8x1xf32> to vector<8x32xf32>
    %92 = arith.subf %77, %91 : vector<8x32xf32>
    %cst_29 = arith.constant 9.99999974E-6 : f32
    %93 = vector.broadcast %cst_29 : f32 to vector<8x1xf32>
    %94 = arith.addf %90, %93 : vector<8x1xf32>
    %95 = math.rsqrt %94 : vector<8x1xf32>
    %96 = vector.broadcast %95 : vector<8x1xf32> to vector<8x32xf32>
    %97 = arith.mulf %92, %96 : vector<8x32xf32>
    %98 = vector.broadcast %78 : vector<1x32xf32> to vector<8x32xf32>
    %99 = arith.mulf %97, %98 : vector<8x32xf32>
    %100 = vector.broadcast %79 : vector<1x32xf32> to vector<8x32xf32>
    %101 = arith.addf %99, %100 : vector<8x32xf32>
    %c4 = arith.constant 4 : index
    %c0_30 = arith.constant 0 : index
    %c0_31 = arith.constant 0 : index
    %102 = vector.load %arg3[%c4, %c0_30, %c0_31] : memref<10x32x32xf32, #tpu.memory_space<vmem>>, vector<1x32x32xf32>
    %103 = vector.shape_cast %102 : vector<1x32x32xf32> to vector<32x32xf32>
    %cst_32 = arith.constant dense<0.000000e+00> : vector<8x32xf32>
    %104 = tpu.matmul %101, %103, %cst_32 {dimension_numbers = #tpu.dot_dimension_numbers<[1], [0], [0], [1], [0, 0, 1, 1], [], []>} : vector<8x32xf32>, vector<32x32xf32>, vector<8x32xf32> -> vector<8x32xf32>
    %105 = vector.extract_strided_slice %4 {offsets = [6, 0], sizes = [1, 32], strides = [1, 1]} : vector<16x32xf32> to vector<1x32xf32>
    %106 = vector.broadcast %105 : vector<1x32xf32> to vector<8x32xf32>
    %107 = arith.addf %104, %106 : vector<8x32xf32>
    %c5 = arith.constant 5 : index
    %c0_33 = arith.constant 0 : index
    %c0_34 = arith.constant 0 : index
    %108 = vector.load %arg3[%c5, %c0_33, %c0_34] : memref<10x32x32xf32, #tpu.memory_space<vmem>>, vector<1x32x32xf32>
    %109 = vector.shape_cast %108 : vector<1x32x32xf32> to vector<32x32xf32>
    %cst_35 = arith.constant dense<0.000000e+00> : vector<8x32xf32>
    %110 = tpu.matmul %3, %109, %cst_35 {dimension_numbers = #tpu.dot_dimension_numbers<[1], [0], [0], [1], [0, 0, 1, 1], [], []>} : vector<8x32xf32>, vector<32x32xf32>, vector<8x32xf32> -> vector<8x32xf32>
    %111 = vector.extract_strided_slice %4 {offsets = [7, 0], sizes = [1, 32], strides = [1, 1]} : vector<16x32xf32> to vector<1x32xf32>
    %112 = vector.broadcast %111 : vector<1x32xf32> to vector<8x32xf32>
    %113 = arith.addf %110, %112 : vector<8x32xf32>
    %cst_36 = arith.constant 0.353553385 : f32
    %114 = vector.broadcast %cst_36 : f32 to vector<8x32xf32>
    %115 = arith.mulf %113, %114 : vector<8x32xf32>
    %c6 = arith.constant 6 : index
    %c0_37 = arith.constant 0 : index
    %c0_38 = arith.constant 0 : index
    %116 = vector.load %arg3[%c6, %c0_37, %c0_38] : memref<10x32x32xf32, #tpu.memory_space<vmem>>, vector<1x32x32xf32>
    %117 = vector.shape_cast %116 : vector<1x32x32xf32> to vector<32x32xf32>
    %cst_39 = arith.constant dense<0.000000e+00> : vector<8x32xf32>
    %118 = tpu.matmul %101, %117, %cst_39 {dimension_numbers = #tpu.dot_dimension_numbers<[1], [0], [0], [1], [0, 0, 1, 1], [], []>} : vector<8x32xf32>, vector<32x32xf32>, vector<8x32xf32> -> vector<8x32xf32>
    %119 = vector.extract_strided_slice %4 {offsets = [8, 0], sizes = [1, 32], strides = [1, 1]} : vector<16x32xf32> to vector<1x32xf32>
    %120 = vector.broadcast %119 : vector<1x32xf32> to vector<8x32xf32>
    %121 = arith.addf %118, %120 : vector<8x32xf32>
    %122 = vector.shape_cast %115 : vector<8x32xf32> to vector<1x8x32xf32>
    %123 = vector.extract_strided_slice %122 {offsets = [0, 0, 0], sizes = [1, 8, 8], strides = [1, 1, 1]} : vector<1x8x32xf32> to vector<1x8x8xf32>
    %124 = vector.extract_strided_slice %122 {offsets = [0, 0, 8], sizes = [1, 8, 8], strides = [1, 1, 1]} : vector<1x8x32xf32> to vector<1x8x8xf32>
    %125 = vector.extract_strided_slice %122 {offsets = [0, 0, 16], sizes = [1, 8, 8], strides = [1, 1, 1]} : vector<1x8x32xf32> to vector<1x8x8xf32>
    %126 = vector.extract_strided_slice %122 {offsets = [0, 0, 24], sizes = [1, 8, 8], strides = [1, 1, 1]} : vector<1x8x32xf32> to vector<1x8x8xf32>
    %127 = tpu.concatenate %123, %124, %125, %126 in 0 : vector<1x8x8xf32>, vector<1x8x8xf32>, vector<1x8x8xf32>, vector<1x8x8xf32> -> vector<4x8x8xf32>
    %128 = vector.shape_cast %107 : vector<8x32xf32> to vector<1x8x32xf32>
    %129 = vector.extract_strided_slice %128 {offsets = [0, 0, 0], sizes = [1, 8, 8], strides = [1, 1, 1]} : vector<1x8x32xf32> to vector<1x8x8xf32>
    %130 = vector.extract_strided_slice %128 {offsets = [0, 0, 8], sizes = [1, 8, 8], strides = [1, 1, 1]} : vector<1x8x32xf32> to vector<1x8x8xf32>
    %131 = vector.extract_strided_slice %128 {offsets = [0, 0, 16], sizes = [1, 8, 8], strides = [1, 1, 1]} : vector<1x8x32xf32> to vector<1x8x8xf32>
    %132 = vector.extract_strided_slice %128 {offsets = [0, 0, 24], sizes = [1, 8, 8], strides = [1, 1, 1]} : vector<1x8x32xf32> to vector<1x8x8xf32>
    %133 = tpu.concatenate %129, %130, %131, %132 in 0 : vector<1x8x8xf32>, vector<1x8x8xf32>, vector<1x8x8xf32>, vector<1x8x8xf32> -> vector<4x8x8xf32>
    %134 = vector.shape_cast %121 : vector<8x32xf32> to vector<1x8x32xf32>
    %135 = vector.extract_strided_slice %134 {offsets = [0, 0, 0], sizes = [1, 8, 8], strides = [1, 1, 1]} : vector<1x8x32xf32> to vector<1x8x8xf32>
    %136 = vector.extract_strided_slice %134 {offsets = [0, 0, 8], sizes = [1, 8, 8], strides = [1, 1, 1]} : vector<1x8x32xf32> to vector<1x8x8xf32>
    %137 = vector.extract_strided_slice %134 {offsets = [0, 0, 16], sizes = [1, 8, 8], strides = [1, 1, 1]} : vector<1x8x32xf32> to vector<1x8x8xf32>
    %138 = vector.extract_strided_slice %134 {offsets = [0, 0, 24], sizes = [1, 8, 8], strides = [1, 1, 1]} : vector<1x8x32xf32> to vector<1x8x8xf32>
    %139 = tpu.concatenate %135, %136, %137, %138 in 0 : vector<1x8x8xf32>, vector<1x8x8xf32>, vector<1x8x8xf32>, vector<1x8x8xf32> -> vector<4x8x8xf32>
    "tpu.trace_start"() <{level = 10 : i32, message = "bqc,bkc->bqk"}> : () -> ()
    %cst_40 = arith.constant dense<0.000000e+00> : vector<4x8x8xf32>
    %140 = tpu.matmul %127, %133, %cst_40 {dimension_numbers = #tpu.dot_dimension_numbers<[2], [2], [1], [1], [0, 0, 0, 1, 1, 1], [0], [0]>} : vector<4x8x8xf32>, vector<4x8x8xf32>, vector<4x8x8xf32> -> vector<4x8x8xf32>
    %cst_41 = arith.constant -1.000000e+30 : f32
    "tpu.trace_stop"() : () -> ()
    %141 = vector.shape_cast %7 : vector<1x8x8xi1> to vector<1x8x8xi1>
    %142 = vector.broadcast %141 : vector<1x8x8xi1> to vector<4x8x8xi1>
    %143 = vector.broadcast %cst_41 : f32 to vector<4x8x8xf32>
    %144 = arith.select %142, %140, %143 : vector<4x8x8xi1>, vector<4x8x8xf32>
    %cst_42 = arith.constant dense<0xFF800000> : vector<4x8xf32>
    %145 = vector.multi_reduction <maximumf>, %144, %cst_42 [2] : vector<4x8x8xf32> to vector<4x8xf32>
    %146 = vector.shape_cast %145 : vector<4x8xf32> to vector<4x8x1xf32>
    %147 = vector.broadcast %146 : vector<4x8x1xf32> to vector<4x8x8xf32>
    %148 = arith.subf %144, %147 : vector<4x8x8xf32>
    %149 = math.exp %148 : vector<4x8x8xf32>
    %cst_43 = arith.constant dense<0.000000e+00> : vector<4x8xf32>
    %150 = vector.multi_reduction <add>, %149, %cst_43 [2] : vector<4x8x8xf32> to vector<4x8xf32>
    %151 = vector.shape_cast %150 : vector<4x8xf32> to vector<4x8x1xf32>
    %152 = tpu.reciprocal %151 : vector<4x8x1xf32> -> vector<4x8x1xf32>
    %153 = vector.broadcast %152 : vector<4x8x1xf32> to vector<4x8x8xf32>
    %154 = arith.mulf %149, %153 : vector<4x8x8xf32>
    "tpu.trace_start"() <{level = 10 : i32, message = "bqk,bkc->bqc"}> : () -> ()
    %cst_44 = arith.constant dense<0.000000e+00> : vector<4x8x8xf32>
    %155 = tpu.matmul %154, %139, %cst_44 {dimension_numbers = #tpu.dot_dimension_numbers<[2], [1], [1], [2], [0, 0, 0, 1, 1, 2], [0], [0]>} : vector<4x8x8xf32>, vector<4x8x8xf32>, vector<4x8x8xf32> -> vector<4x8x8xf32>
    "tpu.trace_stop"() : () -> ()
    %156 = vector.extract_strided_slice %155 {offsets = [0, 0, 0], sizes = [1, 8, 8], strides = [1, 1, 1]} : vector<4x8x8xf32> to vector<1x8x8xf32>
    %157 = vector.shape_cast %156 : vector<1x8x8xf32> to vector<8x8xf32>
    %158 = vector.extract_strided_slice %155 {offsets = [1, 0, 0], sizes = [1, 8, 8], strides = [1, 1, 1]} : vector<4x8x8xf32> to vector<1x8x8xf32>
    %159 = vector.shape_cast %158 : vector<1x8x8xf32> to vector<8x8xf32>
    %160 = vector.extract_strided_slice %155 {offsets = [2, 0, 0], sizes = [1, 8, 8], strides = [1, 1, 1]} : vector<4x8x8xf32> to vector<1x8x8xf32>
    %161 = vector.shape_cast %160 : vector<1x8x8xf32> to vector<8x8xf32>
    %162 = vector.extract_strided_slice %155 {offsets = [3, 0, 0], sizes = [1, 8, 8], strides = [1, 1, 1]} : vector<4x8x8xf32> to vector<1x8x8xf32>
    %163 = vector.shape_cast %162 : vector<1x8x8xf32> to vector<8x8xf32>
    %164 = tpu.concatenate %157, %159, %161, %163 in 1 : vector<8x8xf32>, vector<8x8xf32>, vector<8x8xf32>, vector<8x8xf32> -> vector<8x32xf32>
    %c7 = arith.constant 7 : index
    %c0_45 = arith.constant 0 : index
    %c0_46 = arith.constant 0 : index
    %165 = vector.load %arg3[%c7, %c0_45, %c0_46] : memref<10x32x32xf32, #tpu.memory_space<vmem>>, vector<1x32x32xf32>
    %166 = vector.shape_cast %165 : vector<1x32x32xf32> to vector<32x32xf32>
    %cst_47 = arith.constant dense<0.000000e+00> : vector<8x32xf32>
    %167 = tpu.matmul %164, %166, %cst_47 {dimension_numbers = #tpu.dot_dimension_numbers<[1], [0], [0], [1], [0, 0, 1, 1], [], []>} : vector<8x32xf32>, vector<32x32xf32>, vector<8x32xf32> -> vector<8x32xf32>
    %168 = vector.extract_strided_slice %4 {offsets = [9, 0], sizes = [1, 32], strides = [1, 1]} : vector<16x32xf32> to vector<1x32xf32>
    %169 = vector.broadcast %168 : vector<1x32xf32> to vector<8x32xf32>
    %170 = arith.addf %167, %169 : vector<8x32xf32>
    %171 = arith.addf %3, %170 : vector<8x32xf32>
    %172 = vector.extract_strided_slice %4 {offsets = [10, 0], sizes = [1, 32], strides = [1, 1]} : vector<16x32xf32> to vector<1x32xf32>
    %173 = vector.extract_strided_slice %4 {offsets = [11, 0], sizes = [1, 32], strides = [1, 1]} : vector<16x32xf32> to vector<1x32xf32>
    %cst_48 = arith.constant dense<0.000000e+00> : vector<8xf32>
    %174 = vector.multi_reduction <add>, %171, %cst_48 [1] : vector<8x32xf32> to vector<8xf32>
    %175 = vector.shape_cast %174 : vector<8xf32> to vector<8x1xf32>
    %cst_49 = arith.constant 3.200000e+01 : f32
    %176 = vector.broadcast %cst_49 : f32 to vector<8x1xf32>
    %177 = arith.divf %175, %176 : vector<8x1xf32>
    %178 = vector.broadcast %177 : vector<8x1xf32> to vector<8x32xf32>
    %179 = arith.subf %171, %178 : vector<8x32xf32>
    %180 = arith.mulf %179, %179 : vector<8x32xf32>
    %cst_50 = arith.constant dense<0.000000e+00> : vector<8xf32>
    %181 = vector.multi_reduction <add>, %180, %cst_50 [1] : vector<8x32xf32> to vector<8xf32>
    %182 = vector.shape_cast %181 : vector<8xf32> to vector<8x1xf32>
    %cst_51 = arith.constant 3.200000e+01 : f32
    %183 = vector.broadcast %cst_51 : f32 to vector<8x1xf32>
    %184 = arith.divf %182, %183 : vector<8x1xf32>
    %185 = vector.broadcast %177 : vector<8x1xf32> to vector<8x32xf32>
    %186 = arith.subf %171, %185 : vector<8x32xf32>
    %cst_52 = arith.constant 9.99999974E-6 : f32
    %187 = vector.broadcast %cst_52 : f32 to vector<8x1xf32>
    %188 = arith.addf %184, %187 : vector<8x1xf32>
    %189 = math.rsqrt %188 : vector<8x1xf32>
    %190 = vector.broadcast %189 : vector<8x1xf32> to vector<8x32xf32>
    %191 = arith.mulf %186, %190 : vector<8x32xf32>
    %192 = vector.broadcast %172 : vector<1x32xf32> to vector<8x32xf32>
    %193 = arith.mulf %191, %192 : vector<8x32xf32>
    %194 = vector.broadcast %173 : vector<1x32xf32> to vector<8x32xf32>
    %195 = arith.addf %193, %194 : vector<8x32xf32>
    %c8 = arith.constant 8 : index
    %c0_53 = arith.constant 0 : index
    %c0_54 = arith.constant 0 : index
    %196 = vector.load %arg3[%c8, %c0_53, %c0_54] : memref<10x32x32xf32, #tpu.memory_space<vmem>>, vector<1x32x32xf32>
    %197 = vector.shape_cast %196 : vector<1x32x32xf32> to vector<32x32xf32>
    %cst_55 = arith.constant dense<0.000000e+00> : vector<8x32xf32>
    %198 = tpu.matmul %195, %197, %cst_55 {dimension_numbers = #tpu.dot_dimension_numbers<[1], [0], [0], [1], [0, 0, 1, 1], [], []>} : vector<8x32xf32>, vector<32x32xf32>, vector<8x32xf32> -> vector<8x32xf32>
    %199 = vector.extract_strided_slice %4 {offsets = [12, 0], sizes = [1, 32], strides = [1, 1]} : vector<16x32xf32> to vector<1x32xf32>
    %200 = vector.broadcast %199 : vector<1x32xf32> to vector<8x32xf32>
    %201 = arith.addf %198, %200 : vector<8x32xf32>
    %cst_56 = arith.constant 5.000000e-01 : f32
    %202 = vector.broadcast %cst_56 : f32 to vector<8x32xf32>
    %203 = arith.mulf %202, %201 : vector<8x32xf32>
    %cst_57 = arith.constant 0.707106769 : f32
    %204 = vector.broadcast %cst_57 : f32 to vector<8x32xf32>
    %205 = arith.mulf %201, %204 : vector<8x32xf32>
    %206 = math.erf %205 : vector<8x32xf32>
    %cst_58 = arith.constant 1.000000e+00 : f32
    %207 = vector.broadcast %cst_58 : f32 to vector<8x32xf32>
    %208 = arith.addf %207, %206 : vector<8x32xf32>
    %209 = arith.mulf %203, %208 : vector<8x32xf32>
    %c9 = arith.constant 9 : index
    %c0_59 = arith.constant 0 : index
    %c0_60 = arith.constant 0 : index
    %210 = vector.load %arg3[%c9, %c0_59, %c0_60] : memref<10x32x32xf32, #tpu.memory_space<vmem>>, vector<1x32x32xf32>
    %211 = vector.shape_cast %210 : vector<1x32x32xf32> to vector<32x32xf32>
    %cst_61 = arith.constant dense<0.000000e+00> : vector<8x32xf32>
    %212 = tpu.matmul %209, %211, %cst_61 {dimension_numbers = #tpu.dot_dimension_numbers<[1], [0], [0], [1], [0, 0, 1, 1], [], []>} : vector<8x32xf32>, vector<32x32xf32>, vector<8x32xf32> -> vector<8x32xf32>
    %213 = vector.extract_strided_slice %4 {offsets = [13, 0], sizes = [1, 32], strides = [1, 1]} : vector<16x32xf32> to vector<1x32xf32>
    %214 = vector.broadcast %213 : vector<1x32xf32> to vector<8x32xf32>
    %215 = arith.addf %212, %214 : vector<8x32xf32>
    %216 = arith.addf %195, %215 : vector<8x32xf32>
    %217 = vector.extract_strided_slice %4 {offsets = [14, 0], sizes = [1, 32], strides = [1, 1]} : vector<16x32xf32> to vector<1x32xf32>
    %218 = vector.extract_strided_slice %4 {offsets = [15, 0], sizes = [1, 32], strides = [1, 1]} : vector<16x32xf32> to vector<1x32xf32>
    %cst_62 = arith.constant dense<0.000000e+00> : vector<8xf32>
    %219 = vector.multi_reduction <add>, %216, %cst_62 [1] : vector<8x32xf32> to vector<8xf32>
    %220 = vector.shape_cast %219 : vector<8xf32> to vector<8x1xf32>
    %cst_63 = arith.constant 3.200000e+01 : f32
    %221 = vector.broadcast %cst_63 : f32 to vector<8x1xf32>
    %222 = arith.divf %220, %221 : vector<8x1xf32>
    %223 = vector.broadcast %222 : vector<8x1xf32> to vector<8x32xf32>
    %224 = arith.subf %216, %223 : vector<8x32xf32>
    %225 = arith.mulf %224, %224 : vector<8x32xf32>
    %cst_64 = arith.constant dense<0.000000e+00> : vector<8xf32>
    %226 = vector.multi_reduction <add>, %225, %cst_64 [1] : vector<8x32xf32> to vector<8xf32>
    %227 = vector.shape_cast %226 : vector<8xf32> to vector<8x1xf32>
    %cst_65 = arith.constant 3.200000e+01 : f32
    %228 = vector.broadcast %cst_65 : f32 to vector<8x1xf32>
    %229 = arith.divf %227, %228 : vector<8x1xf32>
    %230 = vector.broadcast %222 : vector<8x1xf32> to vector<8x32xf32>
    %231 = arith.subf %216, %230 : vector<8x32xf32>
    %cst_66 = arith.constant 9.99999974E-6 : f32
    %232 = vector.broadcast %cst_66 : f32 to vector<8x1xf32>
    %233 = arith.addf %229, %232 : vector<8x1xf32>
    %234 = math.rsqrt %233 : vector<8x1xf32>
    %235 = vector.broadcast %234 : vector<8x1xf32> to vector<8x32xf32>
    %236 = arith.mulf %231, %235 : vector<8x32xf32>
    %237 = vector.broadcast %217 : vector<1x32xf32> to vector<8x32xf32>
    %238 = arith.mulf %236, %237 : vector<8x32xf32>
    %239 = vector.broadcast %218 : vector<1x32xf32> to vector<8x32xf32>
    %240 = arith.addf %238, %239 : vector<8x32xf32>
    %241 = vector.shape_cast %240 : vector<8x32xf32> to vector<1x8x32xf32>
    %c0_67 = arith.constant 0 : index
    %c0_68 = arith.constant 0 : index
    %c0_69 = arith.constant 0 : index
    %242 = vector.load %arg5[%c0_67, %c0_68, %c0_69] : memref<1x8x32xf32, #tpu.memory_space<vmem>>, vector<1x8x32xf32>
    tpu.vector_store %arg5[%c0_67, %c0_68, %c0_69], %241 {strides = array<i32>} : memref<1x8x32xf32, #tpu.memory_space<vmem>>, vector<1x8x32xf32>,
    return
  }
  func.func @transform_0(%arg0: i32) -> (i32, i32, i32) {
    %c0_i32 = arith.constant 0 : i32
    %c0_i32_0 = arith.constant 0 : i32
    %c0_i32_1 = arith.constant 0 : i32
    return %arg0, %c0_i32, %c0_i32_0 : i32, i32, i32
  }
  func.func @transform_1(%arg0: i32) -> (i32, i32, i32) {
    %c0_i32 = arith.constant 0 : i32
    %c0_i32_0 = arith.constant 0 : i32
    %c0_i32_1 = arith.constant 0 : i32
    return %arg0, %c0_i32, %c0_i32_0 : i32, i32, i32
  }
  func.func @transform_2(%arg0: i32) -> (i32, i32, i32) {
    %c0_i32 = arith.constant 0 : i32
    %c0_i32_0 = arith.constant 0 : i32
    %c0_i32_1 = arith.constant 0 : i32
    %c0_i32_2 = arith.constant 0 : i32
    return %c0_i32, %c0_i32_0, %c0_i32_1 : i32, i32, i32
  }
  func.func @transform_3(%arg0: i32) -> (i32, i32) {
    %c0_i32 = arith.constant 0 : i32
    %c0_i32_0 = arith.constant 0 : i32
    %c0_i32_1 = arith.constant 0 : i32
    return %c0_i32, %c0_i32_0 : i32, i32
  }
  func.func @transform_4(%arg0: i32) -> (i32, i32, i32) {
    %c0_i32 = arith.constant 0 : i32
    %c0_i32_0 = arith.constant 0 : i32
    %c0_i32_1 = arith.constant 0 : i32
    return %arg0, %c0_i32, %c0_i32_0 : i32, i32, i32
  }
}

</mosaic_0001>

<llo_original>
// kernel: tpu_custom_call.1
$region0: #{tpu_custom_call.1}
  #allocation0 [shape = 'u32[]', space=smem, size = 0x4, offset = 0x4, fixed_abs, tag = 'smem constant byte address 0x4 - core index']
  #allocation1 [shape = 'u32[72,128]{1,0:T(1,128)}', space=vmem, size = 0x9000, scoped, tag = 'internal scratch']
  %s0 = inlined_call_operand.hbm [shape: f32[2,8,32], index: 0, kind: input, shape index: {}]
  %s1 = inlined_call_operand.hbm [shape: f32[2,8,32], index: 1, kind: input, shape index: {}]
  %s2 = inlined_call_operand.hbm [shape: f32[10,32,32], index: 2, kind: input, shape index: {}]
  %s3 = inlined_call_operand.hbm [shape: f32[16,32], index: 3, kind: input, shape index: {}]
  %s4 = inlined_call_operand.hbm [shape: f32[2,8,32], index: 4, kind: output, shape index: {}]
  %s5 = sld [smem:[#allocation0]]
  $region65: #{tpu_custom_call.1} parent=0
    _
  %s7 = ssub.s32 1, %s5
  %s8 = scalar_select 0, %s7, %s5
  $region1: #{tpu_custom_call.1} parent=0
    #allocation2 [shape = 'u8[8192]{0}', space=vmem, size = 0x2000, scoped, tag = 'input window, operand 0']
    #allocation3 [shape = 's32[2]{0}', space=sflag, size = 0x8, scoped, tag = 'scoped memory for tpu_custom_call.1']
    #allocation4 [shape = 's32[2]{0}', space=sflag, size = 0x8, scoped, tag = 'scoped memory for tpu_custom_call.1']
    #allocation5 [shape = 'u8[8192]{0}', space=vmem, size = 0x2000, scoped, tag = 'input window, operand 1']
    #allocation6 [shape = 's32[2]{0}', space=sflag, size = 0x8, scoped, tag = 'scoped memory for tpu_custom_call.1']
    #allocation7 [shape = 'u8[163840]{0}', space=vmem, size = 0x28000, scoped, tag = 'input window, operand 2, single buffered']
    #allocation8 [shape = 'u8[8192]{0}', space=vmem, size = 0x2000, scoped, tag = 'input window, operand 3, single buffered']
    #allocation9 [shape = 's32[1]{0}', space=sflag, size = 0x4, scoped, tag = 'scoped memory for tpu_custom_call.1']
    #allocation10 [shape = 'u8[8192]{0}', space=vmem, size = 0x2000, scoped, tag = 'output window, operand 0']
    %9 = vsyncpa [#allocation3], 0
    %s10 = scalar_lea.sflag [#allocation3], 1
    %11 = vsyncpa %s10, 0
    %12 = vsyncpa [#allocation6], 0
    %s13 = scalar_lea.sflag [#allocation6], 1
    %14 = vsyncpa %s13, 0
    %15 = vsyncpa [#allocation9], 0
    %16 = vsyncpa [#allocation4], 0
    %s17 = scalar_lea.sflag [#allocation4], 1
    %18 = vsyncpa %s17, 0
    loop: start=0, step=1, limit=4
    $region2: #{tpu_custom_call.1} parent=1 // loop_pre_header
      _
    $region3: #{tpu_custom_call.1} parent=1 // loop_header
      %s20 = sphi 0, %s24
      %p21 = scmp.ge.s32.totalorder %s20, 4
      %s30 = sphi 0, %s32
      %s33 = sphi 0, %s30
      %s34 = sphi 0, %s33
      %s50 = sphi 0, %s34
      %s56 = sphi 0, %s58
      %s59 = sphi 0, %s56
      %s60 = sphi 0, %s59
      %s76 = sphi 0, %s60
      %s80 = sphi 0, %s80
      %s82 = sphi 0, %s80
      %s83 = sphi 0, %s82
      %s97 = sphi 0, %s83
      %s101 = sphi 0, %s101
      %s103 = sphi 0, %s101
      %s104 = sphi 0, %s103
      %s118 = sphi 0, %s104
      %s124 = sphi 0, %s126
      %s127 = sphi 0, %s124
      %s128 = sphi 0, %s127
      %s144 = sphi 0, %s128
    $region4: #{tpu_custom_call.1} parent=1 // loop_header_branch
      %23 = sbr.rel (%p21) target = $region8
    $region5: #{tpu_custom_call.1} parent=1 // loop_body
      %s25 = ssub.s32 %s20, 1
      %s26 = ssub.s32 %s20, 2
      %s27 = sadd.s32 %s20, 1
      %s28 = ssub.s32 %s20, %s27
      %p29 = scmp.eq.s32.totalorder %s28, 0
      %s31 = sadd.s32 %s30, 1
      %s32 = scalar_select %p29, %s30, %s31
      %p35 = pneg %p29
      %p36 = scmp.eq.s32.totalorder %s20, 1
      %p37 = por %p35, %p36
      %p38 = scmp.ne.s32.totalorder %s30, %s33
      %p39 = scmp.eq.s32.totalorder %s20, 0
      %p40 = por %p38, %p39
      %p41 = scmp.ne.s32.totalorder %s30, %s33
      %p42 = scmp.eq.s32.totalorder %s25, 1
      %p43 = por %p41, %p42
      %p44 = scmp.ne.s32.totalorder %s33, %s34
      %p45 = scmp.eq.s32.totalorder %s25, 0
      %p46 = por %p44, %p45
      %p47 = scmp.ne.s32.totalorder %s33, %s34
      %p48 = scmp.eq.s32.totalorder %s26, 1
      %p49 = por %p47, %p48
      %p51 = scmp.ne.s32.totalorder %s34, %s50
      %p52 = scmp.eq.s32.totalorder %s26, 0
      %p53 = por %p51, %p52
      %s54 = ssub.s32 %s20, %s27
      %p55 = scmp.eq.s32.totalorder %s54, 0
      %s57 = sadd.s32 %s56, 1
      %s58 = scalar_select %p55, %s56, %s57
      %p61 = pneg %p55
      %p62 = scmp.eq.s32.totalorder %s20, 1
      %p63 = por %p61, %p62
      %p64 = scmp.ne.s32.totalorder %s56, %s59
      %p65 = scmp.eq.s32.totalorder %s20, 0
      %p66 = por %p64, %p65
      %p67 = scmp.ne.s32.totalorder %s56, %s59
      %p68 = scmp.eq.s32.totalorder %s25, 1
      %p69 = por %p67, %p68
      %p70 = scmp.ne.s32.totalorder %s59, %s60
      %p71 = scmp.eq.s32.totalorder %s25, 0
      %p72 = por %p70, %p71
      %p73 = scmp.ne.s32.totalorder %s59, %s60
      %p74 = scmp.eq.s32.totalorder %s26, 1
      %p75 = por %p73, %p74
      %p77 = scmp.ne.s32.totalorder %s60, %s76
      %p78 = scmp.eq.s32.totalorder %s26, 0
      %p79 = por %p77, %p78
      %s81 = sadd.s32 %s80, 1
      %p84 = scmp.eq.s32.totalorder %s20, 1
      %p85 = scmp.ne.s32.totalorder %s80, %s82
      %p86 = scmp.eq.s32.totalorder %s20, 0
      %p87 = por %p85, %p86
      %p88 = scmp.ne.s32.totalorder %s80, %s82
      %p89 = scmp.eq.s32.totalorder %s25, 1
      %p90 = por %p88, %p89
      %p91 = scmp.ne.s32.totalorder %s82, %s83
      %p92 = scmp.eq.s32.totalorder %s25, 0
      %p93 = por %p91, %p92
      %p94 = scmp.ne.s32.totalorder %s82, %s83
      %p95 = scmp.eq.s32.totalorder %s26, 1
      %p96 = por %p94, %p95
      %p98 = scmp.ne.s32.totalorder %s83, %s97
      %p99 = scmp.eq.s32.totalorder %s26, 0
      %p100 = por %p98, %p99
      %s102 = sadd.s32 %s101, 1
      %p105 = scmp.eq.s32.totalorder %s20, 1
      %p106 = scmp.ne.s32.totalorder %s101, %s103
      %p107 = scmp.eq.s32.totalorder %s20, 0
      %p108 = por %p106, %p107
      %p109 = scmp.ne.s32.totalorder %s101, %s103
      %p110 = scmp.eq.s32.totalorder %s25, 1
      %p111 = por %p109, %p110
      %p112 = scmp.ne.s32.totalorder %s103, %s104
      %p113 = scmp.eq.s32.totalorder %s25, 0
      %p114 = por %p112, %p113
      %p115 = scmp.ne.s32.totalorder %s103, %s104
      %p116 = scmp.eq.s32.totalorder %s26, 1
      %p117 = por %p115, %p116
      %p119 = scmp.ne.s32.totalorder %s104, %s118
      %p120 = scmp.eq.s32.totalorder %s26, 0
      %p121 = por %p119, %p120
      %s122 = ssub.s32 %s20, %s27
      %p123 = scmp.eq.s32.totalorder %s122, 0
      %s125 = sadd.s32 %s124, 1
      %s126 = scalar_select %p123, %s124, %s125
      %p129 = pneg %p123
      %p130 = scmp.eq.s32.totalorder %s20, 1
      %p131 = por %p129, %p130
      %p132 = scmp.ne.s32.totalorder %s124, %s127
      %p133 = scmp.eq.s32.totalorder %s20, 0
      %p134 = por %p132, %p133
      %p135 = scmp.ne.s32.totalorder %s124, %s127
      %p136 = scmp.eq.s32.totalorder %s25, 1
      %p137 = por %p135, %p136
      %p138 = scmp.ne.s32.totalorder %s127, %s128
      %p139 = scmp.eq.s32.totalorder %s25, 0
      %p140 = por %p138, %p139
      %p141 = scmp.ne.s32.totalorder %s127, %s128
      %p142 = scmp.eq.s32.totalorder %s26, 1
      %p143 = por %p141, %p142
      %p145 = scmp.ne.s32.totalorder %s128, %s144
      %p146 = scmp.eq.s32.totalorder %s26, 0
      %p147 = por %p145, %p146
      %p148 = scmp.le.s32.totalorder 1, %s20
      %p149 = scmp.lt.s32.totalorder %s20, 3
      %p150 = pnand %p148, %p149
      %p151 = pneg %p150
      // Predicated region
      $region9: #{tpu_custom_call.1} parent=5 // pred_check
        _
      $region10: #{tpu_custom_call.1} parent=5 // pred_check_branch
        %153 = sbr.rel (%p150) target = $region12
      $region11: #{tpu_custom_call.1} parent=5 // pred_region
        %s154 = ssub.s32 %s20, 1
        // Predicated region
        $region13: #{tpu_custom_call.1} parent=11 // pred_check
          %p155 = pneg %p93
        $region14: #{tpu_custom_call.1} parent=11 // pred_check_branch
          %157 = sbr.rel (%p155) target = $region16
        $region15: #{tpu_custom_call.1} parent=11 // pred_region
          %159 = vsyncadd [#allocation6], 0
          %s160 = sshll.u32 %s2, 4
          %s161 = int_to_ptr.hbm [resolvable:$true] %s160
          %s162 = sshll.u32 [#allocation7], 4
          %s163 = int_to_ptr.vmem [resolvable:$true] %s162
          %168 = dma.hbm_to_vmem [thread:$0]  %s161, 5120, %s163, [#allocation6], 128, 128, 8
        $region16: #{tpu_custom_call.1} parent=11 // pred_fallthru
          _
        // Predicated region
        $region17: #{tpu_custom_call.1} parent=11 // pred_check
          %p169 = pneg %p114
        $region18: #{tpu_custom_call.1} parent=11 // pred_check_branch
          %171 = sbr.rel (%p169) target = $region20
        $region19: #{tpu_custom_call.1} parent=11 // pred_region
          %173 = vsyncadd [#allocation9], 0
          %s174 = sshll.u32 %s3, 4
          %s175 = int_to_ptr.hbm [resolvable:$true] %s174
          %s176 = sshll.u32 [#allocation8], 4
          %s177 = int_to_ptr.vmem [resolvable:$true] %s176
          %182 = dma.hbm_to_vmem [thread:$0]  %s175, 256, %s177, [#allocation9], 128, 128, 8
        $region20: #{tpu_custom_call.1} parent=11 // pred_fallthru
          _
      $region12: #{tpu_custom_call.1} parent=5 // pred_fallthru
        _
      %p183 = scmp.lt.s32.totalorder %s20, 2
      // Predicated region
      $region21: #{tpu_custom_call.1} parent=5 // pred_check
        %p184 = pneg %p183
      $region22: #{tpu_custom_call.1} parent=5 // pred_check_branch
        %186 = sbr.rel (%p184) target = $region24
      $region23: #{tpu_custom_call.1} parent=5 // pred_region
        // Predicated region
        $region25: #{tpu_custom_call.1} parent=23 // pred_check
          %p187 = pneg %p40
        $region26: #{tpu_custom_call.1} parent=23 // pred_check_branch
          %189 = sbr.rel (%p187) target = $region28
        $region27: #{tpu_custom_call.1} parent=23 // pred_region
          %s190 = sand.u32 %s30, 1
          %s191 = scalar_lea.sflag [#allocation3], %s190
          %s192 = sand.u32 %s30, 1
          %s193 = smul.addr %s192, 8
          %s194 = scalar_lea.vmem [#allocation2], %s193
          %196 = vsyncadd %s191, 0
          %s197 = smul.addr %s20, 8
          %s198 = scalar_lea.hbm %s0, %s197
          %s200 = sshll.u32 %s198, 4
          %s201 = int_to_ptr.hbm [resolvable:$true] %s200
          %s202 = sshll.u32 %s194, 4
          %s203 = int_to_ptr.vmem [resolvable:$true] %s202
          %205 = dma.hbm_to_vmem [thread:$0]  %s201, 128, %s203, %s191
        $region28: #{tpu_custom_call.1} parent=23 // pred_fallthru
          _
        // Predicated region
        $region29: #{tpu_custom_call.1} parent=23 // pred_check
          %p206 = pneg %p66
        $region30: #{tpu_custom_call.1} parent=23 // pred_check_branch
          %208 = sbr.rel (%p206) target = $region32
        $region31: #{tpu_custom_call.1} parent=23 // pred_region
          %s209 = sand.u32 %s20, 1
          %s210 = scalar_lea.sflag [#allocation6], %s209
          %s211 = sand.u32 %s56, 1
          %s212 = smul.addr %s211, 8
          %s213 = scalar_lea.vmem [#allocation5], %s212
          %215 = vsyncadd %s210, 0
          %s216 = smul.addr %s20, 8
          %s217 = scalar_lea.hbm %s1, %s216
          %s219 = sshll.u32 %s217, 4
          %s220 = int_to_ptr.hbm [resolvable:$true] %s219
          %s221 = sshll.u32 %s213, 4
          %s222 = int_to_ptr.vmem [resolvable:$true] %s221
          %224 = dma.hbm_to_vmem [thread:$0]  %s220, 128, %s222, %s210
        $region32: #{tpu_custom_call.1} parent=23 // pred_fallthru
          _
      $region24: #{tpu_custom_call.1} parent=5 // pred_fallthru
        _
      %p225 = scmp.le.s32.totalorder 1, %s20
      %p226 = scmp.lt.s32.totalorder %s20, 3
      %p227 = pnand %p225, %p226
      %p228 = pneg %p227
      // Predicated region
      $region33: #{tpu_custom_call.1} parent=5 // pred_check
        _
      $region34: #{tpu_custom_call.1} parent=5 // pred_check_branch
        %230 = sbr.rel (%p227) target = $region36
      $region35: #{tpu_custom_call.1} parent=5 // pred_region
        %s231 = ssub.s32 %s20, 1
        %s232 = sand.u32 %s33, 1
        %s233 = scalar_lea.sflag [#allocation3], %s232
        %s234 = sand.u32 %s33, 1
        %s235 = smul.addr %s234, 8
        %s236 = scalar_lea.vmem [#allocation2], %s235
        // Predicated region
        $region37: #{tpu_custom_call.1} parent=35 // pred_check
          %p237 = pneg %p46
        $region38: #{tpu_custom_call.1} parent=35 // pred_check_branch
          %239 = sbr.rel (%p237) target = $region40
        $region39: #{tpu_custom_call.1} parent=35 // pred_region
          %241 = dma.done %s233, 128
        $region40: #{tpu_custom_call.1} parent=35 // pred_fallthru
          _
        %s242 = sand.u32 %s25, 1
        %s243 = scalar_lea.sflag [#allocation6], %s242
        %s244 = sand.u32 %s59, 1
        %s245 = smul.addr %s244, 8
        %s246 = scalar_lea.vmem [#allocation5], %s245
        // Predicated region
        $region41: #{tpu_custom_call.1} parent=35 // pred_check
          %p247 = pneg %p72
        $region42: #{tpu_custom_call.1} parent=35 // pred_check_branch
          %249 = sbr.rel (%p247) target = $region44
        $region43: #{tpu_custom_call.1} parent=35 // pred_region
          %251 = dma.done %s243, 128
        $region44: #{tpu_custom_call.1} parent=35 // pred_fallthru
          _
        // Predicated region
        $region45: #{tpu_custom_call.1} parent=35 // pred_check
          %p252 = pneg %p93
        $region46: #{tpu_custom_call.1} parent=35 // pred_check_branch
          %254 = sbr.rel (%p252) target = $region48
        $region47: #{tpu_custom_call.1} parent=35 // pred_region
          %256 = dma.done [#allocation6], 5120
        $region48: #{tpu_custom_call.1} parent=35 // pred_fallthru
          _
        // Predicated region
        $region49: #{tpu_custom_call.1} parent=35 // pred_check
          %p257 = pneg %p114
        $region50: #{tpu_custom_call.1} parent=35 // pred_check_branch
          %259 = sbr.rel (%p257) target = $region52
        $region51: #{tpu_custom_call.1} parent=35 // pred_region
          %261 = dma.done [#allocation9], 256
        $region52: #{tpu_custom_call.1} parent=35 // pred_fallthru
          _
        %s262 = sand.u32 %s33, 1
        %s263 = scalar_lea.sflag [#allocation3], %s262
        %s264 = sand.u32 %s33, 1
        %s265 = smul.addr %s264, 8
        %s266 = scalar_lea.vmem [#allocation2], %s265
        %p267 = pneg %p46
        %p268 = pneg %p43
        %s269 = sand.u32 %s25, 1
        %s270 = scalar_lea.sflag [#allocation6], %s269
        %s271 = sand.u32 %s59, 1
        %s272 = smul.addr %s271, 8
        %s273 = scalar_lea.vmem [#allocation5], %s272
        %p274 = pneg %p72
        %p275 = pneg %p69
        %p276 = pneg %p93
        %p277 = pneg %p90
        %p278 = pneg %p114
        %p279 = pneg %p111
        %p280 = pneg %p140
        %p281 = pneg %p137
        %s282 = sand.u32 %s127, 1
        %s283 = scalar_lea.sflag [#allocation4], %s282
        %s284 = sand.u32 %s127, 1
        %s285 = smul.addr %s284, 8
        %s286 = scalar_lea.vmem [#allocation10], %s285
        %v287 = vld [vmem:[%s236] sm:$0xff]
        %v288 = vld [vmem:[%s246] sm:$0xff]
        %v289 = vld [vmem:[#allocation8] sm:$0xff]
        %v290 = vld [vmem:[#allocation8 + $0x8] sm:$0xff]
        %v291 = vlaneseq
        %v292 = vshrl.u32 %v291, 7
        %v293 = vlaneseq
        %v294 = vand.u32 %v293, 127
        %vm295 = vcmp.le.s32.totalorder %v294, %v292
        %v296 = vld [vmem:[#allocation7] sm:$0xff]
        %v297 = vld [vmem:[#allocation7 + $0x8] sm:$0xff]
        %v298 = vld [vmem:[#allocation7 + $0x10] sm:$0xff]
        %v299 = vld [vmem:[#allocation7 + $0x18] sm:$0xff]
        %v300 = vperm.slane %v289, 0
        %vm301 = vcmask 261120
        %v303 = vsel %vm301, %v287, 0
        %305 = vmatpush.msra.mxu0 0.0
        %306 = vmatpush.msra.mxu0 0.0
        %307 = vmatpush.msra.mxu0 0.0
        %308 = vmatpush.msra.mxu0 0.0
        %309 = vmatpush.msra.mxu0 0.0
        %310 = vmatpush.msra.mxu0 0.0
        %311 = vmatpush.msra.mxu0 0.0
        %312 = vmatpush.msra.mxu0 0.0
        %313 = vmatpush.msra.mxu0 0.0
        %314 = vmatpush.msra.mxu0 0.0
        %315 = vmatpush.msra.mxu0 0.0
        %316 = vmatpush.msra.mxu0 0.0
        %317 = vmatpush.msra.mxu0 %v299
        %318 = vmatpush.msra.mxu0 %v298
        %319 = vmatpush.msra.mxu0 %v297
        %320 = vmatpush.msra.mxu0 %v296
        %321 = vmatmul.f32.gmra.mxu0 %v303
        %v322 = vpop.f32.mrf.mxu0
        %v323 = vadd.f32 %v300, %v322
        %324 = vdwg.mxu0
        %s325 = scalar_lea.vmem [#allocation7], 32
        %v326 = vld [vmem:[%s325] sm:$0xff]
        %v327 = vld [vmem:[%s325 + $0x8] sm:$0xff]
        %v328 = vld [vmem:[%s325 + $0x10] sm:$0xff]
        %v329 = vld [vmem:[%s325 + $0x18] sm:$0xff]
        %v330 = vperm.slane %v289, 1
        %331 = vmatpush.msra.mxu0 0.0
        %332 = vmatpush.msra.mxu0 0.0
        %333 = vmatpush.msra.mxu0 0.0
        %334 = vmatpush.msra.mxu0 0.0
        %335 = vmatpush.msra.mxu0 0.0
        %336 = vmatpush.msra.mxu0 0.0
        %337 = vmatpush.msra.mxu0 0.0
        %338 = vmatpush.msra.mxu0 0.0
        %339 = vmatpush.msra.mxu0 0.0
        %340 = vmatpush.msra.mxu0 0.0
        %341 = vmatpush.msra.mxu0 0.0
        %342 = vmatpush.msra.mxu0 0.0
        %343 = vmatpush.msra.mxu0 %v329
        %344 = vmatpush.msra.mxu0 %v328
        %345 = vmatpush.msra.mxu0 %v327
        %346 = vmatpush.msra.mxu0 %v326
        %347 = vmatmul.f32.gmra.mxu0 %v303
        %v348 = vpop.f32.mrf.mxu0
        %v349 = vadd.f32 %v330, %v348
        %350 = vdwg.mxu0
        %v351 = vmul.f32 %v349, 0.35355338
        %s352 = scalar_lea.vmem [#allocation7], 64
        %v353 = vld [vmem:[%s352] sm:$0xff]
        %v354 = vld [vmem:[%s352 + $0x8] sm:$0xff]
        %v355 = vld [vmem:[%s352 + $0x10] sm:$0xff]
        %v356 = vld [vmem:[%s352 + $0x18] sm:$0xff]
        %v357 = vperm.slane %v289, 2
        %358 = vmatpush.msra.mxu0 0.0
        %359 = vmatpush.msra.mxu0 0.0
        %360 = vmatpush.msra.mxu0 0.0
        %361 = vmatpush.msra.mxu0 0.0
        %362 = vmatpush.msra.mxu0 0.0
        %363 = vmatpush.msra.mxu0 0.0
        %364 = vmatpush.msra.mxu0 0.0
        %365 = vmatpush.msra.mxu0 0.0
        %366 = vmatpush.msra.mxu0 0.0
        %367 = vmatpush.msra.mxu0 0.0
        %368 = vmatpush.msra.mxu0 0.0
        %369 = vmatpush.msra.mxu0 0.0
        %370 = vmatpush.msra.mxu0 %v356
        %371 = vmatpush.msra.mxu0 %v355
        %372 = vmatpush.msra.mxu0 %v354
        %373 = vmatpush.msra.mxu0 %v353
        %374 = vmatmul.f32.gmra.mxu0 %v303
        %v375 = vpop.f32.mrf.mxu0
        %v376 = vadd.f32 %v357, %v375
        %377 = vdwg.mxu0
        %379 = vrot.lane.b32.xlu0 %v351, 120
        %v380 = vpop.permute.xlu0 %379
        %381 = vrot.lane.b32.xlu0 %v351, 112
        %v382 = vpop.permute.xlu0 %381
        %383 = vrot.lane.b32.xlu0 %v351, 104
        %v384 = vpop.permute.xlu0 %383
        %386 = vrot.lane.b32.xlu0 %v323, 120
        %v387 = vpop.permute.xlu0 %386
        %388 = vrot.lane.b32.xlu0 %v323, 112
        %v389 = vpop.permute.xlu0 %388
        %390 = vrot.lane.b32.xlu0 %v323, 104
        %v391 = vpop.permute.xlu0 %390
        %393 = vrot.lane.b32.xlu0 %v376, 120
        %v394 = vpop.permute.xlu0 %393
        %396 = vrot.lane.b32.xlu0 %v376, 112
        %v397 = vpop.permute.xlu0 %396
        %399 = vrot.lane.b32.xlu0 %v376, 104
        %v400 = vpop.permute.xlu0 %399
        %vm402 = vcmask 64512
        %v403 = vsel %vm402, %v351, 0
        %v405 = vsel %vm402, %v323, 0
        %407 = vmatpush.xpose.msra.mxu0 0.0
        %408 = vmatpush.xpose.msra.mxu0 0.0
        %409 = vmatpush.xpose.msra.mxu0 0.0
        %410 = vmatpush.xpose.msra.mxu0 0.0
        %411 = vmatpush.xpose.msra.mxu0 0.0
        %412 = vmatpush.xpose.msra.mxu0 0.0
        %413 = vmatpush.xpose.msra.mxu0 0.0
        %414 = vmatpush.xpose.msra.mxu0 0.0
        %415 = vmatpush.xpose.msra.mxu0 0.0
        %416 = vmatpush.xpose.msra.mxu0 0.0
        %417 = vmatpush.xpose.msra.mxu0 0.0
        %418 = vmatpush.xpose.msra.mxu0 0.0
        %419 = vmatpush.xpose.msra.mxu0 0.0
        %420 = vmatpush.xpose.msra.mxu0 0.0
        %421 = vmatpush.xpose.msra.mxu0 0.0
        %422 = vmatpush.xpose.msra.mxu0 %v405
        %423 = vmatmul.f32.gmra.mxu0 %v403
        %v424 = vpop.f32.mrf.mxu0
        %v425 = vadd.f32 0.0, %v424
        %426 = vdwg.mxu0
        %v427 = vsel %vm402, %v380, 0
        %v429 = vsel %vm402, %v387, 0
        %431 = vmatpush.xpose.msra.mxu0 0.0
        %432 = vmatpush.xpose.msra.mxu0 0.0
        %433 = vmatpush.xpose.msra.mxu0 0.0
        %434 = vmatpush.xpose.msra.mxu0 0.0
        %435 = vmatpush.xpose.msra.mxu0 0.0
        %436 = vmatpush.xpose.msra.mxu0 0.0
        %437 = vmatpush.xpose.msra.mxu0 0.0
        %438 = vmatpush.xpose.msra.mxu0 0.0
        %439 = vmatpush.xpose.msra.mxu0 0.0
        %440 = vmatpush.xpose.msra.mxu0 0.0
        %441 = vmatpush.xpose.msra.mxu0 0.0
        %442 = vmatpush.xpose.msra.mxu0 0.0
        %443 = vmatpush.xpose.msra.mxu0 0.0
        %444 = vmatpush.xpose.msra.mxu0 0.0
        %445 = vmatpush.xpose.msra.mxu0 0.0
        %446 = vmatpush.xpose.msra.mxu0 %v429
        %447 = vmatmul.f32.gmra.mxu0 %v427
        %v448 = vpop.f32.mrf.mxu0
        %v449 = vadd.f32 0.0, %v448
        %450 = vdwg.mxu0
        %v451 = vsel %vm402, %v382, 0
        %v453 = vsel %vm402, %v389, 0
        %455 = vmatpush.xpose.msra.mxu0 0.0
        %456 = vmatpush.xpose.msra.mxu0 0.0
        %457 = vmatpush.xpose.msra.mxu0 0.0
        %458 = vmatpush.xpose.msra.mxu0 0.0
        %459 = vmatpush.xpose.msra.mxu0 0.0
        %460 = vmatpush.xpose.msra.mxu0 0.0
        %461 = vmatpush.xpose.msra.mxu0 0.0
        %462 = vmatpush.xpose.msra.mxu0 0.0
        %463 = vmatpush.xpose.msra.mxu0 0.0
        %464 = vmatpush.xpose.msra.mxu0 0.0
        %465 = vmatpush.xpose.msra.mxu0 0.0
        %466 = vmatpush.xpose.msra.mxu0 0.0
        %467 = vmatpush.xpose.msra.mxu0 0.0
        %468 = vmatpush.xpose.msra.mxu0 0.0
        %469 = vmatpush.xpose.msra.mxu0 0.0
        %470 = vmatpush.xpose.msra.mxu0 %v453
        %471 = vmatmul.f32.gmra.mxu0 %v451
        %v472 = vpop.f32.mrf.mxu0
        %v473 = vadd.f32 0.0, %v472
        %474 = vdwg.mxu0
        %v475 = vsel %vm402, %v384, 0
        %v477 = vsel %vm402, %v391, 0
        %479 = vmatpush.xpose.msra.mxu0 0.0
        %480 = vmatpush.xpose.msra.mxu0 0.0
        %481 = vmatpush.xpose.msra.mxu0 0.0
        %482 = vmatpush.xpose.msra.mxu0 0.0
        %483 = vmatpush.xpose.msra.mxu0 0.0
        %484 = vmatpush.xpose.msra.mxu0 0.0
        %485 = vmatpush.xpose.msra.mxu0 0.0
        %486 = vmatpush.xpose.msra.mxu0 0.0
        %487 = vmatpush.xpose.msra.mxu0 0.0
        %488 = vmatpush.xpose.msra.mxu0 0.0
        %489 = vmatpush.xpose.msra.mxu0 0.0
        %490 = vmatpush.xpose.msra.mxu0 0.0
        %491 = vmatpush.xpose.msra.mxu0 0.0
        %492 = vmatpush.xpose.msra.mxu0 0.0
        %493 = vmatpush.xpose.msra.mxu0 0.0
        %494 = vmatpush.xpose.msra.mxu0 %v477
        %495 = vmatmul.f32.gmra.mxu0 %v475
        %v496 = vpop.f32.mrf.mxu0
        %v497 = vadd.f32 0.0, %v496
        %498 = vdwg.mxu0
        %v499 = vsel %vm295, 1, 0
        %vm500 = vcmp.eq.s32.totalorder %v499, 1
        %v501 = vsel %vm500, %v425, -1e+30
        %v502 = vsel %vm500, %v449, -1e+30
        %v503 = vsel %vm500, %v473, -1e+30
        %v504 = vsel %vm500, %v497, -1e+30
        %v505 = vsel %vm402, %v501, -inf
        %506 = vmax.xlane.f32.xlu0 %v505
        %v507 = vpop.xlane.xlu0 %506
        %v508 = vsel %vm402, %v502, -inf
        %509 = vmax.xlane.f32.xlu0 %v508
        %v510 = vpop.xlane.xlu0 %509
        %v511 = vsel %vm402, %v503, -inf
        %512 = vmax.xlane.f32.xlu0 %v511
        %v513 = vpop.xlane.xlu0 %512
        %v514 = vsel %vm402, %v504, -inf
        %515 = vmax.xlane.f32.xlu0 %v514
        %v516 = vpop.xlane.xlu0 %515
        %v517 = vsub.f32 %v501, %v507
        %v518 = vsub.f32 %v502, %v510
        %v519 = vsub.f32 %v503, %v513
        %v520 = vsub.f32 %v504, %v516
        %v521 = vmul.f32 %v517, 1.442695
        %v522 = vpow.pop %v521
        %v523 = vmul.f32 %v518, 1.442695
        %v524 = vpow.pop %v523
        %v525 = vmul.f32 %v519, 1.442695
        %v526 = vpow.pop %v525
        %v527 = vmul.f32 %v520, 1.442695
        %v528 = vpow.pop %v527
        %v529 = vsel %vm402, %v522, 0.0
        %530 = vadd.xlane.f32.xlu0 %v529
        %v531 = vpop.xlane.xlu0 %530
        %v532 = vsel %vm402, %v524, 0.0
        %533 = vadd.xlane.f32.xlu0 %v532
        %v534 = vpop.xlane.xlu0 %533
        %v535 = vsel %vm402, %v526, 0.0
        %536 = vadd.xlane.f32.xlu0 %v535
        %v537 = vpop.xlane.xlu0 %536
        %v538 = vsel %vm402, %v528, 0.0
        %539 = vadd.xlane.f32.xlu0 %v538
        %v540 = vpop.xlane.xlu0 %539
        %v541 = vrcp.pop %v531
        %v542 = vmul.f32 %v531, %v541
        %v543 = vsub.f32 1.0, %v542
        %v544 = vmul.f32 %v541, %v543
        %v545 = vadd.f32 %v541, %v544
        %vm546 = vweird.f32 %v531
        %vm547 = vweird.f32 %v541
        %vm548 = vmor %vm546, %vm547
        %v549 = vsel %vm548, %v541, %v545
        %v550 = vand.u32 2147483647, %v531
        %vm551 = vcmp.eq.f32.partialorder %v550, 8.507059e+37
        %v552 = vand.u32 %v531, 2147483648
        %v553 = vor.u32 1.1754944e-38, %v552
        %v554 = vsel %vm551, %v553, %v549
        %v555 = vrcp.pop %v534
        %v556 = vmul.f32 %v534, %v555
        %v557 = vsub.f32 1.0, %v556
        %v558 = vmul.f32 %v555, %v557
        %v559 = vadd.f32 %v555, %v558
        %vm560 = vweird.f32 %v534
        %vm561 = vweird.f32 %v555
        %vm562 = vmor %vm560, %vm561
        %v563 = vsel %vm562, %v555, %v559
        %v564 = vand.u32 2147483647, %v534
        %vm565 = vcmp.eq.f32.partialorder %v564, 8.507059e+37
        %v566 = vand.u32 %v534, 2147483648
        %v567 = vor.u32 1.1754944e-38, %v566
        %v568 = vsel %vm565, %v567, %v563
        %v569 = vrcp.pop %v537
        %v570 = vmul.f32 %v537, %v569
        %v571 = vsub.f32 1.0, %v570
        %v572 = vmul.f32 %v569, %v571
        %v573 = vadd.f32 %v569, %v572
        %vm574 = vweird.f32 %v537
        %vm575 = vweird.f32 %v569
        %vm576 = vmor %vm574, %vm575
        %v577 = vsel %vm576, %v569, %v573
        %v578 = vand.u32 2147483647, %v537
        %vm579 = vcmp.eq.f32.partialorder %v578, 8.507059e+37
        %v580 = vand.u32 %v537, 2147483648
        %v581 = vor.u32 1.1754944e-38, %v580
        %v582 = vsel %vm579, %v581, %v577
        %v583 = vrcp.pop %v540
        %v584 = vmul.f32 %v540, %v583
        %v585 = vsub.f32 1.0, %v584
        %v586 = vmul.f32 %v583, %v585
        %v587 = vadd.f32 %v583, %v586
        %vm588 = vweird.f32 %v540
        %vm589 = vweird.f32 %v583
        %vm590 = vmor %vm588, %vm589
        %v591 = vsel %vm590, %v583, %v587
        %v592 = vand.u32 2147483647, %v540
        %vm593 = vcmp.eq.f32.partialorder %v592, 8.507059e+37
        %v594 = vand.u32 %v540, 2147483648
        %v595 = vor.u32 1.1754944e-38, %v594
        %v596 = vsel %vm593, %v595, %v591
        %v597 = vmul.f32 %v522, %v554
        %v598 = vmul.f32 %v524, %v568
        %v599 = vmul.f32 %v526, %v582
        %v600 = vmul.f32 %v528, %v596
        %v602 = vsel %vm402, %v597, 0
        %604 = vmatpush.msra.mxu0 0.0
        %605 = vmatpush.msra.mxu0 0.0
        %606 = vmatpush.msra.mxu0 0.0
        %607 = vmatpush.msra.mxu0 0.0
        %608 = vmatpush.msra.mxu0 0.0
        %609 = vmatpush.msra.mxu0 0.0
        %610 = vmatpush.msra.mxu0 0.0
        %611 = vmatpush.msra.mxu0 0.0
        %612 = vmatpush.msra.mxu0 0.0
        %613 = vmatpush.msra.mxu0 0.0
        %614 = vmatpush.msra.mxu0 0.0
        %615 = vmatpush.msra.mxu0 0.0
        %616 = vmatpush.msra.mxu0 0.0
        %617 = vmatpush.msra.mxu0 0.0
        %618 = vmatpush.msra.mxu0 0.0
        %619 = vmatpush.msra.mxu0 %v376
        %620 = vmatmul.f32.gmra.mxu0 %v602
        %v621 = vpop.f32.mrf.mxu0
        %v622 = vadd.f32 0.0, %v621
        %623 = vdwg.mxu0
        %v625 = vsel %vm402, %v598, 0
        %627 = vmatpush.msra.mxu0 0.0
        %628 = vmatpush.msra.mxu0 0.0
        %629 = vmatpush.msra.mxu0 0.0
        %630 = vmatpush.msra.mxu0 0.0
        %631 = vmatpush.msra.mxu0 0.0
        %632 = vmatpush.msra.mxu0 0.0
        %633 = vmatpush.msra.mxu0 0.0
        %634 = vmatpush.msra.mxu0 0.0
        %635 = vmatpush.msra.mxu0 0.0
        %636 = vmatpush.msra.mxu0 0.0
        %637 = vmatpush.msra.mxu0 0.0
        %638 = vmatpush.msra.mxu0 0.0
        %639 = vmatpush.msra.mxu0 0.0
        %640 = vmatpush.msra.mxu0 0.0
        %641 = vmatpush.msra.mxu0 0.0
        %642 = vmatpush.msra.mxu0 %v394
        %643 = vmatmul.f32.gmra.mxu0 %v625
        %v644 = vpop.f32.mrf.mxu0
        %v645 = vadd.f32 0.0, %v644
        %646 = vdwg.mxu0
        %v648 = vsel %vm402, %v599, 0
        %650 = vmatpush.msra.mxu0 0.0
        %651 = vmatpush.msra.mxu0 0.0
        %652 = vmatpush.msra.mxu0 0.0
        %653 = vmatpush.msra.mxu0 0.0
        %654 = vmatpush.msra.mxu0 0.0
        %655 = vmatpush.msra.mxu0 0.0
        %656 = vmatpush.msra.mxu0 0.0
        %657 = vmatpush.msra.mxu0 0.0
        %658 = vmatpush.msra.mxu0 0.0
        %659 = vmatpush.msra.mxu0 0.0
        %660 = vmatpush.msra.mxu0 0.0
        %661 = vmatpush.msra.mxu0 0.0
        %662 = vmatpush.msra.mxu0 0.0
        %663 = vmatpush.msra.mxu0 0.0
        %664 = vmatpush.msra.mxu0 0.0
        %665 = vmatpush.msra.mxu0 %v397
        %666 = vmatmul.f32.gmra.mxu0 %v648
        %v667 = vpop.f32.mrf.mxu0
        %v668 = vadd.f32 0.0, %v667
        %669 = vdwg.mxu0
        %v671 = vsel %vm402, %v600, 0
        %673 = vmatpush.msra.mxu0 0.0
        %674 = vmatpush.msra.mxu0 0.0
        %675 = vmatpush.msra.mxu0 0.0
        %676 = vmatpush.msra.mxu0 0.0
        %677 = vmatpush.msra.mxu0 0.0
        %678 = vmatpush.msra.mxu0 0.0
        %679 = vmatpush.msra.mxu0 0.0
        %680 = vmatpush.msra.mxu0 0.0
        %681 = vmatpush.msra.mxu0 0.0
        %682 = vmatpush.msra.mxu0 0.0
        %683 = vmatpush.msra.mxu0 0.0
        %684 = vmatpush.msra.mxu0 0.0
        %685 = vmatpush.msra.mxu0 0.0
        %686 = vmatpush.msra.mxu0 0.0
        %687 = vmatpush.msra.mxu0 0.0
        %688 = vmatpush.msra.mxu0 %v400
        %689 = vmatmul.f32.gmra.mxu0 %v671
        %v690 = vpop.f32.mrf.mxu0
        %v691 = vadd.f32 0.0, %v690
        %692 = vdwg.mxu0
        %694 = vrot.lane.b32.xlu0 %v645, 8
        %v695 = vpop.permute.xlu0 %694
        %698 = vrot.lane.b32.xlu0 %v668, 16
        %v699 = vpop.permute.xlu0 %698
        %702 = vrot.lane.b32.xlu0 %v691, 24
        %v703 = vpop.permute.xlu0 %702
        %v705 = vsel %vm402, %v622, %v695
        %vm706 = vcmask 130048
        %v707 = vsel %vm706, %v705, %v699
        %vm708 = vcmask 195584
        %v709 = vsel %vm708, %v707, %v703
        %s710 = scalar_lea.vmem [#allocation7], 96
        %v711 = vld [vmem:[%s710] sm:$0xff]
        %v712 = vld [vmem:[%s710 + $0x8] sm:$0xff]
        %v713 = vld [vmem:[%s710 + $0x10] sm:$0xff]
        %v714 = vld [vmem:[%s710 + $0x18] sm:$0xff]
        %v715 = vperm.slane %v289, 3
        %v717 = vsel %vm301, %v709, 0
        %719 = vmatpush.msra.mxu0 0.0
        %720 = vmatpush.msra.mxu0 0.0
        %721 = vmatpush.msra.mxu0 0.0
        %722 = vmatpush.msra.mxu0 0.0
        %723 = vmatpush.msra.mxu0 0.0
        %724 = vmatpush.msra.mxu0 0.0
        %725 = vmatpush.msra.mxu0 0.0
        %726 = vmatpush.msra.mxu0 0.0
        %727 = vmatpush.msra.mxu0 0.0
        %728 = vmatpush.msra.mxu0 0.0
        %729 = vmatpush.msra.mxu0 0.0
        %730 = vmatpush.msra.mxu0 0.0
        %731 = vmatpush.msra.mxu0 %v714
        %732 = vmatpush.msra.mxu0 %v713
        %733 = vmatpush.msra.mxu0 %v712
        %734 = vmatpush.msra.mxu0 %v711
        %735 = vmatmul.f32.gmra.mxu0 %v717
        %v736 = vpop.f32.mrf.mxu0
        %v737 = vadd.f32 %v715, %v736
        %738 = vdwg.mxu0
        %v739 = vadd.f32 %v287, %v737
        %v740 = vsel %vm301, %v739, 0.0
        %741 = vadd.xlane.f32.xlu0 %v740
        %v742 = vpop.xlane.xlu0 %741
        %v743 = vrcp.pop 32.0
        %v744 = vmul.f32 32.0, %v743
        %v745 = vsub.f32 1.0, %v744
        %v746 = vmul.f32 %v743, %v745
        %v747 = vadd.f32 %v743, %v746
        %vm748 = vweird.f32 %v743
        %v749 = vsel %vm748, %v743, %v747
        %v750 = vmul.f32 %v742, %v749
        %v751 = vsub.f32 %v739, %v750
        %v752 = vmul.f32 %v751, %v751
        %v753 = vsel %vm301, %v752, 0.0
        %754 = vadd.xlane.f32.xlu0 %v753
        %v755 = vpop.xlane.xlu0 %754
        %v756 = vmul.f32 %v755, %v749
        %v757 = vadd.f32 %v756, 1e-05
        %v758 = vrsqrt.pop %v757
        %v759 = vmul.f32 %v758, %v757
        %v760 = vmul.f32 %v759, %v758
        %v761 = vmul.f32 0.5, %v760
        %v762 = vsub.f32 1.5, %v761
        %v763 = vmul.f32 %v758, %v762
        %vm764 = vweird.f32 %v757
        %vm765 = vweird.f32 %v758
        %vm766 = vmor %vm764, %vm765
        %v767 = vsel %vm766, %v758, %v763
        %v768 = vmul.f32 %v751, %v767
        %v769 = vperm.slane %v289, 4
        %v770 = vmul.f32 %v768, %v769
        %v771 = vperm.slane %v289, 5
        %v772 = vadd.f32 %v770, %v771
        %s773 = scalar_lea.vmem [#allocation7], 128
        %v774 = vld [vmem:[%s773] sm:$0xff]
        %v775 = vld [vmem:[%s773 + $0x8] sm:$0xff]
        %v776 = vld [vmem:[%s773 + $0x10] sm:$0xff]
        %v777 = vld [vmem:[%s773 + $0x18] sm:$0xff]
        %v778 = vperm.slane %v289, 6
        %v780 = vsel %vm301, %v772, 0
        %782 = vmatpush.msra.mxu0 0.0
        %783 = vmatpush.msra.mxu0 0.0
        %784 = vmatpush.msra.mxu0 0.0
        %785 = vmatpush.msra.mxu0 0.0
        %786 = vmatpush.msra.mxu0 0.0
        %787 = vmatpush.msra.mxu0 0.0
        %788 = vmatpush.msra.mxu0 0.0
        %789 = vmatpush.msra.mxu0 0.0
        %790 = vmatpush.msra.mxu0 0.0
        %791 = vmatpush.msra.mxu0 0.0
        %792 = vmatpush.msra.mxu0 0.0
        %793 = vmatpush.msra.mxu0 0.0
        %794 = vmatpush.msra.mxu0 %v777
        %795 = vmatpush.msra.mxu0 %v776
        %796 = vmatpush.msra.mxu0 %v775
        %797 = vmatpush.msra.mxu0 %v774
        %798 = vmatmul.f32.gmra.mxu0 %v780
        %v799 = vpop.f32.mrf.mxu0
        %v800 = vadd.f32 %v778, %v799
        %801 = vdwg.mxu0
        %s802 = scalar_lea.vmem [#allocation7], 160
        %v803 = vld [vmem:[%s802] sm:$0xff]
        %v804 = vld [vmem:[%s802 + $0x8] sm:$0xff]
        %v805 = vld [vmem:[%s802 + $0x10] sm:$0xff]
        %v806 = vld [vmem:[%s802 + $0x18] sm:$0xff]
        %v807 = vperm.slane %v289, 7
        %v809 = vsel %vm301, %v288, 0
        %811 = vmatpush.msra.mxu0 0.0
        %812 = vmatpush.msra.mxu0 0.0
        %813 = vmatpush.msra.mxu0 0.0
        %814 = vmatpush.msra.mxu0 0.0
        %815 = vmatpush.msra.mxu0 0.0
        %816 = vmatpush.msra.mxu0 0.0
        %817 = vmatpush.msra.mxu0 0.0
        %818 = vmatpush.msra.mxu0 0.0
        %819 = vmatpush.msra.mxu0 0.0
        %820 = vmatpush.msra.mxu0 0.0
        %821 = vmatpush.msra.mxu0 0.0
        %822 = vmatpush.msra.mxu0 0.0
        %823 = vmatpush.msra.mxu0 %v806
        %824 = vmatpush.msra.mxu0 %v805
        %825 = vmatpush.msra.mxu0 %v804
        %826 = vmatpush.msra.mxu0 %v803
        %827 = vmatmul.f32.gmra.mxu0 %v809
        %v828 = vpop.f32.mrf.mxu0
        %v829 = vadd.f32 %v807, %v828
        %830 = vdwg.mxu0
        %v831 = vmul.f32 %v829, 0.35355338
        %s832 = scalar_lea.vmem [#allocation7], 192
        %v833 = vld [vmem:[%s832] sm:$0xff]
        %v834 = vld [vmem:[%s832 + $0x8] sm:$0xff]
        %v835 = vld [vmem:[%s832 + $0x10] sm:$0xff]
        %v836 = vld [vmem:[%s832 + $0x18] sm:$0xff]
        %v837 = vperm.slane %v290, 0
        %838 = vmatpush.msra.mxu0 0.0
        %839 = vmatpush.msra.mxu0 0.0
        %840 = vmatpush.msra.mxu0 0.0
        %841 = vmatpush.msra.mxu0 0.0
        %842 = vmatpush.msra.mxu0 0.0
        %843 = vmatpush.msra.mxu0 0.0
        %844 = vmatpush.msra.mxu0 0.0
        %845 = vmatpush.msra.mxu0 0.0
        %846 = vmatpush.msra.mxu0 0.0
        %847 = vmatpush.msra.mxu0 0.0
        %848 = vmatpush.msra.mxu0 0.0
        %849 = vmatpush.msra.mxu0 0.0
        %850 = vmatpush.msra.mxu0 %v836
        %851 = vmatpush.msra.mxu0 %v835
        %852 = vmatpush.msra.mxu0 %v834
        %853 = vmatpush.msra.mxu0 %v833
        %854 = vmatmul.f32.gmra.mxu0 %v780
        %v855 = vpop.f32.mrf.mxu0
        %v856 = vadd.f32 %v837, %v855
        %857 = vdwg.mxu0
        %859 = vrot.lane.b32.xlu0 %v831, 120
        %v860 = vpop.permute.xlu0 %859
        %861 = vrot.lane.b32.xlu0 %v831, 112
        %v862 = vpop.permute.xlu0 %861
        %863 = vrot.lane.b32.xlu0 %v831, 104
        %v864 = vpop.permute.xlu0 %863
        %866 = vrot.lane.b32.xlu0 %v800, 120
        %v867 = vpop.permute.xlu0 %866
        %868 = vrot.lane.b32.xlu0 %v800, 112
        %v869 = vpop.permute.xlu0 %868
        %870 = vrot.lane.b32.xlu0 %v800, 104
        %v871 = vpop.permute.xlu0 %870
        %873 = vrot.lane.b32.xlu0 %v856, 120
        %v874 = vpop.permute.xlu0 %873
        %876 = vrot.lane.b32.xlu0 %v856, 112
        %v877 = vpop.permute.xlu0 %876
        %879 = vrot.lane.b32.xlu0 %v856, 104
        %v880 = vpop.permute.xlu0 %879
        %v882 = vsel %vm402, %v831, 0
        %v884 = vsel %vm402, %v800, 0
        %886 = vmatpush.xpose.msra.mxu0 0.0
        %887 = vmatpush.xpose.msra.mxu0 0.0
        %888 = vmatpush.xpose.msra.mxu0 0.0
        %889 = vmatpush.xpose.msra.mxu0 0.0
        %890 = vmatpush.xpose.msra.mxu0 0.0
        %891 = vmatpush.xpose.msra.mxu0 0.0
        %892 = vmatpush.xpose.msra.mxu0 0.0
        %893 = vmatpush.xpose.msra.mxu0 0.0
        %894 = vmatpush.xpose.msra.mxu0 0.0
        %895 = vmatpush.xpose.msra.mxu0 0.0
        %896 = vmatpush.xpose.msra.mxu0 0.0
        %897 = vmatpush.xpose.msra.mxu0 0.0
        %898 = vmatpush.xpose.msra.mxu0 0.0
        %899 = vmatpush.xpose.msra.mxu0 0.0
        %900 = vmatpush.xpose.msra.mxu0 0.0
        %901 = vmatpush.xpose.msra.mxu0 %v884
        %902 = vmatmul.f32.gmra.mxu0 %v882
        %v903 = vpop.f32.mrf.mxu0
        %v904 = vadd.f32 0.0, %v903
        %905 = vdwg.mxu0
        %v906 = vsel %vm402, %v860, 0
        %v908 = vsel %vm402, %v867, 0
        %910 = vmatpush.xpose.msra.mxu0 0.0
        %911 = vmatpush.xpose.msra.mxu0 0.0
        %912 = vmatpush.xpose.msra.mxu0 0.0
        %913 = vmatpush.xpose.msra.mxu0 0.0
        %914 = vmatpush.xpose.msra.mxu0 0.0
        %915 = vmatpush.xpose.msra.mxu0 0.0
        %916 = vmatpush.xpose.msra.mxu0 0.0
        %917 = vmatpush.xpose.msra.mxu0 0.0
        %918 = vmatpush.xpose.msra.mxu0 0.0
        %919 = vmatpush.xpose.msra.mxu0 0.0
        %920 = vmatpush.xpose.msra.mxu0 0.0
        %921 = vmatpush.xpose.msra.mxu0 0.0
        %922 = vmatpush.xpose.msra.mxu0 0.0
        %923 = vmatpush.xpose.msra.mxu0 0.0
        %924 = vmatpush.xpose.msra.mxu0 0.0
        %925 = vmatpush.xpose.msra.mxu0 %v908
        %926 = vmatmul.f32.gmra.mxu0 %v906
        %v927 = vpop.f32.mrf.mxu0
        %v928 = vadd.f32 0.0, %v927
        %929 = vdwg.mxu0
        %v930 = vsel %vm402, %v862, 0
        %v932 = vsel %vm402, %v869, 0
        %934 = vmatpush.xpose.msra.mxu0 0.0
        %935 = vmatpush.xpose.msra.mxu0 0.0
        %936 = vmatpush.xpose.msra.mxu0 0.0
        %937 = vmatpush.xpose.msra.mxu0 0.0
        %938 = vmatpush.xpose.msra.mxu0 0.0
        %939 = vmatpush.xpose.msra.mxu0 0.0
        %940 = vmatpush.xpose.msra.mxu0 0.0
        %941 = vmatpush.xpose.msra.mxu0 0.0
        %942 = vmatpush.xpose.msra.mxu0 0.0
        %943 = vmatpush.xpose.msra.mxu0 0.0
        %944 = vmatpush.xpose.msra.mxu0 0.0
        %945 = vmatpush.xpose.msra.mxu0 0.0
        %946 = vmatpush.xpose.msra.mxu0 0.0
        %947 = vmatpush.xpose.msra.mxu0 0.0
        %948 = vmatpush.xpose.msra.mxu0 0.0
        %949 = vmatpush.xpose.msra.mxu0 %v932
        %950 = vmatmul.f32.gmra.mxu0 %v930
        %v951 = vpop.f32.mrf.mxu0
        %v952 = vadd.f32 0.0, %v951
        %953 = vdwg.mxu0
        %v954 = vsel %vm402, %v864, 0
        %v956 = vsel %vm402, %v871, 0
        %958 = vmatpush.xpose.msra.mxu0 0.0
        %959 = vmatpush.xpose.msra.mxu0 0.0
        %960 = vmatpush.xpose.msra.mxu0 0.0
        %961 = vmatpush.xpose.msra.mxu0 0.0
        %962 = vmatpush.xpose.msra.mxu0 0.0
        %963 = vmatpush.xpose.msra.mxu0 0.0
        %964 = vmatpush.xpose.msra.mxu0 0.0
        %965 = vmatpush.xpose.msra.mxu0 0.0
        %966 = vmatpush.xpose.msra.mxu0 0.0
        %967 = vmatpush.xpose.msra.mxu0 0.0
        %968 = vmatpush.xpose.msra.mxu0 0.0
        %969 = vmatpush.xpose.msra.mxu0 0.0
        %970 = vmatpush.xpose.msra.mxu0 0.0
        %971 = vmatpush.xpose.msra.mxu0 0.0
        %972 = vmatpush.xpose.msra.mxu0 0.0
        %973 = vmatpush.xpose.msra.mxu0 %v956
        %974 = vmatmul.f32.gmra.mxu0 %v954
        %v975 = vpop.f32.mrf.mxu0
        %v976 = vadd.f32 0.0, %v975
        %977 = vdwg.mxu0
        %v978 = vsel %vm500, %v904, -1e+30
        %v979 = vsel %vm500, %v928, -1e+30
        %v980 = vsel %vm500, %v952, -1e+30
        %v981 = vsel %vm500, %v976, -1e+30
        %v982 = vsel %vm402, %v978, -inf
        %983 = vmax.xlane.f32.xlu0 %v982
        %v984 = vpop.xlane.xlu0 %983
        %v985 = vsel %vm402, %v979, -inf
        %986 = vmax.xlane.f32.xlu0 %v985
        %v987 = vpop.xlane.xlu0 %986
        %v988 = vsel %vm402, %v980, -inf
        %989 = vmax.xlane.f32.xlu0 %v988
        %v990 = vpop.xlane.xlu0 %989
        %v991 = vsel %vm402, %v981, -inf
        %992 = vmax.xlane.f32.xlu0 %v991
        %v993 = vpop.xlane.xlu0 %992
        %v994 = vsub.f32 %v978, %v984
        %v995 = vsub.f32 %v979, %v987
        %v996 = vsub.f32 %v980, %v990
        %v997 = vsub.f32 %v981, %v993
        %v998 = vmul.f32 %v994, 1.442695
        %v999 = vpow.pop %v998
        %v1000 = vmul.f32 %v995, 1.442695
        %v1001 = vpow.pop %v1000
        %v1002 = vmul.f32 %v996, 1.442695
        %v1003 = vpow.pop %v1002
        %v1004 = vmul.f32 %v997, 1.442695
        %v1005 = vpow.pop %v1004
        %v1006 = vsel %vm402, %v999, 0.0
        %1007 = vadd.xlane.f32.xlu0 %v1006
        %v1008 = vpop.xlane.xlu0 %1007
        %v1009 = vsel %vm402, %v1001, 0.0
        %1010 = vadd.xlane.f32.xlu0 %v1009
        %v1011 = vpop.xlane.xlu0 %1010
        %v1012 = vsel %vm402, %v1003, 0.0
        %1013 = vadd.xlane.f32.xlu0 %v1012
        %v1014 = vpop.xlane.xlu0 %1013
        %v1015 = vsel %vm402, %v1005, 0.0
        %1016 = vadd.xlane.f32.xlu0 %v1015
        %v1017 = vpop.xlane.xlu0 %1016
        %v1018 = vrcp.pop %v1008
        %v1019 = vmul.f32 %v1008, %v1018
        %v1020 = vsub.f32 1.0, %v1019
        %v1021 = vmul.f32 %v1018, %v1020
        %v1022 = vadd.f32 %v1018, %v1021
        %vm1023 = vweird.f32 %v1008
        %vm1024 = vweird.f32 %v1018
        %vm1025 = vmor %vm1023, %vm1024
        %v1026 = vsel %vm1025, %v1018, %v1022
        %v1027 = vand.u32 2147483647, %v1008
        %vm1028 = vcmp.eq.f32.partialorder %v1027, 8.507059e+37
        %v1029 = vand.u32 %v1008, 2147483648
        %v1030 = vor.u32 1.1754944e-38, %v1029
        %v1031 = vsel %vm1028, %v1030, %v1026
        %v1032 = vrcp.pop %v1011
        %v1033 = vmul.f32 %v1011, %v1032
        %v1034 = vsub.f32 1.0, %v1033
        %v1035 = vmul.f32 %v1032, %v1034
        %v1036 = vadd.f32 %v1032, %v1035
        %vm1037 = vweird.f32 %v1011
        %vm1038 = vweird.f32 %v1032
        %vm1039 = vmor %vm1037, %vm1038
        %v1040 = vsel %vm1039, %v1032, %v1036
        %v1041 = vand.u32 2147483647, %v1011
        %vm1042 = vcmp.eq.f32.partialorder %v1041, 8.507059e+37
        %v1043 = vand.u32 %v1011, 2147483648
        %v1044 = vor.u32 1.1754944e-38, %v1043
        %v1045 = vsel %vm1042, %v1044, %v1040
        %v1046 = vrcp.pop %v1014
        %v1047 = vmul.f32 %v1014, %v1046
        %v1048 = vsub.f32 1.0, %v1047
        %v1049 = vmul.f32 %v1046, %v1048
        %v1050 = vadd.f32 %v1046, %v1049
        %vm1051 = vweird.f32 %v1014
        %vm1052 = vweird.f32 %v1046
        %vm1053 = vmor %vm1051, %vm1052
        %v1054 = vsel %vm1053, %v1046, %v1050
        %v1055 = vand.u32 2147483647, %v1014
        %vm1056 = vcmp.eq.f32.partialorder %v1055, 8.507059e+37
        %v1057 = vand.u32 %v1014, 2147483648
        %v1058 = vor.u32 1.1754944e-38, %v1057
        %v1059 = vsel %vm1056, %v1058, %v1054
        %v1060 = vrcp.pop %v1017
        %v1061 = vmul.f32 %v1017, %v1060
        %v1062 = vsub.f32 1.0, %v1061
        %v1063 = vmul.f32 %v1060, %v1062
        %v1064 = vadd.f32 %v1060, %v1063
        %vm1065 = vweird.f32 %v1017
        %vm1066 = vweird.f32 %v1060
        %vm1067 = vmor %vm1065, %vm1066
        %v1068 = vsel %vm1067, %v1060, %v1064
        %v1069 = vand.u32 2147483647, %v1017
        %vm1070 = vcmp.eq.f32.partialorder %v1069, 8.507059e+37
        %v1071 = vand.u32 %v1017, 2147483648
        %v1072 = vor.u32 1.1754944e-38, %v1071
        %v1073 = vsel %vm1070, %v1072, %v1068
        %v1074 = vmul.f32 %v999, %v1031
        %v1075 = vmul.f32 %v1001, %v1045
        %v1076 = vmul.f32 %v1003, %v1059
        %v1077 = vmul.f32 %v1005, %v1073
        %v1079 = vsel %vm402, %v1074, 0
        %1081 = vmatpush.msra.mxu0 0.0
        %1082 = vmatpush.msra.mxu0 0.0
        %1083 = vmatpush.msra.mxu0 0.0
        %1084 = vmatpush.msra.mxu0 0.0
        %1085 = vmatpush.msra.mxu0 0.0
        %1086 = vmatpush.msra.mxu0 0.0
        %1087 = vmatpush.msra.mxu0 0.0
        %1088 = vmatpush.msra.mxu0 0.0
        %1089 = vmatpush.msra.mxu0 0.0
        %1090 = vmatpush.msra.mxu0 0.0
        %1091 = vmatpush.msra.mxu0 0.0
        %1092 = vmatpush.msra.mxu0 0.0
        %1093 = vmatpush.msra.mxu0 0.0
        %1094 = vmatpush.msra.mxu0 0.0
        %1095 = vmatpush.msra.mxu0 0.0
        %1096 = vmatpush.msra.mxu0 %v856
        %1097 = vmatmul.f32.gmra.mxu0 %v1079
        %v1098 = vpop.f32.mrf.mxu0
        %v1099 = vadd.f32 0.0, %v1098
        %1100 = vdwg.mxu0
        %v1102 = vsel %vm402, %v1075, 0
        %1104 = vmatpush.msra.mxu0 0.0
        %1105 = vmatpush.msra.mxu0 0.0
        %1106 = vmatpush.msra.mxu0 0.0
        %1107 = vmatpush.msra.mxu0 0.0
        %1108 = vmatpush.msra.mxu0 0.0
        %1109 = vmatpush.msra.mxu0 0.0
        %1110 = vmatpush.msra.mxu0 0.0
        %1111 = vmatpush.msra.mxu0 0.0
        %1112 = vmatpush.msra.mxu0 0.0
        %1113 = vmatpush.msra.mxu0 0.0
        %1114 = vmatpush.msra.mxu0 0.0
        %1115 = vmatpush.msra.mxu0 0.0
        %1116 = vmatpush.msra.mxu0 0.0
        %1117 = vmatpush.msra.mxu0 0.0
        %1118 = vmatpush.msra.mxu0 0.0
        %1119 = vmatpush.msra.mxu0 %v874
        %1120 = vmatmul.f32.gmra.mxu0 %v1102
        %v1121 = vpop.f32.mrf.mxu0
        %v1122 = vadd.f32 0.0, %v1121
        %1123 = vdwg.mxu0
        %v1125 = vsel %vm402, %v1076, 0
        %1127 = vmatpush.msra.mxu0 0.0
        %1128 = vmatpush.msra.mxu0 0.0
        %1129 = vmatpush.msra.mxu0 0.0
        %1130 = vmatpush.msra.mxu0 0.0
        %1131 = vmatpush.msra.mxu0 0.0
        %1132 = vmatpush.msra.mxu0 0.0
        %1133 = vmatpush.msra.mxu0 0.0
        %1134 = vmatpush.msra.mxu0 0.0
        %1135 = vmatpush.msra.mxu0 0.0
        %1136 = vmatpush.msra.mxu0 0.0
        %1137 = vmatpush.msra.mxu0 0.0
        %1138 = vmatpush.msra.mxu0 0.0
        %1139 = vmatpush.msra.mxu0 0.0
        %1140 = vmatpush.msra.mxu0 0.0
        %1141 = vmatpush.msra.mxu0 0.0
        %1142 = vmatpush.msra.mxu0 %v877
        %1143 = vmatmul.f32.gmra.mxu0 %v1125
        %v1144 = vpop.f32.mrf.mxu0
        %v1145 = vadd.f32 0.0, %v1144
        %1146 = vdwg.mxu0
        %v1148 = vsel %vm402, %v1077, 0
        %1150 = vmatpush.msra.mxu0 0.0
        %1151 = vmatpush.msra.mxu0 0.0
        %1152 = vmatpush.msra.mxu0 0.0
        %1153 = vmatpush.msra.mxu0 0.0
        %1154 = vmatpush.msra.mxu0 0.0
        %1155 = vmatpush.msra.mxu0 0.0
        %1156 = vmatpush.msra.mxu0 0.0
        %1157 = vmatpush.msra.mxu0 0.0
        %1158 = vmatpush.msra.mxu0 0.0
        %1159 = vmatpush.msra.mxu0 0.0
        %1160 = vmatpush.msra.mxu0 0.0
        %1161 = vmatpush.msra.mxu0 0.0
        %1162 = vmatpush.msra.mxu0 0.0
        %1163 = vmatpush.msra.mxu0 0.0
        %1164 = vmatpush.msra.mxu0 0.0
        %1165 = vmatpush.msra.mxu0 %v880
        %1166 = vmatmul.f32.gmra.mxu0 %v1148
        %v1167 = vpop.f32.mrf.mxu0
        %v1168 = vadd.f32 0.0, %v1167
        %1169 = vdwg.mxu0
        %1171 = vrot.lane.b32.xlu0 %v1122, 8
        %v1172 = vpop.permute.xlu0 %1171
        %1175 = vrot.lane.b32.xlu0 %v1145, 16
        %v1176 = vpop.permute.xlu0 %1175
        %1179 = vrot.lane.b32.xlu0 %v1168, 24
        %v1180 = vpop.permute.xlu0 %1179
        %v1182 = vsel %vm402, %v1099, %v1172
        %v1183 = vsel %vm706, %v1182, %v1176
        %v1184 = vsel %vm708, %v1183, %v1180
        %s1185 = scalar_lea.vmem [#allocation7], 224
        %v1186 = vld [vmem:[%s1185] sm:$0xff]
        %v1187 = vld [vmem:[%s1185 + $0x8] sm:$0xff]
        %v1188 = vld [vmem:[%s1185 + $0x10] sm:$0xff]
        %v1189 = vld [vmem:[%s1185 + $0x18] sm:$0xff]
        %v1190 = vperm.slane %v290, 1
        %v1192 = vsel %vm301, %v1184, 0
        %1194 = vmatpush.msra.mxu0 0.0
        %1195 = vmatpush.msra.mxu0 0.0
        %1196 = vmatpush.msra.mxu0 0.0
        %1197 = vmatpush.msra.mxu0 0.0
        %1198 = vmatpush.msra.mxu0 0.0
        %1199 = vmatpush.msra.mxu0 0.0
        %1200 = vmatpush.msra.mxu0 0.0
        %1201 = vmatpush.msra.mxu0 0.0
        %1202 = vmatpush.msra.mxu0 0.0
        %1203 = vmatpush.msra.mxu0 0.0
        %1204 = vmatpush.msra.mxu0 0.0
        %1205 = vmatpush.msra.mxu0 0.0
        %1206 = vmatpush.msra.mxu0 %v1189
        %1207 = vmatpush.msra.mxu0 %v1188
        %1208 = vmatpush.msra.mxu0 %v1187
        %1209 = vmatpush.msra.mxu0 %v1186
        %1210 = vmatmul.f32.gmra.mxu0 %v1192
        %v1211 = vpop.f32.mrf.mxu0
        %v1212 = vadd.f32 %v1190, %v1211
        %1213 = vdwg.mxu0
        %v1214 = vadd.f32 %v288, %v1212
        %v1215 = vsel %vm301, %v1214, 0.0
        %1216 = vadd.xlane.f32.xlu0 %v1215
        %v1217 = vpop.xlane.xlu0 %1216
        %v1218 = vmul.f32 %v1217, %v749
        %v1219 = vsub.f32 %v1214, %v1218
        %v1220 = vmul.f32 %v1219, %v1219
        %v1221 = vsel %vm301, %v1220, 0.0
        %1222 = vadd.xlane.f32.xlu0 %v1221
        %v1223 = vpop.xlane.xlu0 %1222
        %v1224 = vmul.f32 %v1223, %v749
        %v1225 = vadd.f32 %v1224, 1e-05
        %v1226 = vrsqrt.pop %v1225
        %v1227 = vmul.f32 %v1226, %v1225
        %v1228 = vmul.f32 %v1227, %v1226
        %v1229 = vmul.f32 0.5, %v1228
        %v1230 = vsub.f32 1.5, %v1229
        %v1231 = vmul.f32 %v1226, %v1230
        %vm1232 = vweird.f32 %v1225
        %vm1233 = vweird.f32 %v1226
        %vm1234 = vmor %vm1232, %vm1233
        %v1235 = vsel %vm1234, %v1226, %v1231
        %v1236 = vmul.f32 %v1219, %v1235
        %v1237 = vperm.slane %v290, 2
        %v1238 = vmul.f32 %v1236, %v1237
        %v1239 = vperm.slane %v290, 3
        %v1240 = vadd.f32 %v1238, %v1239
        %s1241 = scalar_lea.vmem [#allocation7], 256
        %v1242 = vld [vmem:[%s1241] sm:$0xff]
        %v1243 = vld [vmem:[%s1241 + $0x8] sm:$0xff]
        %v1244 = vld [vmem:[%s1241 + $0x10] sm:$0xff]
        %v1245 = vld [vmem:[%s1241 + $0x18] sm:$0xff]
        %v1246 = vperm.slane %v290, 4
        %v1248 = vsel %vm301, %v1240, 0
        %1250 = vmatpush.msra.mxu0 0.0
        %1251 = vmatpush.msra.mxu0 0.0
        %1252 = vmatpush.msra.mxu0 0.0
        %1253 = vmatpush.msra.mxu0 0.0
        %1254 = vmatpush.msra.mxu0 0.0
        %1255 = vmatpush.msra.mxu0 0.0
        %1256 = vmatpush.msra.mxu0 0.0
        %1257 = vmatpush.msra.mxu0 0.0
        %1258 = vmatpush.msra.mxu0 0.0
        %1259 = vmatpush.msra.mxu0 0.0
        %1260 = vmatpush.msra.mxu0 0.0
        %1261 = vmatpush.msra.mxu0 0.0
        %1262 = vmatpush.msra.mxu0 %v1245
        %1263 = vmatpush.msra.mxu0 %v1244
        %1264 = vmatpush.msra.mxu0 %v1243
        %1265 = vmatpush.msra.mxu0 %v1242
        %1266 = vmatmul.f32.gmra.mxu0 %v1248
        %v1267 = vpop.f32.mrf.mxu0
        %v1268 = vadd.f32 %v1246, %v1267
        %1269 = vdwg.mxu0
        %v1270 = vmul.f32 %v1268, 0.5
        %v1271 = vmul.f32 %v1268, 0.70710677
        %v1272 = vmul.f32 %v1271, %v1271
        %v1273 = vmin.f32 16.0, %v1272
        %v1274 = vmul.f32 %v1273, 2.1237322e-06
        %v1275 = vadd.f32 %v1274, 0.00028619796
        %v1276 = vmul.f32 %v1273, %v1275
        %v1277 = vadd.f32 %v1276, 0.0036580483
        %v1278 = vmul.f32 %v1273, %v1277
        %v1279 = vadd.f32 %v1278, 0.05243302
        %v1280 = vmul.f32 %v1273, %v1279
        %v1281 = vadd.f32 %v1280, 0.18741608
        %v1282 = vmul.f32 %v1273, %v1281
        %v1283 = vadd.f32 %v1282, 1.1283791
        %v1284 = vmul.f32 %v1271, %v1283
        %v1285 = vmul.f32 %v1273, 3.8918573e-05
        %v1286 = vadd.f32 %v1285, 0.001143296
        %v1287 = vmul.f32 %v1273, %v1286
        %v1288 = vadd.f32 %v1287, 0.014752088
        %v1289 = vmul.f32 %v1273, %v1288
        %v1290 = vadd.f32 %v1289, 0.112945676
        %v1291 = vmul.f32 %v1273, %v1290
        %v1292 = vadd.f32 %v1291, 0.4994258
        %v1293 = vmul.f32 %v1273, %v1292
        %v1294 = vadd.f32 %v1293, 1.0
        %v1295 = vrcp.pop %v1294
        %v1296 = vmul.f32 %v1294, %v1295
        %v1297 = vsub.f32 1.0, %v1296
        %v1298 = vmul.f32 %v1295, %v1297
        %v1299 = vadd.f32 %v1295, %v1298
        %vm1300 = vweird.f32 %v1294
        %vm1301 = vweird.f32 %v1295
        %vm1302 = vmor %vm1300, %vm1301
        %v1303 = vsel %vm1302, %v1295, %v1299
        %v1304 = vand.u32 2147483647, %v1294
        %vm1305 = vcmp.eq.f32.partialorder %v1304, 8.507059e+37
        %v1306 = vand.u32 %v1294, 2147483648
        %v1307 = vor.u32 1.1754944e-38, %v1306
        %v1308 = vsel %vm1305, %v1307, %v1303
        %v1309 = vmul.f32 %v1284, %v1308
        %v1310 = vmin.f32 %v1309, 1.0
        %v1311 = vmax.f32 %v1310, -1.0
        %v1312 = vadd.f32 %v1311, 1.0
        %v1313 = vmul.f32 %v1270, %v1312
        %s1314 = scalar_lea.vmem [#allocation7], 288
        %v1315 = vld [vmem:[%s1314] sm:$0xff]
        %v1316 = vld [vmem:[%s1314 + $0x8] sm:$0xff]
        %v1317 = vld [vmem:[%s1314 + $0x10] sm:$0xff]
        %v1318 = vld [vmem:[%s1314 + $0x18] sm:$0xff]
        %v1319 = vperm.slane %v290, 5
        %v1321 = vsel %vm301, %v1313, 0
        %1323 = vmatpush.msra.mxu0 0.0
        %1324 = vmatpush.msra.mxu0 0.0
        %1325 = vmatpush.msra.mxu0 0.0
        %1326 = vmatpush.msra.mxu0 0.0
        %1327 = vmatpush.msra.mxu0 0.0
        %1328 = vmatpush.msra.mxu0 0.0
        %1329 = vmatpush.msra.mxu0 0.0
        %1330 = vmatpush.msra.mxu0 0.0
        %1331 = vmatpush.msra.mxu0 0.0
        %1332 = vmatpush.msra.mxu0 0.0
        %1333 = vmatpush.msra.mxu0 0.0
        %1334 = vmatpush.msra.mxu0 0.0
        %1335 = vmatpush.msra.mxu0 %v1318
        %1336 = vmatpush.msra.mxu0 %v1317
        %1337 = vmatpush.msra.mxu0 %v1316
        %1338 = vmatpush.msra.mxu0 %v1315
        %1339 = vmatmul.f32.gmra.mxu0 %v1321
        %v1340 = vpop.f32.mrf.mxu0
        %v1341 = vadd.f32 %v1319, %v1340
        %1342 = vdwg.mxu0
        %v1343 = vadd.f32 %v1240, %v1341
        %v1344 = vsel %vm301, %v1343, 0.0
        %1345 = vadd.xlane.f32.xlu0 %v1344
        %v1346 = vpop.xlane.xlu0 %1345
        %v1347 = vmul.f32 %v1346, %v749
        %v1348 = vsub.f32 %v1343, %v1347
        %v1349 = vmul.f32 %v1348, %v1348
        %v1350 = vsel %vm301, %v1349, 0.0
        %1351 = vadd.xlane.f32.xlu0 %v1350
        %v1352 = vpop.xlane.xlu0 %1351
        %v1353 = vmul.f32 %v1352, %v749
        %v1354 = vadd.f32 %v1353, 1e-05
        %v1355 = vrsqrt.pop %v1354
        %v1356 = vmul.f32 %v1355, %v1354
        %v1357 = vmul.f32 %v1356, %v1355
        %v1358 = vmul.f32 0.5, %v1357
        %v1359 = vsub.f32 1.5, %v1358
        %v1360 = vmul.f32 %v1355, %v1359
        %vm1361 = vweird.f32 %v1354
        %vm1362 = vweird.f32 %v1355
        %vm1363 = vmor %vm1361, %vm1362
        %v1364 = vsel %vm1363, %v1355, %v1360
        %v1365 = vmul.f32 %v1348, %v1364
        %v1366 = vperm.slane %v290, 6
        %v1367 = vmul.f32 %v1365, %v1366
        %v1368 = vperm.slane %v290, 7
        %v1369 = vadd.f32 %v1367, %v1368
        %1370 = vst.msk [vmem:[%s286] sm:$0xff] %vm301, %v1369
        %s1371 = sand.u32 %s127, 1
        %s1372 = scalar_lea.sflag [#allocation4], %s1371
        %s1373 = sand.u32 %s127, 1
        %s1374 = smul.addr %s1373, 8
        %s1375 = scalar_lea.vmem [#allocation10], %s1374
        // Predicated region
        $region53: #{tpu_custom_call.1} parent=35 // pred_check
          %p1376 = pneg %p137
        $region54: #{tpu_custom_call.1} parent=35 // pred_check_branch
          %1378 = sbr.rel (%p1376) target = $region56
        $region55: #{tpu_custom_call.1} parent=35 // pred_region
          %1380 = vsyncadd %s1372, 0
          %s1381 = smul.addr %s25, 8
          %s1382 = scalar_lea.hbm %s4, %s1381
          %s1384 = sshll.u32 %s1375, 4
          %s1385 = int_to_ptr.vmem [resolvable:$true] %s1384
          %s1386 = sshll.u32 %s1382, 4
          %s1387 = int_to_ptr.hbm [resolvable:$true] %s1386
          %1389 = dma.vmem_to_hbm [thread:$0]  %s1385, 128, %s1387, %s1372
        $region56: #{tpu_custom_call.1} parent=35 // pred_fallthru
          _
      $region36: #{tpu_custom_call.1} parent=5 // pred_fallthru
        _
      %p1390 = scmp.le.s32.totalorder 2, %s20
      // Predicated region
      $region57: #{tpu_custom_call.1} parent=5 // pred_check
        %p1391 = pneg %p1390
      $region58: #{tpu_custom_call.1} parent=5 // pred_check_branch
        %1393 = sbr.rel (%p1391) target = $region60
      $region59: #{tpu_custom_call.1} parent=5 // pred_region
        %s1394 = ssub.s32 %s20, 2
        // Predicated region
        $region61: #{tpu_custom_call.1} parent=59 // pred_check
          %p1395 = pneg %p143
        $region62: #{tpu_custom_call.1} parent=59 // pred_check_branch
          %1397 = sbr.rel (%p1395) target = $region64
        $region63: #{tpu_custom_call.1} parent=59 // pred_region
          %s1398 = sand.u32 %s128, 1
          %s1399 = scalar_lea.sflag [#allocation4], %s1398
          %s1400 = sand.u32 %s128, 1
          %s1401 = smul.addr %s1400, 8
          %s1402 = scalar_lea.vmem [#allocation10], %s1401
          %1404 = dma.done %s1399, 128
        $region64: #{tpu_custom_call.1} parent=59 // pred_fallthru
          _
      $region60: #{tpu_custom_call.1} parent=5 // pred_fallthru
        _
    $region6: #{tpu_custom_call.1} parent=1 // loop_footer
      %s24 = sadd.s32 1, %s20
    $region7: #{tpu_custom_call.1} parent=1 // loop_footer_branch
      %19 = sbr.rel target = $region3
    $region8: #{tpu_custom_call.1} parent=1 // loop_exit
      _
    %1405 = vsyncpa [#allocation3], 1
    %s1406 = scalar_lea.sflag [#allocation3], 1
    %1407 = vsyncpa %s1406, 1
    %1408 = vsyncpa [#allocation6], 1
    %s1409 = scalar_lea.sflag [#allocation6], 1
    %1410 = vsyncpa %s1409, 1
    %1411 = vsyncpa [#allocation9], 1
    %1412 = vsyncpa [#allocation4], 1
    %s1413 = scalar_lea.sflag [#allocation4], 1
    %1414 = vsyncpa %s1413, 1

// kernel: tpu_custom_call.1
$region0: #{tpu_custom_call.1}
  #allocation0 [shape = 'u32[]', space=smem, size = 0x4, offset = 0x4, fixed_abs, tag = 'smem constant byte address 0x4 - core index']
  #allocation1 [shape = 'u32[72,128]{1,0:T(1,128)}', space=vmem, size = 0x9000, scoped, tag = 'internal scratch']
  %s0 = inlined_call_operand.hbm [shape: f32[2,8,32], index: 0, kind: input, shape index: {}]
  %s1 = inlined_call_operand.hbm [shape: f32[2,8,32], index: 1, kind: input, shape index: {}]
  %s2 = inlined_call_operand.hbm [shape: f32[10,32,32], index: 2, kind: input, shape index: {}]
  %s3 = inlined_call_operand.hbm [shape: f32[16,32], index: 3, kind: input, shape index: {}]
  %s4 = inlined_call_operand.hbm [shape: f32[2,8,32], index: 4, kind: output, shape index: {}]
  %s5 = sld [smem:[#allocation0]]
  $region65: #{tpu_custom_call.1} parent=0
    _
  %s7 = ssub.s32 1, %s5
  %s8 = scalar_select 0, %s7, %s5
  $region1: #{tpu_custom_call.1} parent=0
    #allocation2 [shape = 'u8[8192]{0}', space=vmem, size = 0x2000, scoped, tag = 'input window, operand 0']
    #allocation3 [shape = 's32[2]{0}', space=sflag, size = 0x8, scoped, tag = 'scoped memory for tpu_custom_call.1']
    #allocation4 [shape = 's32[2]{0}', space=sflag, size = 0x8, scoped, tag = 'scoped memory for tpu_custom_call.1']
    #allocation5 [shape = 'u8[8192]{0}', space=vmem, size = 0x2000, scoped, tag = 'input window, operand 1']
    #allocation6 [shape = 's32[2]{0}', space=sflag, size = 0x8, scoped, tag = 'scoped memory for tpu_custom_call.1']
    #allocation7 [shape = 'u8[163840]{0}', space=vmem, size = 0x28000, scoped, tag = 'input window, operand 2, single buffered']
    #allocation8 [shape = 'u8[8192]{0}', space=vmem, size = 0x2000, scoped, tag = 'input window, operand 3, single buffered']
    #allocation9 [shape = 's32[1]{0}', space=sflag, size = 0x4, scoped, tag = 'scoped memory for tpu_custom_call.1']
    #allocation10 [shape = 'u8[8192]{0}', space=vmem, size = 0x2000, scoped, tag = 'output window, operand 0']
    %9 = vsyncpa [#allocation3], 0
    %s10 = scalar_lea.sflag [#allocation3], 1
    %11 = vsyncpa %s10, 0
    %12 = vsyncpa [#allocation6], 0
    %s13 = scalar_lea.sflag [#allocation6], 1
    %14 = vsyncpa %s13, 0
    %15 = vsyncpa [#allocation9], 0
    %16 = vsyncpa [#allocation4], 0
    %s17 = scalar_lea.sflag [#allocation4], 1
    %18 = vsyncpa %s17, 0
    loop: start=0, step=1, limit=4
    $region2: #{tpu_custom_call.1} parent=1 // loop_pre_header
      _
    $region3: #{tpu_custom_call.1} parent=1 // loop_header
      %s20 = sphi 0, %s24
      %p21 = scmp.ge.s32.totalorder %s20, 4
      %s30 = sphi 0, %s32
      %s33 = sphi 0, %s30
      %s34 = sphi 0, %s33
      %s50 = sphi 0, %s34
      %s56 = sphi 0, %s58
      %s59 = sphi 0, %s56
      %s60 = sphi 0, %s59
      %s76 = sphi 0, %s60
      %s80 = sphi 0, %s80
      %s82 = sphi 0, %s80
      %s83 = sphi 0, %s82
      %s97 = sphi 0, %s83
      %s101 = sphi 0, %s101
      %s103 = sphi 0, %s101
      %s104 = sphi 0, %s103
      %s118 = sphi 0, %s104
      %s124 = sphi 0, %s126
      %s127 = sphi 0, %s124
      %s128 = sphi 0, %s127
      %s144 = sphi 0, %s128
    $region4: #{tpu_custom_call.1} parent=1 // loop_header_branch
      %23 = sbr.rel (%p21) target = $region8
    $region5: #{tpu_custom_call.1} parent=1 // loop_body
      %s25 = ssub.s32 %s20, 1
      %s26 = ssub.s32 %s20, 2
      %s27 = sadd.s32 %s20, 1
      %s28 = ssub.s32 %s20, %s27
      %p29 = scmp.eq.s32.totalorder %s28, 0
      %s31 = sadd.s32 %s30, 1
      %s32 = scalar_select %p29, %s30, %s31
      %p35 = pneg %p29
      %p36 = scmp.eq.s32.totalorder %s20, 1
      %p37 = por %p35, %p36
      %p38 = scmp.ne.s32.totalorder %s30, %s33
      %p39 = scmp.eq.s32.totalorder %s20, 0
      %p40 = por %p38, %p39
      %p41 = scmp.ne.s32.totalorder %s30, %s33
      %p42 = scmp.eq.s32.totalorder %s25, 1
      %p43 = por %p41, %p42
      %p44 = scmp.ne.s32.totalorder %s33, %s34
      %p45 = scmp.eq.s32.totalorder %s25, 0
      %p46 = por %p44, %p45
      %p47 = scmp.ne.s32.totalorder %s33, %s34
      %p48 = scmp.eq.s32.totalorder %s26, 1
      %p49 = por %p47, %p48
      %p51 = scmp.ne.s32.totalorder %s34, %s50
      %p52 = scmp.eq.s32.totalorder %s26, 0
      %p53 = por %p51, %p52
      %s54 = ssub.s32 %s20, %s27
      %p55 = scmp.eq.s32.totalorder %s54, 0
      %s57 = sadd.s32 %s56, 1
      %s58 = scalar_select %p55, %s56, %s57
      %p61 = pneg %p55
      %p62 = scmp.eq.s32.totalorder %s20, 1
      %p63 = por %p61, %p62
      %p64 = scmp.ne.s32.totalorder %s56, %s59
      %p65 = scmp.eq.s32.totalorder %s20, 0
      %p66 = por %p64, %p65
      %p67 = scmp.ne.s32.totalorder %s56, %s59
      %p68 = scmp.eq.s32.totalorder %s25, 1
      %p69 = por %p67, %p68
      %p70 = scmp.ne.s32.totalorder %s59, %s60
      %p71 = scmp.eq.s32.totalorder %s25, 0
      %p72 = por %p70, %p71
      %p73 = scmp.ne.s32.totalorder %s59, %s60
      %p74 = scmp.eq.s32.totalorder %s26, 1
      %p75 = por %p73, %p74
      %p77 = scmp.ne.s32.totalorder %s60, %s76
      %p78 = scmp.eq.s32.totalorder %s26, 0
      %p79 = por %p77, %p78
      %s81 = sadd.s32 %s80, 1
      %p84 = scmp.eq.s32.totalorder %s20, 1
      %p85 = scmp.ne.s32.totalorder %s80, %s82
      %p86 = scmp.eq.s32.totalorder %s20, 0
      %p87 = por %p85, %p86
      %p88 = scmp.ne.s32.totalorder %s80, %s82
      %p89 = scmp.eq.s32.totalorder %s25, 1
      %p90 = por %p88, %p89
      %p91 = scmp.ne.s32.totalorder %s82, %s83
      %p92 = scmp.eq.s32.totalorder %s25, 0
      %p93 = por %p91, %p92
      %p94 = scmp.ne.s32.totalorder %s82, %s83
      %p95 = scmp.eq.s32.totalorder %s26, 1
      %p96 = por %p94, %p95
      %p98 = scmp.ne.s32.totalorder %s83, %s97
      %p99 = scmp.eq.s32.totalorder %s26, 0
      %p100 = por %p98, %p99
      %s102 = sadd.s32 %s101, 1
      %p105 = scmp.eq.s32.totalorder %s20, 1
      %p106 = scmp.ne.s32.totalorder %s101, %s103
      %p107 = scmp.eq.s32.totalorder %s20, 0
      %p108 = por %p106, %p107
      %p109 = scmp.ne.s32.totalorder %s101, %s103
      %p110 = scmp.eq.s32.totalorder %s25, 1
      %p111 = por %p109, %p110
      %p112 = scmp.ne.s32.totalorder %s103, %s104
      %p113 = scmp.eq.s32.totalorder %s25, 0
      %p114 = por %p112, %p113
      %p115 = scmp.ne.s32.totalorder %s103, %s104
      %p116 = scmp.eq.s32.totalorder %s26, 1
      %p117 = por %p115, %p116
      %p119 = scmp.ne.s32.totalorder %s104, %s118
      %p120 = scmp.eq.s32.totalorder %s26, 0
      %p121 = por %p119, %p120
      %s122 = ssub.s32 %s20, %s27
      %p123 = scmp.eq.s32.totalorder %s122, 0
      %s125 = sadd.s32 %s124, 1
      %s126 = scalar_select %p123, %s124, %s125
      %p129 = pneg %p123
      %p130 = scmp.eq.s32.totalorder %s20, 1
      %p131 = por %p129, %p130
      %p132 = scmp.ne.s32.totalorder %s124, %s127
      %p133 = scmp.eq.s32.totalorder %s20, 0
      %p134 = por %p132, %p133
      %p135 = scmp.ne.s32.totalorder %s124, %s127
      %p136 = scmp.eq.s32.totalorder %s25, 1
      %p137 = por %p135, %p136
      %p138 = scmp.ne.s32.totalorder %s127, %s128
      %p139 = scmp.eq.s32.totalorder %s25, 0
      %p140 = por %p138, %p139
      %p141 = scmp.ne.s32.totalorder %s127, %s128
      %p142 = scmp.eq.s32.totalorder %s26, 1
      %p143 = por %p141, %p142
      %p145 = scmp.ne.s32.totalorder %s128, %s144
      %p146 = scmp.eq.s32.totalorder %s26, 0
      %p147 = por %p145, %p146
      %p148 = scmp.le.s32.totalorder 1, %s20
      %p149 = scmp.lt.s32.totalorder %s20, 3
      %p150 = pnand %p148, %p149
      %p151 = pneg %p150
      // Predicated region
      $region9: #{tpu_custom_call.1} parent=5 // pred_check
        _
      $region10: #{tpu_custom_call.1} parent=5 // pred_check_branch
        %153 = sbr.rel (%p150) target = $region12
      $region11: #{tpu_custom_call.1} parent=5 // pred_region
        %s154 = ssub.s32 %s20, 1
        // Predicated region
        $region13: #{tpu_custom_call.1} parent=11 // pred_check
          %p155 = pneg %p93
        $region14: #{tpu_custom_call.1} parent=11 // pred_check_branch
          %157 = sbr.rel (%p155) target = $region16
        $region15: #{tpu_custom_call.1} parent=11 // pred_region
          %159 = vsyncadd [#allocation6], 0
          %s160 = sshll.u32 %s2, 4
          %s161 = int_to_ptr.hbm [resolvable:$true] %s160
          %s162 = sshll.u32 [#allocation7], 4
          %s163 = int_to_ptr.vmem [resolvable:$true] %s162
          %168 = dma.hbm_to_vmem [thread:$0]  %s161, 5120, %s163, [#allocation6], 128, 128, 8
        $region16: #{tpu_custom_call.1} parent=11 // pred_fallthru
          _
        // Predicated region
        $region17: #{tpu_custom_call.1} parent=11 // pred_check
          %p169 = pneg %p114
        $region18: #{tpu_custom_call.1} parent=11 // pred_check_branch
          %171 = sbr.rel (%p169) target = $region20
        $region19: #{tpu_custom_call.1} parent=11 // pred_region
          %173 = vsyncadd [#allocation9], 0
          %s174 = sshll.u32 %s3, 4
          %s175 = int_to_ptr.hbm [resolvable:$true] %s174
          %s176 = sshll.u32 [#allocation8], 4
          %s177 = int_to_ptr.vmem [resolvable:$true] %s176
          %182 = dma.hbm_to_vmem [thread:$0]  %s175, 256, %s177, [#allocation9], 128, 128, 8
        $region20: #{tpu_custom_call.1} parent=11 // pred_fallthru
          _
      $region12: #{tpu_custom_call.1} parent=5 // pred_fallthru
        _
      %p183 = scmp.lt.s32.totalorder %s20, 2
      // Predicated region
      $region21: #{tpu_custom_call.1} parent=5 // pred_check
        %p184 = pneg %p183
      $region22: #{tpu_custom_call.1} parent=5 // pred_check_branch
        %186 = sbr.rel (%p184) target = $region24
      $region23: #{tpu_custom_call.1} parent=5 // pred_region
        // Predicated region
        $region25: #{tpu_custom_call.1} parent=23 // pred_check
          %p187 = pneg %p40
        $region26: #{tpu_custom_call.1} parent=23 // pred_check_branch
          %189 = sbr.rel (%p187) target = $region28
        $region27: #{tpu_custom_call.1} parent=23 // pred_region
          %s190 = sand.u32 %s30, 1
          %s191 = scalar_lea.sflag [#allocation3], %s190
          %s192 = sand.u32 %s30, 1
          %s193 = smul.addr %s192, 8
          %s194 = scalar_lea.vmem [#allocation2], %s193
          %196 = vsyncadd %s191, 0
          %s197 = smul.addr %s20, 8
          %s198 = scalar_lea.hbm %s0, %s197
          %s200 = sshll.u32 %s198, 4
          %s201 = int_to_ptr.hbm [resolvable:$true] %s200
          %s202 = sshll.u32 %s194, 4
          %s203 = int_to_ptr.vmem [resolvable:$true] %s202
          %205 = dma.hbm_to_vmem [thread:$0]  %s201, 128, %s203, %s191
        $region28: #{tpu_custom_call.1} parent=23 // pred_fallthru
          _
        // Predicated region
        $region29: #{tpu_custom_call.1} parent=23 // pred_check
          %p206 = pneg %p66
        $region30: #{tpu_custom_call.1} parent=23 // pred_check_branch
          %208 = sbr.rel (%p206) target = $region32
        $region31: #{tpu_custom_call.1} parent=23 // pred_region
          %s209 = sand.u32 %s20, 1
          %s210 = scalar_lea.sflag [#allocation6], %s209
          %s211 = sand.u32 %s56, 1
          %s212 = smul.addr %s211, 8
          %s213 = scalar_lea.vmem [#allocation5], %s212
          %215 = vsyncadd %s210, 0
          %s216 = smul.addr %s20, 8
          %s217 = scalar_lea.hbm %s1, %s216
          %s219 = sshll.u32 %s217, 4
          %s220 = int_to_ptr.hbm [resolvable:$true] %s219
          %s221 = sshll.u32 %s213, 4
          %s222 = int_to_ptr.vmem [resolvable:$true] %s221
          %224 = dma.hbm_to_vmem [thread:$0]  %s220, 128, %s222, %s210
        $region32: #{tpu_custom_call.1} parent=23 // pred_fallthru
          _
      $region24: #{tpu_custom_call.1} parent=5 // pred_fallthru
        _
      %p225 = scmp.le.s32.totalorder 1, %s20
      %p226 = scmp.lt.s32.totalorder %s20, 3
      %p227 = pnand %p225, %p226
      %p228 = pneg %p227
      // Predicated region
      $region33: #{tpu_custom_call.1} parent=5 // pred_check
        _
      $region34: #{tpu_custom_call.1} parent=5 // pred_check_branch
        %230 = sbr.rel (%p227) target = $region36
      $region35: #{tpu_custom_call.1} parent=5 // pred_region
        %s231 = ssub.s32 %s20, 1
        %s232 = sand.u32 %s33, 1
        %s233 = scalar_lea.sflag [#allocation3], %s232
        %s234 = sand.u32 %s33, 1
        %s235 = smul.addr %s234, 8
        %s236 = scalar_lea.vmem [#allocation2], %s235
        // Predicated region
        $region37: #{tpu_custom_call.1} parent=35 // pred_check
          %p237 = pneg %p46
        $region38: #{tpu_custom_call.1} parent=35 // pred_check_branch
          %239 = sbr.rel (%p237) target = $region40
        $region39: #{tpu_custom_call.1} parent=35 // pred_region
          %241 = dma.done %s233, 128
        $region40: #{tpu_custom_call.1} parent=35 // pred_fallthru
          _
        %s242 = sand.u32 %s25, 1
        %s243 = scalar_lea.sflag [#allocation6], %s242
        %s244 = sand.u32 %s59, 1
        %s245 = smul.addr %s244, 8
        %s246 = scalar_lea.vmem [#allocation5], %s245
        // Predicated region
        $region41: #{tpu_custom_call.1} parent=35 // pred_check
          %p247 = pneg %p72
        $region42: #{tpu_custom_call.1} parent=35 // pred_check_branch
          %249 = sbr.rel (%p247) target = $region44
        $region43: #{tpu_custom_call.1} parent=35 // pred_region
          %251 = dma.done %s243, 128
        $region44: #{tpu_custom_call.1} parent=35 // pred_fallthru
          _
        // Predicated region
        $region45: #{tpu_custom_call.1} parent=35 // pred_check
          %p252 = pneg %p93
        $region46: #{tpu_custom_call.1} parent=35 // pred_check_branch
          %254 = sbr.rel (%p252) target = $region48
        $region47: #{tpu_custom_call.1} parent=35 // pred_region
          %256 = dma.done [#allocation6], 5120
        $region48: #{tpu_custom_call.1} parent=35 // pred_fallthru
          _
        // Predicated region
        $region49: #{tpu_custom_call.1} parent=35 // pred_check
          %p257 = pneg %p114
        $region50: #{tpu_custom_call.1} parent=35 // pred_check_branch
          %259 = sbr.rel (%p257) target = $region52
        $region51: #{tpu_custom_call.1} parent=35 // pred_region
          %261 = dma.done [#allocation9], 256
        $region52: #{tpu_custom_call.1} parent=35 // pred_fallthru
          _
        %s262 = sand.u32 %s33, 1
        %s263 = scalar_lea.sflag [#allocation3], %s262
        %s264 = sand.u32 %s33, 1
        %s265 = smul.addr %s264, 8
        %s266 = scalar_lea.vmem [#allocation2], %s265
        %p267 = pneg %p46
        %p268 = pneg %p43
        %s269 = sand.u32 %s25, 1
        %s270 = scalar_lea.sflag [#allocation6], %s269
        %s271 = sand.u32 %s59, 1
        %s272 = smul.addr %s271, 8
        %s273 = scalar_lea.vmem [#allocation5], %s272
        %p274 = pneg %p72
        %p275 = pneg %p69
        %p276 = pneg %p93
        %p277 = pneg %p90
        %p278 = pneg %p114
        %p279 = pneg %p111
        %p280 = pneg %p140
        %p281 = pneg %p137
        %s282 = sand.u32 %s127, 1
        %s283 = scalar_lea.sflag [#allocation4], %s282
        %s284 = sand.u32 %s127, 1
        %s285 = smul.addr %s284, 8
        %s286 = scalar_lea.vmem [#allocation10], %s285
        %v287 = vld [vmem:[%s236] sm:$0xff]
        %v288 = vld [vmem:[%s246] sm:$0xff]
        %v289 = vld [vmem:[#allocation8] sm:$0xff]
        %v290 = vld [vmem:[#allocation8 + $0x8] sm:$0xff]
        %v291 = vlaneseq
        %v292 = vshrl.u32 %v291, 7
        %v293 = vlaneseq
        %v294 = vand.u32 %v293, 127
        %vm295 = vcmp.le.s32.totalorder %v294, %v292
        %v296 = vld [vmem:[#allocation7] sm:$0xff]
        %v297 = vld [vmem:[#allocation7 + $0x8] sm:$0xff]
        %v298 = vld [vmem:[#allocation7 + $0x10] sm:$0xff]
        %v299 = vld [vmem:[#allocation7 + $0x18] sm:$0xff]
        %v300 = vperm.slane %v289, 0
        %vm301 = vcmask 261120
        %v303 = vsel %vm301, %v287, 0
        %305 = vmatpush.msra.mxu0 0.0
        %306 = vmatpush.msra.mxu0 0.0
        %307 = vmatpush.msra.mxu0 0.0
        %308 = vmatpush.msra.mxu0 0.0
        %309 = vmatpush.msra.mxu0 0.0
        %310 = vmatpush.msra.mxu0 0.0
        %311 = vmatpush.msra.mxu0 0.0
        %312 = vmatpush.msra.mxu0 0.0
        %313 = vmatpush.msra.mxu0 0.0
        %314 = vmatpush.msra.mxu0 0.0
        %315 = vmatpush.msra.mxu0 0.0
        %316 = vmatpush.msra.mxu0 0.0
        %317 = vmatpush.msra.mxu0 %v299
        %318 = vmatpush.msra.mxu0 %v298
        %319 = vmatpush.msra.mxu0 %v297
        %320 = vmatpush.msra.mxu0 %v296
        %321 = vmatmul.f32.gmra.mxu0 %v303
        %v322 = vpop.f32.mrf.mxu0
        %v323 = vadd.f32 %v300, %v322
        %324 = vdwg.mxu0
        %s325 = scalar_lea.vmem [#allocation7], 32
        %v326 = vld [vmem:[%s325] sm:$0xff]
        %v327 = vld [vmem:[%s325 + $0x8] sm:$0xff]
        %v328 = vld [vmem:[%s325 + $0x10] sm:$0xff]
        %v329 = vld [vmem:[%s325 + $0x18] sm:$0xff]
        %v330 = vperm.slane %v289, 1
        %331 = vmatpush.msra.mxu0 0.0
        %332 = vmatpush.msra.mxu0 0.0
        %333 = vmatpush.msra.mxu0 0.0
        %334 = vmatpush.msra.mxu0 0.0
        %335 = vmatpush.msra.mxu0 0.0
        %336 = vmatpush.msra.mxu0 0.0
        %337 = vmatpush.msra.mxu0 0.0
        %338 = vmatpush.msra.mxu0 0.0
        %339 = vmatpush.msra.mxu0 0.0
        %340 = vmatpush.msra.mxu0 0.0
        %341 = vmatpush.msra.mxu0 0.0
        %342 = vmatpush.msra.mxu0 0.0
        %343 = vmatpush.msra.mxu0 %v329
        %344 = vmatpush.msra.mxu0 %v328
        %345 = vmatpush.msra.mxu0 %v327
        %346 = vmatpush.msra.mxu0 %v326
        %347 = vmatmul.f32.gmra.mxu0 %v303
        %v348 = vpop.f32.mrf.mxu0
        %v349 = vadd.f32 %v330, %v348
        %350 = vdwg.mxu0
        %v351 = vmul.f32 %v349, 0.35355338
        %s352 = scalar_lea.vmem [#allocation7], 64
        %v353 = vld [vmem:[%s352] sm:$0xff]
        %v354 = vld [vmem:[%s352 + $0x8] sm:$0xff]
        %v355 = vld [vmem:[%s352 + $0x10] sm:$0xff]
        %v356 = vld [vmem:[%s352 + $0x18] sm:$0xff]
        %v357 = vperm.slane %v289, 2
        %358 = vmatpush.msra.mxu0 0.0
        %359 = vmatpush.msra.mxu0 0.0
        %360 = vmatpush.msra.mxu0 0.0
        %361 = vmatpush.msra.mxu0 0.0
        %362 = vmatpush.msra.mxu0 0.0
        %363 = vmatpush.msra.mxu0 0.0
        %364 = vmatpush.msra.mxu0 0.0
        %365 = vmatpush.msra.mxu0 0.0
        %366 = vmatpush.msra.mxu0 0.0
        %367 = vmatpush.msra.mxu0 0.0
        %368 = vmatpush.msra.mxu0 0.0
        %369 = vmatpush.msra.mxu0 0.0
        %370 = vmatpush.msra.mxu0 %v356
        %371 = vmatpush.msra.mxu0 %v355
        %372 = vmatpush.msra.mxu0 %v354
        %373 = vmatpush.msra.mxu0 %v353
        %374 = vmatmul.f32.gmra.mxu0 %v303
        %v375 = vpop.f32.mrf.mxu0
        %v376 = vadd.f32 %v357, %v375
        %377 = vdwg.mxu0
        %379 = vrot.lane.b32.xlu0 %v351, 120
        %v380 = vpop.permute.xlu0 %379
        %381 = vrot.lane.b32.xlu0 %v351, 112
        %v382 = vpop.permute.xlu0 %381
        %383 = vrot.lane.b32.xlu0 %v351, 104
        %v384 = vpop.permute.xlu0 %383
        %386 = vrot.lane.b32.xlu0 %v323, 120
        %v387 = vpop.permute.xlu0 %386
        %388 = vrot.lane.b32.xlu0 %v323, 112
        %v389 = vpop.permute.xlu0 %388
        %390 = vrot.lane.b32.xlu0 %v323, 104
        %v391 = vpop.permute.xlu0 %390
        %393 = vrot.lane.b32.xlu0 %v376, 120
        %v394 = vpop.permute.xlu0 %393
        %396 = vrot.lane.b32.xlu0 %v376, 112
        %v397 = vpop.permute.xlu0 %396
        %399 = vrot.lane.b32.xlu0 %v376, 104
        %v400 = vpop.permute.xlu0 %399
        %vm402 = vcmask 64512
        %v403 = vsel %vm402, %v351, 0
        %v405 = vsel %vm402, %v323, 0
        %407 = vmatpush.xpose.msra.mxu0 0.0
        %408 = vmatpush.xpose.msra.mxu0 0.0
        %409 = vmatpush.xpose.msra.mxu0 0.0
        %410 = vmatpush.xpose.msra.mxu0 0.0
        %411 = vmatpush.xpose.msra.mxu0 0.0
        %412 = vmatpush.xpose.msra.mxu0 0.0
        %413 = vmatpush.xpose.msra.mxu0 0.0
        %414 = vmatpush.xpose.msra.mxu0 0.0
        %415 = vmatpush.xpose.msra.mxu0 0.0
        %416 = vmatpush.xpose.msra.mxu0 0.0
        %417 = vmatpush.xpose.msra.mxu0 0.0
        %418 = vmatpush.xpose.msra.mxu0 0.0
        %419 = vmatpush.xpose.msra.mxu0 0.0
        %420 = vmatpush.xpose.msra.mxu0 0.0
        %421 = vmatpush.xpose.msra.mxu0 0.0
        %422 = vmatpush.xpose.msra.mxu0 %v405
        %423 = vmatmul.f32.gmra.mxu0 %v403
        %v424 = vpop.f32.mrf.mxu0
        %v425 = vadd.f32 0.0, %v424
        %426 = vdwg.mxu0
        %v427 = vsel %vm402, %v380, 0
        %v429 = vsel %vm402, %v387, 0
        %431 = vmatpush.xpose.msra.mxu0 0.0
        %432 = vmatpush.xpose.msra.mxu0 0.0
        %433 = vmatpush.xpose.msra.mxu0 0.0
        %434 = vmatpush.xpose.msra.mxu0 0.0
        %435 = vmatpush.xpose.msra.mxu0 0.0
        %436 = vmatpush.xpose.msra.mxu0 0.0
        %437 = vmatpush.xpose.msra.mxu0 0.0
        %438 = vmatpush.xpose.msra.mxu0 0.0
        %439 = vmatpush.xpose.msra.mxu0 0.0
        %440 = vmatpush.xpose.msra.mxu0 0.0
        %441 = vmatpush.xpose.msra.mxu0 0.0
        %442 = vmatpush.xpose.msra.mxu0 0.0
        %443 = vmatpush.xpose.msra.mxu0 0.0
        %444 = vmatpush.xpose.msra.mxu0 0.0
        %445 = vmatpush.xpose.msra.mxu0 0.0
        %446 = vmatpush.xpose.msra.mxu0 %v429
        %447 = vmatmul.f32.gmra.mxu0 %v427
        %v448 = vpop.f32.mrf.mxu0
        %v449 = vadd.f32 0.0, %v448
        %450 = vdwg.mxu0
        %v451 = vsel %vm402, %v382, 0
        %v453 = vsel %vm402, %v389, 0
        %455 = vmatpush.xpose.msra.mxu0 0.0
        %456 = vmatpush.xpose.msra.mxu0 0.0
        %457 = vmatpush.xpose.msra.mxu0 0.0
        %458 = vmatpush.xpose.msra.mxu0 0.0
        %459 = vmatpush.xpose.msra.mxu0 0.0
        %460 = vmatpush.xpose.msra.mxu0 0.0
        %461 = vmatpush.xpose.msra.mxu0 0.0
        %462 = vmatpush.xpose.msra.mxu0 0.0
        %463 = vmatpush.xpose.msra.mxu0 0.0
        %464 = vmatpush.xpose.msra.mxu0 0.0
        %465 = vmatpush.xpose.msra.mxu0 0.0
        %466 = vmatpush.xpose.msra.mxu0 0.0
        %467 = vmatpush.xpose.msra.mxu0 0.0
        %468 = vmatpush.xpose.msra.mxu0 0.0
        %469 = vmatpush.xpose.msra.mxu0 0.0
        %470 = vmatpush.xpose.msra.mxu0 %v453
        %471 = vmatmul.f32.gmra.mxu0 %v451
        %v472 = vpop.f32.mrf.mxu0
        %v473 = vadd.f32 0.0, %v472
        %474 = vdwg.mxu0
        %v475 = vsel %vm402, %v384, 0
        %v477 = vsel %vm402, %v391, 0
        %479 = vmatpush.xpose.msra.mxu0 0.0
        %480 = vmatpush.xpose.msra.mxu0 0.0
        %481 = vmatpush.xpose.msra.mxu0 0.0
        %482 = vmatpush.xpose.msra.mxu0 0.0
        %483 = vmatpush.xpose.msra.mxu0 0.0
        %484 = vmatpush.xpose.msra.mxu0 0.0
        %485 = vmatpush.xpose.msra.mxu0 0.0
        %486 = vmatpush.xpose.msra.mxu0 0.0
        %487 = vmatpush.xpose.msra.mxu0 0.0
        %488 = vmatpush.xpose.msra.mxu0 0.0
        %489 = vmatpush.xpose.msra.mxu0 0.0
        %490 = vmatpush.xpose.msra.mxu0 0.0
        %491 = vmatpush.xpose.msra.mxu0 0.0
        %492 = vmatpush.xpose.msra.mxu0 0.0
        %493 = vmatpush.xpose.msra.mxu0 0.0
        %494 = vmatpush.xpose.msra.mxu0 %v477
        %495 = vmatmul.f32.gmra.mxu0 %v475
        %v496 = vpop.f32.mrf.mxu0
        %v497 = vadd.f32 0.0, %v496
        %498 = vdwg.mxu0
        %v499 = vsel %vm295, 1, 0
        %vm500 = vcmp.eq.s32.totalorder %v499, 1
        %v501 = vsel %vm500, %v425, -1e+30
        %v502 = vsel %vm500, %v449, -1e+30
        %v503 = vsel %vm500, %v473, -1e+30
        %v504 = vsel %vm500, %v497, -1e+30
        %v505 = vsel %vm402, %v501, -inf
        %506 = vmax.xlane.f32.xlu0 %v505
        %v507 = vpop.xlane.xlu0 %506
        %v508 = vsel %vm402, %v502, -inf
        %509 = vmax.xlane.f32.xlu0 %v508
        %v510 = vpop.xlane.xlu0 %509
        %v511 = vsel %vm402, %v503, -inf
        %512 = vmax.xlane.f32.xlu0 %v511
        %v513 = vpop.xlane.xlu0 %512
        %v514 = vsel %vm402, %v504, -inf
        %515 = vmax.xlane.f32.xlu0 %v514
        %v516 = vpop.xlane.xlu0 %515
        %v517 = vsub.f32 %v501, %v507
        %v518 = vsub.f32 %v502, %v510
        %v519 = vsub.f32 %v503, %v513
        %v520 = vsub.f32 %v504, %v516
        %v521 = vmul.f32 %v517, 1.442695
        %v522 = vpow.pop %v521
        %v523 = vmul.f32 %v518, 1.442695
        %v524 = vpow.pop %v523
        %v525 = vmul.f32 %v519, 1.442695
        %v526 = vpow.pop %v525
        %v527 = vmul.f32 %v520, 1.442695
        %v528 = vpow.pop %v527
        %v529 = vsel %vm402, %v522, 0.0
        %530 = vadd.xlane.f32.xlu0 %v529
        %v531 = vpop.xlane.xlu0 %530
        %v532 = vsel %vm402, %v524, 0.0
        %533 = vadd.xlane.f32.xlu0 %v532
        %v534 = vpop.xlane.xlu0 %533
        %v535 = vsel %vm402, %v526, 0.0
        %536 = vadd.xlane.f32.xlu0 %v535
        %v537 = vpop.xlane.xlu0 %536
        %v538 = vsel %vm402, %v528, 0.0
        %539 = vadd.xlane.f32.xlu0 %v538
        %v540 = vpop.xlane.xlu0 %539
        %v541 = vrcp.pop %v531
        %v542 = vmul.f32 %v531, %v541
        %v543 = vsub.f32 1.0, %v542
        %v544 = vmul.f32 %v541, %v543
        %v545 = vadd.f32 %v541, %v544
        %vm546 = vweird.f32 %v531
        %vm547 = vweird.f32 %v541
        %vm548 = vmor %vm546, %vm547
        %v549 = vsel %vm548, %v541, %v545
        %v550 = vand.u32 2147483647, %v531
        %vm551 = vcmp.eq.f32.partialorder %v550, 8.507059e+37
        %v552 = vand.u32 %v531, 2147483648
        %v553 = vor.u32 1.1754944e-38, %v552
        %v554 = vsel %vm551, %v553, %v549
        %v555 = vrcp.pop %v534
        %v556 = vmul.f32 %v534, %v555
        %v557 = vsub.f32 1.0, %v556
        %v558 = vmul.f32 %v555, %v557
        %v559 = vadd.f32 %v555, %v558
        %vm560 = vweird.f32 %v534
        %vm561 = vweird.f32 %v555
        %vm562 = vmor %vm560, %vm561
        %v563 = vsel %vm562, %v555, %v559
        %v564 = vand.u32 2147483647, %v534
        %vm565 = vcmp.eq.f32.partialorder %v564, 8.507059e+37
        %v566 = vand.u32 %v534, 2147483648
        %v567 = vor.u32 1.1754944e-38, %v566
        %v568 = vsel %vm565, %v567, %v563
        %v569 = vrcp.pop %v537
        %v570 = vmul.f32 %v537, %v569
        %v571 = vsub.f32 1.0, %v570
        %v572 = vmul.f32 %v569, %v571
        %v573 = vadd.f32 %v569, %v572
        %vm574 = vweird.f32 %v537
        %vm575 = vweird.f32 %v569
        %vm576 = vmor %vm574, %vm575
        %v577 = vsel %vm576, %v569, %v573
        %v578 = vand.u32 2147483647, %v537
        %vm579 = vcmp.eq.f32.partialorder %v578, 8.507059e+37
        %v580 = vand.u32 %v537, 2147483648
        %v581 = vor.u32 1.1754944e-38, %v580
        %v582 = vsel %vm579, %v581, %v577
        %v583 = vrcp.pop %v540
        %v584 = vmul.f32 %v540, %v583
        %v585 = vsub.f32 1.0, %v584
        %v586 = vmul.f32 %v583, %v585
        %v587 = vadd.f32 %v583, %v586
        %vm588 = vweird.f32 %v540
        %vm589 = vweird.f32 %v583
        %vm590 = vmor %vm588, %vm589
        %v591 = vsel %vm590, %v583, %v587
        %v592 = vand.u32 2147483647, %v540
        %vm593 = vcmp.eq.f32.partialorder %v592, 8.507059e+37
        %v594 = vand.u32 %v540, 2147483648
        %v595 = vor.u32 1.1754944e-38, %v594
        %v596 = vsel %vm593, %v595, %v591
        %v597 = vmul.f32 %v522, %v554
        %v598 = vmul.f32 %v524, %v568
        %v599 = vmul.f32 %v526, %v582
        %v600 = vmul.f32 %v528, %v596
        %v602 = vsel %vm402, %v597, 0
        %604 = vmatpush.msra.mxu0 0.0
        %605 = vmatpush.msra.mxu0 0.0
        %606 = vmatpush.msra.mxu0 0.0
        %607 = vmatpush.msra.mxu0 0.0
        %608 = vmatpush.msra.mxu0 0.0
        %609 = vmatpush.msra.mxu0 0.0
        %610 = vmatpush.msra.mxu0 0.0
        %611 = vmatpush.msra.mxu0 0.0
        %612 = vmatpush.msra.mxu0 0.0
        %613 = vmatpush.msra.mxu0 0.0
        %614 = vmatpush.msra.mxu0 0.0
        %615 = vmatpush.msra.mxu0 0.0
        %616 = vmatpush.msra.mxu0 0.0
        %617 = vmatpush.msra.mxu0 0.0
        %618 = vmatpush.msra.mxu0 0.0
        %619 = vmatpush.msra.mxu0 %v376
        %620 = vmatmul.f32.gmra.mxu0 %v602
        %v621 = vpop.f32.mrf.mxu0
        %v622 = vadd.f32 0.0, %v621
        %623 = vdwg.mxu0
        %v625 = vsel %vm402, %v598, 0
        %627 = vmatpush.msra.mxu0 0.0
        %628 = vmatpush.msra.mxu0 0.0
        %629 = vmatpush.msra.mxu0 0.0
        %630 = vmatpush.msra.mxu0 0.0
        %631 = vmatpush.msra.mxu0 0.0
        %632 = vmatpush.msra.mxu0 0.0
        %633 = vmatpush.msra.mxu0 0.0
        %634 = vmatpush.msra.mxu0 0.0
        %635 = vmatpush.msra.mxu0 0.0
        %636 = vmatpush.msra.mxu0 0.0
        %637 = vmatpush.msra.mxu0 0.0
        %638 = vmatpush.msra.mxu0 0.0
        %639 = vmatpush.msra.mxu0 0.0
        %640 = vmatpush.msra.mxu0 0.0
        %641 = vmatpush.msra.mxu0 0.0
        %642 = vmatpush.msra.mxu0 %v394
        %643 = vmatmul.f32.gmra.mxu0 %v625
        %v644 = vpop.f32.mrf.mxu0
        %v645 = vadd.f32 0.0, %v644
        %646 = vdwg.mxu0
        %v648 = vsel %vm402, %v599, 0
        %650 = vmatpush.msra.mxu0 0.0
        %651 = vmatpush.msra.mxu0 0.0
        %652 = vmatpush.msra.mxu0 0.0
        %653 = vmatpush.msra.mxu0 0.0
        %654 = vmatpush.msra.mxu0 0.0
        %655 = vmatpush.msra.mxu0 0.0
        %656 = vmatpush.msra.mxu0 0.0
        %657 = vmatpush.msra.mxu0 0.0
        %658 = vmatpush.msra.mxu0 0.0
        %659 = vmatpush.msra.mxu0 0.0
        %660 = vmatpush.msra.mxu0 0.0
        %661 = vmatpush.msra.mxu0 0.0
        %662 = vmatpush.msra.mxu0 0.0
        %663 = vmatpush.msra.mxu0 0.0
        %664 = vmatpush.msra.mxu0 0.0
        %665 = vmatpush.msra.mxu0 %v397
        %666 = vmatmul.f32.gmra.mxu0 %v648
        %v667 = vpop.f32.mrf.mxu0
        %v668 = vadd.f32 0.0, %v667
        %669 = vdwg.mxu0
        %v671 = vsel %vm402, %v600, 0
        %673 = vmatpush.msra.mxu0 0.0
        %674 = vmatpush.msra.mxu0 0.0
        %675 = vmatpush.msra.mxu0 0.0
        %676 = vmatpush.msra.mxu0 0.0
        %677 = vmatpush.msra.mxu0 0.0
        %678 = vmatpush.msra.mxu0 0.0
        %679 = vmatpush.msra.mxu0 0.0
        %680 = vmatpush.msra.mxu0 0.0
        %681 = vmatpush.msra.mxu0 0.0
        %682 = vmatpush.msra.mxu0 0.0
        %683 = vmatpush.msra.mxu0 0.0
        %684 = vmatpush.msra.mxu0 0.0
        %685 = vmatpush.msra.mxu0 0.0
        %686 = vmatpush.msra.mxu0 0.0
        %687 = vmatpush.msra.mxu0 0.0
        %688 = vmatpush.msra.mxu0 %v400
        %689 = vmatmul.f32.gmra.mxu0 %v671
        %v690 = vpop.f32.mrf.mxu0
        %v691 = vadd.f32 0.0, %v690
        %692 = vdwg.mxu0
        %694 = vrot.lane.b32.xlu0 %v645, 8
        %v695 = vpop.permute.xlu0 %694
        %698 = vrot.lane.b32.xlu0 %v668, 16
        %v699 = vpop.permute.xlu0 %698
        %702 = vrot.lane.b32.xlu0 %v691, 24
        %v703 = vpop.permute.xlu0 %702
        %v705 = vsel %vm402, %v622, %v695
        %vm706 = vcmask 130048
        %v707 = vsel %vm706, %v705, %v699
        %vm708 = vcmask 195584
        %v709 = vsel %vm708, %v707, %v703
        %s710 = scalar_lea.vmem [#allocation7], 96
        %v711 = vld [vmem:[%s710] sm:$0xff]
        %v712 = vld [vmem:[%s710 + $0x8] sm:$0xff]
        %v713 = vld [vmem:[%s710 + $0x10] sm:$0xff]
        %v714 = vld [vmem:[%s710 + $0x18] sm:$0xff]
        %v715 = vperm.slane %v289, 3
        %v717 = vsel %vm301, %v709, 0
        %719 = vmatpush.msra.mxu0 0.0
        %720 = vmatpush.msra.mxu0 0.0
        %721 = vmatpush.msra.mxu0 0.0
        %722 = vmatpush.msra.mxu0 0.0
        %723 = vmatpush.msra.mxu0 0.0
        %724 = vmatpush.msra.mxu0 0.0
        %725 = vmatpush.msra.mxu0 0.0
        %726 = vmatpush.msra.mxu0 0.0
        %727 = vmatpush.msra.mxu0 0.0
        %728 = vmatpush.msra.mxu0 0.0
        %729 = vmatpush.msra.mxu0 0.0
        %730 = vmatpush.msra.mxu0 0.0
        %731 = vmatpush.msra.mxu0 %v714
        %732 = vmatpush.msra.mxu0 %v713
        %733 = vmatpush.msra.mxu0 %v712
        %734 = vmatpush.msra.mxu0 %v711
        %735 = vmatmul.f32.gmra.mxu0 %v717
        %v736 = vpop.f32.mrf.mxu0
        %v737 = vadd.f32 %v715, %v736
        %738 = vdwg.mxu0
        %v739 = vadd.f32 %v287, %v737
        %v740 = vsel %vm301, %v739, 0.0
        %741 = vadd.xlane.f32.xlu0 %v740
        %v742 = vpop.xlane.xlu0 %741
        %v743 = vrcp.pop 32.0
        %v744 = vmul.f32 32.0, %v743
        %v745 = vsub.f32 1.0, %v744
        %v746 = vmul.f32 %v743, %v745
        %v747 = vadd.f32 %v743, %v746
        %vm748 = vweird.f32 %v743
        %v749 = vsel %vm748, %v743, %v747
        %v750 = vmul.f32 %v742, %v749
        %v751 = vsub.f32 %v739, %v750
        %v752 = vmul.f32 %v751, %v751
        %v753 = vsel %vm301, %v752, 0.0
        %754 = vadd.xlane.f32.xlu0 %v753
        %v755 = vpop.xlane.xlu0 %754
        %v756 = vmul.f32 %v755, %v749
        %v757 = vadd.f32 %v756, 1e-05
        %v758 = vrsqrt.pop %v757
        %v759 = vmul.f32 %v758, %v757
        %v760 = vmul.f32 %v759, %v758
        %v761 = vmul.f32 0.5, %v760
        %v762 = vsub.f32 1.5, %v761
        %v763 = vmul.f32 %v758, %v762
        %vm764 = vweird.f32 %v757
        %vm765 = vweird.f32 %v758
        %vm766 = vmor %vm764, %vm765
        %v767 = vsel %vm766, %v758, %v763
        %v768 = vmul.f32 %v751, %v767
        %v769 = vperm.slane %v289, 4
        %v770 = vmul.f32 %v768, %v769
        %v771 = vperm.slane %v289, 5
        %v772 = vadd.f32 %v770, %v771
        %s773 = scalar_lea.vmem [#allocation7], 128
        %v774 = vld [vmem:[%s773] sm:$0xff]
        %v775 = vld [vmem:[%s773 + $0x8] sm:$0xff]
        %v776 = vld [vmem:[%s773 + $0x10] sm:$0xff]
        %v777 = vld [vmem:[%s773 + $0x18] sm:$0xff]
        %v778 = vperm.slane %v289, 6
        %v780 = vsel %vm301, %v772, 0
        %782 = vmatpush.msra.mxu0 0.0
        %783 = vmatpush.msra.mxu0 0.0
        %784 = vmatpush.msra.mxu0 0.0
        %785 = vmatpush.msra.mxu0 0.0
        %786 = vmatpush.msra.mxu0 0.0
        %787 = vmatpush.msra.mxu0 0.0
        %788 = vmatpush.msra.mxu0 0.0
        %789 = vmatpush.msra.mxu0 0.0
        %790 = vmatpush.msra.mxu0 0.0
        %791 = vmatpush.msra.mxu0 0.0
        %792 = vmatpush.msra.mxu0 0.0
        %793 = vmatpush.msra.mxu0 0.0
        %794 = vmatpush.msra.mxu0 %v777
        %795 = vmatpush.msra.mxu0 %v776
        %796 = vmatpush.msra.mxu0 %v775
        %797 = vmatpush.msra.mxu0 %v774
        %798 = vmatmul.f32.gmra.mxu0 %v780
        %v799 = vpop.f32.mrf.mxu0
        %v800 = vadd.f32 %v778, %v799
        %801 = vdwg.mxu0
        %s802 = scalar_lea.vmem [#allocation7], 160
        %v803 = vld [vmem:[%s802] sm:$0xff]
        %v804 = vld [vmem:[%s802 + $0x8] sm:$0xff]
        %v805 = vld [vmem:[%s802 + $0x10] sm:$0xff]
        %v806 = vld [vmem:[%s802 + $0x18] sm:$0xff]
        %v807 = vperm.slane %v289, 7
        %v809 = vsel %vm301, %v288, 0
        %811 = vmatpush.msra.mxu0 0.0
        %812 = vmatpush.msra.mxu0 0.0
        %813 = vmatpush.msra.mxu0 0.0
        %814 = vmatpush.msra.mxu0 0.0
        %815 = vmatpush.msra.mxu0 0.0
        %816 = vmatpush.msra.mxu0 0.0
        %817 = vmatpush.msra.mxu0 0.0
        %818 = vmatpush.msra.mxu0 0.0
        %819 = vmatpush.msra.mxu0 0.0
        %820 = vmatpush.msra.mxu0 0.0
        %821 = vmatpush.msra.mxu0 0.0
        %822 = vmatpush.msra.mxu0 0.0
        %823 = vmatpush.msra.mxu0 %v806
        %824 = vmatpush.msra.mxu0 %v805
        %825 = vmatpush.msra.mxu0 %v804
        %826 = vmatpush.msra.mxu0 %v803
        %827 = vmatmul.f32.gmra.mxu0 %v809
        %v828 = vpop.f32.mrf.mxu0
        %v829 = vadd.f32 %v807, %v828
        %830 = vdwg.mxu0
        %v831 = vmul.f32 %v829, 0.35355338
        %s832 = scalar_lea.vmem [#allocation7], 192
        %v833 = vld [vmem:[%s832] sm:$0xff]
        %v834 = vld [vmem:[%s832 + $0x8] sm:$0xff]
        %v835 = vld [vmem:[%s832 + $0x10] sm:$0xff]
        %v836 = vld [vmem:[%s832 + $0x18] sm:$0xff]
        %v837 = vperm.slane %v290, 0
        %838 = vmatpush.msra.mxu0 0.0
        %839 = vmatpush.msra.mxu0 0.0
        %840 = vmatpush.msra.mxu0 0.0
        %841 = vmatpush.msra.mxu0 0.0
        %842 = vmatpush.msra.mxu0 0.0
        %843 = vmatpush.msra.mxu0 0.0
        %844 = vmatpush.msra.mxu0 0.0
        %845 = vmatpush.msra.mxu0 0.0
        %846 = vmatpush.msra.mxu0 0.0
        %847 = vmatpush.msra.mxu0 0.0
        %848 = vmatpush.msra.mxu0 0.0
        %849 = vmatpush.msra.mxu0 0.0
        %850 = vmatpush.msra.mxu0 %v836
        %851 = vmatpush.msra.mxu0 %v835
        %852 = vmatpush.msra.mxu0 %v834
        %853 = vmatpush.msra.mxu0 %v833
        %854 = vmatmul.f32.gmra.mxu0 %v780
        %v855 = vpop.f32.mrf.mxu0
        %v856 = vadd.f32 %v837, %v855
        %857 = vdwg.mxu0
        %859 = vrot.lane.b32.xlu0 %v831, 120
        %v860 = vpop.permute.xlu0 %859
        %861 = vrot.lane.b32.xlu0 %v831, 112
        %v862 = vpop.permute.xlu0 %861
        %863 = vrot.lane.b32.xlu0 %v831, 104
        %v864 = vpop.permute.xlu0 %863
        %866 = vrot.lane.b32.xlu0 %v800, 120
        %v867 = vpop.permute.xlu0 %866
        %868 = vrot.lane.b32.xlu0 %v800, 112
        %v869 = vpop.permute.xlu0 %868
        %870 = vrot.lane.b32.xlu0 %v800, 104
        %v871 = vpop.permute.xlu0 %870
        %873 = vrot.lane.b32.xlu0 %v856, 120
        %v874 = vpop.permute.xlu0 %873
        %876 = vrot.lane.b32.xlu0 %v856, 112
        %v877 = vpop.permute.xlu0 %876
        %879 = vrot.lane.b32.xlu0 %v856, 104
        %v880 = vpop.permute.xlu0 %879
        %v882 = vsel %vm402, %v831, 0
        %v884 = vsel %vm402, %v800, 0
        %886 = vmatpush.xpose.msra.mxu0 0.0
        %887 = vmatpush.xpose.msra.mxu0 0.0
        %888 = vmatpush.xpose.msra.mxu0 0.0
        %889 = vmatpush.xpose.msra.mxu0 0.0
        %890 = vmatpush.xpose.msra.mxu0 0.0
        %891 = vmatpush.xpose.msra.mxu0 0.0
        %892 = vmatpush.xpose.msra.mxu0 0.0
        %893 = vmatpush.xpose.msra.mxu0 0.0
        %894 = vmatpush.xpose.msra.mxu0 0.0
        %895 = vmatpush.xpose.msra.mxu0 0.0
        %896 = vmatpush.xpose.msra.mxu0 0.0
        %897 = vmatpush.xpose.msra.mxu0 0.0
        %898 = vmatpush.xpose.msra.mxu0 0.0
        %899 = vmatpush.xpose.msra.mxu0 0.0
        %900 = vmatpush.xpose.msra.mxu0 0.0
        %901 = vmatpush.xpose.msra.mxu0 %v884
        %902 = vmatmul.f32.gmra.mxu0 %v882
        %v903 = vpop.f32.mrf.mxu0
        %v904 = vadd.f32 0.0, %v903
        %905 = vdwg.mxu0
        %v906 = vsel %vm402, %v860, 0
        %v908 = vsel %vm402, %v867, 0
        %910 = vmatpush.xpose.msra.mxu0 0.0
        %911 = vmatpush.xpose.msra.mxu0 0.0
        %912 = vmatpush.xpose.msra.mxu0 0.0
        %913 = vmatpush.xpose.msra.mxu0 0.0
        %914 = vmatpush.xpose.msra.mxu0 0.0
        %915 = vmatpush.xpose.msra.mxu0 0.0
        %916 = vmatpush.xpose.msra.mxu0 0.0
        %917 = vmatpush.xpose.msra.mxu0 0.0
        %918 = vmatpush.xpose.msra.mxu0 0.0
        %919 = vmatpush.xpose.msra.mxu0 0.0
        %920 = vmatpush.xpose.msra.mxu0 0.0
        %921 = vmatpush.xpose.msra.mxu0 0.0
        %922 = vmatpush.xpose.msra.mxu0 0.0
        %923 = vmatpush.xpose.msra.mxu0 0.0
        %924 = vmatpush.xpose.msra.mxu0 0.0
        %925 = vmatpush.xpose.msra.mxu0 %v908
        %926 = vmatmul.f32.gmra.mxu0 %v906
        %v927 = vpop.f32.mrf.mxu0
        %v928 = vadd.f32 0.0, %v927
        %929 = vdwg.mxu0
        %v930 = vsel %vm402, %v862, 0
        %v932 = vsel %vm402, %v869, 0
        %934 = vmatpush.xpose.msra.mxu0 0.0
        %935 = vmatpush.xpose.msra.mxu0 0.0
        %936 = vmatpush.xpose.msra.mxu0 0.0
        %937 = vmatpush.xpose.msra.mxu0 0.0
        %938 = vmatpush.xpose.msra.mxu0 0.0
        %939 = vmatpush.xpose.msra.mxu0 0.0
        %940 = vmatpush.xpose.msra.mxu0 0.0
        %941 = vmatpush.xpose.msra.mxu0 0.0
        %942 = vmatpush.xpose.msra.mxu0 0.0
        %943 = vmatpush.xpose.msra.mxu0 0.0
        %944 = vmatpush.xpose.msra.mxu0 0.0
        %945 = vmatpush.xpose.msra.mxu0 0.0
        %946 = vmatpush.xpose.msra.mxu0 0.0
        %947 = vmatpush.xpose.msra.mxu0 0.0
        %948 = vmatpush.xpose.msra.mxu0 0.0
        %949 = vmatpush.xpose.msra.mxu0 %v932
        %950 = vmatmul.f32.gmra.mxu0 %v930
        %v951 = vpop.f32.mrf.mxu0
        %v952 = vadd.f32 0.0, %v951
        %953 = vdwg.mxu0
        %v954 = vsel %vm402, %v864, 0
        %v956 = vsel %vm402, %v871, 0
        %958 = vmatpush.xpose.msra.mxu0 0.0
        %959 = vmatpush.xpose.msra.mxu0 0.0
        %960 = vmatpush.xpose.msra.mxu0 0.0
        %961 = vmatpush.xpose.msra.mxu0 0.0
        %962 = vmatpush.xpose.msra.mxu0 0.0
        %963 = vmatpush.xpose.msra.mxu0 0.0
        %964 = vmatpush.xpose.msra.mxu0 0.0
        %965 = vmatpush.xpose.msra.mxu0 0.0
        %966 = vmatpush.xpose.msra.mxu0 0.0
        %967 = vmatpush.xpose.msra.mxu0 0.0
        %968 = vmatpush.xpose.msra.mxu0 0.0
        %969 = vmatpush.xpose.msra.mxu0 0.0
        %970 = vmatpush.xpose.msra.mxu0 0.0
        %971 = vmatpush.xpose.msra.mxu0 0.0
        %972 = vmatpush.xpose.msra.mxu0 0.0
        %973 = vmatpush.xpose.msra.mxu0 %v956
        %974 = vmatmul.f32.gmra.mxu0 %v954
        %v975 = vpop.f32.mrf.mxu0
        %v976 = vadd.f32 0.0, %v975
        %977 = vdwg.mxu0
        %v978 = vsel %vm500, %v904, -1e+30
        %v979 = vsel %vm500, %v928, -1e+30
        %v980 = vsel %vm500, %v952, -1e+30
        %v981 = vsel %vm500, %v976, -1e+30
        %v982 = vsel %vm402, %v978, -inf
        %983 = vmax.xlane.f32.xlu0 %v982
        %v984 = vpop.xlane.xlu0 %983
        %v985 = vsel %vm402, %v979, -inf
        %986 = vmax.xlane.f32.xlu0 %v985
        %v987 = vpop.xlane.xlu0 %986
        %v988 = vsel %vm402, %v980, -inf
        %989 = vmax.xlane.f32.xlu0 %v988
        %v990 = vpop.xlane.xlu0 %989
        %v991 = vsel %vm402, %v981, -inf
        %992 = vmax.xlane.f32.xlu0 %v991
        %v993 = vpop.xlane.xlu0 %992
        %v994 = vsub.f32 %v978, %v984
        %v995 = vsub.f32 %v979, %v987
        %v996 = vsub.f32 %v980, %v990
        %v997 = vsub.f32 %v981, %v993
        %v998 = vmul.f32 %v994, 1.442695
        %v999 = vpow.pop %v998
        %v1000 = vmul.f32 %v995, 1.442695
        %v1001 = vpow.pop %v1000
        %v1002 = vmul.f32 %v996, 1.442695
        %v1003 = vpow.pop %v1002
        %v1004 = vmul.f32 %v997, 1.442695
        %v1005 = vpow.pop %v1004
        %v1006 = vsel %vm402, %v999, 0.0
        %1007 = vadd.xlane.f32.xlu0 %v1006
        %v1008 = vpop.xlane.xlu0 %1007
        %v1009 = vsel %vm402, %v1001, 0.0
        %1010 = vadd.xlane.f32.xlu0 %v1009
        %v1011 = vpop.xlane.xlu0 %1010
        %v1012 = vsel %vm402, %v1003, 0.0
        %1013 = vadd.xlane.f32.xlu0 %v1012
        %v1014 = vpop.xlane.xlu0 %1013
        %v1015 = vsel %vm402, %v1005, 0.0
        %1016 = vadd.xlane.f32.xlu0 %v1015
        %v1017 = vpop.xlane.xlu0 %1016
        %v1018 = vrcp.pop %v1008
        %v1019 = vmul.f32 %v1008, %v1018
        %v1020 = vsub.f32 1.0, %v1019
        %v1021 = vmul.f32 %v1018, %v1020
        %v1022 = vadd.f32 %v1018, %v1021
        %vm1023 = vweird.f32 %v1008
        %vm1024 = vweird.f32 %v1018
        %vm1025 = vmor %vm1023, %vm1024
        %v1026 = vsel %vm1025, %v1018, %v1022
        %v1027 = vand.u32 2147483647, %v1008
        %vm1028 = vcmp.eq.f32.partialorder %v1027, 8.507059e+37
        %v1029 = vand.u32 %v1008, 2147483648
        %v1030 = vor.u32 1.1754944e-38, %v1029
        %v1031 = vsel %vm1028, %v1030, %v1026
        %v1032 = vrcp.pop %v1011
        %v1033 = vmul.f32 %v1011, %v1032
        %v1034 = vsub.f32 1.0, %v1033
        %v1035 = vmul.f32 %v1032, %v1034
        %v1036 = vadd.f32 %v1032, %v1035
        %vm1037 = vweird.f32 %v1011
        %vm1038 = vweird.f32 %v1032
        %vm1039 = vmor %vm1037, %vm1038
        %v1040 = vsel %vm1039, %v1032, %v1036
        %v1041 = vand.u32 2147483647, %v1011
        %vm1042 = vcmp.eq.f32.partialorder %v1041, 8.507059e+37
        %v1043 = vand.u32 %v1011, 2147483648
        %v1044 = vor.u32 1.1754944e-38, %v1043
        %v1045 = vsel %vm1042, %v1044, %v1040
        %v1046 = vrcp.pop %v1014
        %v1047 = vmul.f32 %v1014, %v1046
        %v1048 = vsub.f32 1.0, %v1047
        %v1049 = vmul.f32 %v1046, %v1048
        %v1050 = vadd.f32 %v1046, %v1049
        %vm1051 = vweird.f32 %v1014
        %vm1052 = vweird.f32 %v1046
        %vm1053 = vmor %vm1051, %vm1052
        %v1054 = vsel %vm1053, %v1046, %v1050
        %v1055 = vand.u32 2147483647, %v1014
        %vm1056 = vcmp.eq.f32.partialorder %v1055, 8.507059e+37
        %v1057 = vand.u32 %v1014, 2147483648
        %v1058 = vor.u32 1.1754944e-38, %v1057
        %v1059 = vsel %vm1056, %v1058, %v1054
        %v1060 = vrcp.pop %v1017
        %v1061 = vmul.f32 %v1017, %v1060
        %v1062 = vsub.f32 1.0, %v1061
        %v1063 = vmul.f32 %v1060, %v1062
        %v1064 = vadd.f32 %v1060, %v1063
        %vm1065 = vweird.f32 %v1017
        %vm1066 = vweird.f32 %v1060
        %vm1067 = vmor %vm1065, %vm1066
        %v1068 = vsel %vm1067, %v1060, %v1064
        %v1069 = vand.u32 2147483647, %v1017
        %vm1070 = vcmp.eq.f32.partialorder %v1069, 8.507059e+37
        %v1071 = vand.u32 %v1017, 2147483648
        %v1072 = vor.u32 1.1754944e-38, %v1071
        %v1073 = vsel %vm1070, %v1072, %v1068
        %v1074 = vmul.f32 %v999, %v1031
        %v1075 = vmul.f32 %v1001, %v1045
        %v1076 = vmul.f32 %v1003, %v1059
        %v1077 = vmul.f32 %v1005, %v1073
        %v1079 = vsel %vm402, %v1074, 0
        %1081 = vmatpush.msra.mxu0 0.0
        %1082 = vmatpush.msra.mxu0 0.0
        %1083 = vmatpush.msra.mxu0 0.0
        %1084 = vmatpush.msra.mxu0 0.0
        %1085 = vmatpush.msra.mxu0 0.0
        %1086 = vmatpush.msra.mxu0 0.0
        %1087 = vmatpush.msra.mxu0 0.0
        %1088 = vmatpush.msra.mxu0 0.0
        %1089 = vmatpush.msra.mxu0 0.0
        %1090 = vmatpush.msra.mxu0 0.0
        %1091 = vmatpush.msra.mxu0 0.0
        %1092 = vmatpush.msra.mxu0 0.0
        %1093 = vmatpush.msra.mxu0 0.0
        %1094 = vmatpush.msra.mxu0 0.0
        %1095 = vmatpush.msra.mxu0 0.0
        %1096 = vmatpush.msra.mxu0 %v856
        %1097 = vmatmul.f32.gmra.mxu0 %v1079
        %v1098 = vpop.f32.mrf.mxu0
        %v1099 = vadd.f32 0.0, %v1098
        %1100 = vdwg.mxu0
        %v1102 = vsel %vm402, %v1075, 0
        %1104 = vmatpush.msra.mxu0 0.0
        %1105 = vmatpush.msra.mxu0 0.0
        %1106 = vmatpush.msra.mxu0 0.0
        %1107 = vmatpush.msra.mxu0 0.0
        %1108 = vmatpush.msra.mxu0 0.0
        %1109 = vmatpush.msra.mxu0 0.0
        %1110 = vmatpush.msra.mxu0 0.0
        %1111 = vmatpush.msra.mxu0 0.0
        %1112 = vmatpush.msra.mxu0 0.0
        %1113 = vmatpush.msra.mxu0 0.0
        %1114 = vmatpush.msra.mxu0 0.0
        %1115 = vmatpush.msra.mxu0 0.0
        %1116 = vmatpush.msra.mxu0 0.0
        %1117 = vmatpush.msra.mxu0 0.0
        %1118 = vmatpush.msra.mxu0 0.0
        %1119 = vmatpush.msra.mxu0 %v874
        %1120 = vmatmul.f32.gmra.mxu0 %v1102
        %v1121 = vpop.f32.mrf.mxu0
        %v1122 = vadd.f32 0.0, %v1121
        %1123 = vdwg.mxu0
        %v1125 = vsel %vm402, %v1076, 0
        %1127 = vmatpush.msra.mxu0 0.0
        %1128 = vmatpush.msra.mxu0 0.0
        %1129 = vmatpush.msra.mxu0 0.0
        %1130 = vmatpush.msra.mxu0 0.0
        %1131 = vmatpush.msra.mxu0 0.0
        %1132 = vmatpush.msra.mxu0 0.0
        %1133 = vmatpush.msra.mxu0 0.0
        %1134 = vmatpush.msra.mxu0 0.0
        %1135 = vmatpush.msra.mxu0 0.0
        %1136 = vmatpush.msra.mxu0 0.0
        %1137 = vmatpush.msra.mxu0 0.0
        %1138 = vmatpush.msra.mxu0 0.0
        %1139 = vmatpush.msra.mxu0 0.0
        %1140 = vmatpush.msra.mxu0 0.0
        %1141 = vmatpush.msra.mxu0 0.0
        %1142 = vmatpush.msra.mxu0 %v877
        %1143 = vmatmul.f32.gmra.mxu0 %v1125
        %v1144 = vpop.f32.mrf.mxu0
        %v1145 = vadd.f32 0.0, %v1144
        %1146 = vdwg.mxu0
        %v1148 = vsel %vm402, %v1077, 0
        %1150 = vmatpush.msra.mxu0 0.0
        %1151 = vmatpush.msra.mxu0 0.0
        %1152 = vmatpush.msra.mxu0 0.0
        %1153 = vmatpush.msra.mxu0 0.0
        %1154 = vmatpush.msra.mxu0 0.0
        %1155 = vmatpush.msra.mxu0 0.0
        %1156 = vmatpush.msra.mxu0 0.0
        %1157 = vmatpush.msra.mxu0 0.0
        %1158 = vmatpush.msra.mxu0 0.0
        %1159 = vmatpush.msra.mxu0 0.0
        %1160 = vmatpush.msra.mxu0 0.0
        %1161 = vmatpush.msra.mxu0 0.0
        %1162 = vmatpush.msra.mxu0 0.0
        %1163 = vmatpush.msra.mxu0 0.0
        %1164 = vmatpush.msra.mxu0 0.0
        %1165 = vmatpush.msra.mxu0 %v880
        %1166 = vmatmul.f32.gmra.mxu0 %v1148
        %v1167 = vpop.f32.mrf.mxu0
        %v1168 = vadd.f32 0.0, %v1167
        %1169 = vdwg.mxu0
        %1171 = vrot.lane.b32.xlu0 %v1122, 8
        %v1172 = vpop.permute.xlu0 %1171
        %1175 = vrot.lane.b32.xlu0 %v1145, 16
        %v1176 = vpop.permute.xlu0 %1175
        %1179 = vrot.lane.b32.xlu0 %v1168, 24
        %v1180 = vpop.permute.xlu0 %1179
        %v1182 = vsel %vm402, %v1099, %v1172
        %v1183 = vsel %vm706, %v1182, %v1176
        %v1184 = vsel %vm708, %v1183, %v1180
        %s1185 = scalar_lea.vmem [#allocation7], 224
        %v1186 = vld [vmem:[%s1185] sm:$0xff]
        %v1187 = vld [vmem:[%s1185 + $0x8] sm:$0xff]
        %v1188 = vld [vmem:[%s1185 + $0x10] sm:$0xff]
        %v1189 = vld [vmem:[%s1185 + $0x18] sm:$0xff]
        %v1190 = vperm.slane %v290, 1
        %v1192 = vsel %vm301, %v1184, 0
        %1194 = vmatpush.msra.mxu0 0.0
        %1195 = vmatpush.msra.mxu0 0.0
        %1196 = vmatpush.msra.mxu0 0.0
        %1197 = vmatpush.msra.mxu0 0.0
        %1198 = vmatpush.msra.mxu0 0.0
        %1199 = vmatpush.msra.mxu0 0.0
        %1200 = vmatpush.msra.mxu0 0.0
        %1201 = vmatpush.msra.mxu0 0.0
        %1202 = vmatpush.msra.mxu0 0.0
        %1203 = vmatpush.msra.mxu0 0.0
        %1204 = vmatpush.msra.mxu0 0.0
        %1205 = vmatpush.msra.mxu0 0.0
        %1206 = vmatpush.msra.mxu0 %v1189
        %1207 = vmatpush.msra.mxu0 %v1188
        %1208 = vmatpush.msra.mxu0 %v1187
        %1209 = vmatpush.msra.mxu0 %v1186
        %1210 = vmatmul.f32.gmra.mxu0 %v1192
        %v1211 = vpop.f32.mrf.mxu0
        %v1212 = vadd.f32 %v1190, %v1211
        %1213 = vdwg.mxu0
        %v1214 = vadd.f32 %v288, %v1212
        %v1215 = vsel %vm301, %v1214, 0.0
        %1216 = vadd.xlane.f32.xlu0 %v1215
        %v1217 = vpop.xlane.xlu0 %1216
        %v1218 = vmul.f32 %v1217, %v749
        %v1219 = vsub.f32 %v1214, %v1218
        %v1220 = vmul.f32 %v1219, %v1219
        %v1221 = vsel %vm301, %v1220, 0.0
        %1222 = vadd.xlane.f32.xlu0 %v1221
        %v1223 = vpop.xlane.xlu0 %1222
        %v1224 = vmul.f32 %v1223, %v749
        %v1225 = vadd.f32 %v1224, 1e-05
        %v1226 = vrsqrt.pop %v1225
        %v1227 = vmul.f32 %v1226, %v1225
        %v1228 = vmul.f32 %v1227, %v1226
        %v1229 = vmul.f32 0.5, %v1228
        %v1230 = vsub.f32 1.5, %v1229
        %v1231 = vmul.f32 %v1226, %v1230
        %vm1232 = vweird.f32 %v1225
        %vm1233 = vweird.f32 %v1226
        %vm1234 = vmor %vm1232, %vm1233
        %v1235 = vsel %vm1234, %v1226, %v1231
        %v1236 = vmul.f32 %v1219, %v1235
        %v1237 = vperm.slane %v290, 2
        %v1238 = vmul.f32 %v1236, %v1237
        %v1239 = vperm.slane %v290, 3
        %v1240 = vadd.f32 %v1238, %v1239
        %s1241 = scalar_lea.vmem [#allocation7], 256
        %v1242 = vld [vmem:[%s1241] sm:$0xff]
        %v1243 = vld [vmem:[%s1241 + $0x8] sm:$0xff]
        %v1244 = vld [vmem:[%s1241 + $0x10] sm:$0xff]
        %v1245 = vld [vmem:[%s1241 + $0x18] sm:$0xff]
        %v1246 = vperm.slane %v290, 4
        %v1248 = vsel %vm301, %v1240, 0
        %1250 = vmatpush.msra.mxu0 0.0
        %1251 = vmatpush.msra.mxu0 0.0
        %1252 = vmatpush.msra.mxu0 0.0
        %1253 = vmatpush.msra.mxu0 0.0
        %1254 = vmatpush.msra.mxu0 0.0
        %1255 = vmatpush.msra.mxu0 0.0
        %1256 = vmatpush.msra.mxu0 0.0
        %1257 = vmatpush.msra.mxu0 0.0
        %1258 = vmatpush.msra.mxu0 0.0
        %1259 = vmatpush.msra.mxu0 0.0
        %1260 = vmatpush.msra.mxu0 0.0
        %1261 = vmatpush.msra.mxu0 0.0
        %1262 = vmatpush.msra.mxu0 %v1245
        %1263 = vmatpush.msra.mxu0 %v1244
        %1264 = vmatpush.msra.mxu0 %v1243
        %1265 = vmatpush.msra.mxu0 %v1242
        %1266 = vmatmul.f32.gmra.mxu0 %v1248
        %v1267 = vpop.f32.mrf.mxu0
        %v1268 = vadd.f32 %v1246, %v1267
        %1269 = vdwg.mxu0
        %v1270 = vmul.f32 %v1268, 0.5
        %v1271 = vmul.f32 %v1268, 0.70710677
        %v1272 = vmul.f32 %v1271, %v1271
        %v1273 = vmin.f32 16.0, %v1272
        %v1274 = vmul.f32 %v1273, 2.1237322e-06
        %v1275 = vadd.f32 %v1274, 0.00028619796
        %v1276 = vmul.f32 %v1273, %v1275
        %v1277 = vadd.f32 %v1276, 0.0036580483
        %v1278 = vmul.f32 %v1273, %v1277
        %v1279 = vadd.f32 %v1278, 0.05243302
        %v1280 = vmul.f32 %v1273, %v1279
        %v1281 = vadd.f32 %v1280, 0.18741608
        %v1282 = vmul.f32 %v1273, %v1281
        %v1283 = vadd.f32 %v1282, 1.1283791
        %v1284 = vmul.f32 %v1271, %v1283
        %v1285 = vmul.f32 %v1273, 3.8918573e-05
        %v1286 = vadd.f32 %v1285, 0.001143296
        %v1287 = vmul.f32 %v1273, %v1286
        %v1288 = vadd.f32 %v1287, 0.014752088
        %v1289 = vmul.f32 %v1273, %v1288
        %v1290 = vadd.f32 %v1289, 0.112945676
        %v1291 = vmul.f32 %v1273, %v1290
        %v1292 = vadd.f32 %v1291, 0.4994258
        %v1293 = vmul.f32 %v1273, %v1292
        %v1294 = vadd.f32 %v1293, 1.0
        %v1295 = vrcp.pop %v1294
        %v1296 = vmul.f32 %v1294, %v1295
        %v1297 = vsub.f32 1.0, %v1296
        %v1298 = vmul.f32 %v1295, %v1297
        %v1299 = vadd.f32 %v1295, %v1298
        %vm1300 = vweird.f32 %v1294
        %vm1301 = vweird.f32 %v1295
        %vm1302 = vmor %vm1300, %vm1301
        %v1303 = vsel %vm1302, %v1295, %v1299
        %v1304 = vand.u32 2147483647, %v1294
        %vm1305 = vcmp.eq.f32.partialorder %v1304, 8.507059e+37
        %v1306 = vand.u32 %v1294, 2147483648
        %v1307 = vor.u32 1.1754944e-38, %v1306
        %v1308 = vsel %vm1305, %v1307, %v1303
        %v1309 = vmul.f32 %v1284, %v1308
        %v1310 = vmin.f32 %v1309, 1.0
        %v1311 = vmax.f32 %v1310, -1.0
        %v1312 = vadd.f32 %v1311, 1.0
        %v1313 = vmul.f32 %v1270, %v1312
        %s1314 = scalar_lea.vmem [#allocation7], 288
        %v1315 = vld [vmem:[%s1314] sm:$0xff]
        %v1316 = vld [vmem:[%s1314 + $0x8] sm:$0xff]
        %v1317 = vld [vmem:[%s1314 + $0x10] sm:$0xff]
        %v1318 = vld [vmem:[%s1314 + $0x18] sm:$0xff]
        %v1319 = vperm.slane %v290, 5
        %v1321 = vsel %vm301, %v1313, 0
        %1323 = vmatpush.msra.mxu0 0.0
        %1324 = vmatpush.msra.mxu0 0.0
        %1325 = vmatpush.msra.mxu0 0.0
        %1326 = vmatpush.msra.mxu0 0.0
        %1327 = vmatpush.msra.mxu0 0.0
        %1328 = vmatpush.msra.mxu0 0.0
        %1329 = vmatpush.msra.mxu0 0.0
        %1330 = vmatpush.msra.mxu0 0.0
        %1331 = vmatpush.msra.mxu0 0.0
        %1332 = vmatpush.msra.mxu0 0.0
        %1333 = vmatpush.msra.mxu0 0.0
        %1334 = vmatpush.msra.mxu0 0.0
        %1335 = vmatpush.msra.mxu0 %v1318
        %1336 = vmatpush.msra.mxu0 %v1317
        %1337 = vmatpush.msra.mxu0 %v1316
        %1338 = vmatpush.msra.mxu0 %v1315
        %1339 = vmatmul.f32.gmra.mxu0 %v1321
        %v1340 = vpop.f32.mrf.mxu0
        %v1341 = vadd.f32 %v1319, %v1340
        %1342 = vdwg.mxu0
        %v1343 = vadd.f32 %v1240, %v1341
        %v1344 = vsel %vm301, %v1343, 0.0
        %1345 = vadd.xlane.f32.xlu0 %v1344
        %v1346 = vpop.xlane.xlu0 %1345
        %v1347 = vmul.f32 %v1346, %v749
        %v1348 = vsub.f32 %v1343, %v1347
        %v1349 = vmul.f32 %v1348, %v1348
        %v1350 = vsel %vm301, %v1349, 0.0
        %1351 = vadd.xlane.f32.xlu0 %v1350
        %v1352 = vpop.xlane.xlu0 %1351
        %v1353 = vmul.f32 %v1352, %v749
        %v1354 = vadd.f32 %v1353, 1e-05
        %v1355 = vrsqrt.pop %v1354
        %v1356 = vmul.f32 %v1355, %v1354
        %v1357 = vmul.f32 %v1356, %v1355
        %v1358 = vmul.f32 0.5, %v1357
        %v1359 = vsub.f32 1.5, %v1358
        %v1360 = vmul.f32 %v1355, %v1359
        %vm1361 = vweird.f32 %v1354
        %vm1362 = vweird.f32 %v1355
        %vm1363 = vmor %vm1361, %vm1362
        %v1364 = vsel %vm1363, %v1355, %v1360
        %v1365 = vmul.f32 %v1348, %v1364
        %v1366 = vperm.slane %v290, 6
        %v1367 = vmul.f32 %v1365, %v1366
        %v1368 = vperm.slane %v290, 7
        %v1369 = vadd.f32 %v1367, %v1368
        %1370 = vst.msk [vmem:[%s286] sm:$0xff] %vm301, %v1369
        %s1371 = sand.u32 %s127, 1
        %s1372 = scalar_lea.sflag [#allocation4], %s1371
        %s1373 = sand.u32 %s127, 1
        %s1374 = smul.addr %s1373, 8
        %s1375 = scalar_lea.vmem [#allocation10], %s1374
        // Predicated region
        $region53: #{tpu_custom_call.1} parent=35 // pred_check
          %p1376 = pneg %p137
        $region54: #{tpu_custom_call.1} parent=35 // pred_check_branch
          %1378 = sbr.rel (%p1376) target = $region56
        $region55: #{tpu_custom_call.1} parent=35 // pred_region
          %1380 = vsyncadd %s1372, 0
          %s1381 = smul.addr %s25, 8
          %s1382 = scalar_lea.hbm %s4, %s1381
          %s1384 = sshll.u32 %s1375, 4
          %s1385 = int_to_ptr.vmem [resolvable:$true] %s1384
          %s1386 = sshll.u32 %s1382, 4
          %s1387 = int_to_ptr.hbm [resolvable:$true] %s1386
          %1389 = dma.vmem_to_hbm [thread:$0]  %s1385, 128, %s1387, %s1372
        $region56: #{tpu_custom_call.1} parent=35 // pred_fallthru
          _
      $region36: #{tpu_custom_call.1} parent=5 // pred_fallthru
        _
      %p1390 = scmp.le.s32.totalorder 2, %s20
      // Predicated region
      $region57: #{tpu_custom_call.1} parent=5 // pred_check
        %p1391 = pneg %p1390
      $region58: #{tpu_custom_call.1} parent=5 // pred_check_branch
        %1393 = sbr.rel (%p1391) target = $region60
      $region59: #{tpu_custom_call.1} parent=5 // pred_region
        %s1394 = ssub.s32 %s20, 2
        // Predicated region
        $region61: #{tpu_custom_call.1} parent=59 // pred_check
          %p1395 = pneg %p143
        $region62: #{tpu_custom_call.1} parent=59 // pred_check_branch
          %1397 = sbr.rel (%p1395) target = $region64
        $region63: #{tpu_custom_call.1} parent=59 // pred_region
          %s1398 = sand.u32 %s128, 1
          %s1399 = scalar_lea.sflag [#allocation4], %s1398
          %s1400 = sand.u32 %s128, 1
          %s1401 = smul.addr %s1400, 8
          %s1402 = scalar_lea.vmem [#allocation10], %s1401
          %1404 = dma.done %s1399, 128
        $region64: #{tpu_custom_call.1} parent=59 // pred_fallthru
          _
      $region60: #{tpu_custom_call.1} parent=5 // pred_fallthru
        _
    $region6: #{tpu_custom_call.1} parent=1 // loop_footer
      %s24 = sadd.s32 1, %s20
    $region7: #{tpu_custom_call.1} parent=1 // loop_footer_branch
      %19 = sbr.rel target = $region3
    $region8: #{tpu_custom_call.1} parent=1 // loop_exit
      _
    %1405 = vsyncpa [#allocation3], 1
    %s1406 = scalar_lea.sflag [#allocation3], 1
    %1407 = vsyncpa %s1406, 1
    %1408 = vsyncpa [#allocation6], 1
    %s1409 = scalar_lea.sflag [#allocation6], 1
    %1410 = vsyncpa %s1409, 1
    %1411 = vsyncpa [#allocation9], 1
    %1412 = vsyncpa [#allocation4], 1
    %s1413 = scalar_lea.sflag [#allocation4], 1
    %1414 = vsyncpa %s1413, 1

</llo_original>
